<compile_context>
chip_gen: v5e
topology: v5e:2x2
jax: 0.10.0
libtpu: 0.0.40
codegen_flags: <defaults>
</compile_context>

<pallas_src>
import functools
import math

import jax
import jax.numpy as jnp
from jax.experimental import pallas as pl
from jax.experimental.pallas import tpu as pltpu

FEATURE_DIM = 64           # d_model
NUM_HEADS = 4              # nhead
HEAD_DIM = FEATURE_DIM // NUM_HEADS
DIM_FF = 2048              # nn.TransformerEncoderLayer default dim_feedforward
NUM_LAYERS = 8
EPS = 1e-5                 # layer_norm_eps default


def _layernorm(y, gamma, beta):
    mu = jnp.mean(y, axis=-1, keepdims=True)
    var = jnp.mean((y - mu) ** 2, axis=-1, keepdims=True)
    return (y - mu) * jax.lax.rsqrt(var + EPS) * gamma + beta


# ---------------------------------------------------------------------------
# Fused encoder: one grid step == one full encoder layer (attention + FFN).
# Activation is carried across layers in the resident output block (same block
# index every step -> single HBM writeback at the end).
# ---------------------------------------------------------------------------
def encoder_layer_kernel(x_ref, wqkv_ref, wot_ref, w1_ref, w2_ref,
                         bqkv_ref, b1_ref, vec_ref, o_ref, *, batch, seq):
    l = pl.program_id(0)

    @pl.when(l == 0)
    def _():
        o_ref[...] = x_ref[...]            # load input activation once

    x = o_ref[...]                         # (B*S, D) float32, resident in VMEM
    bs, d = x.shape
    scale = 1.0 / math.sqrt(HEAD_DIM)

    # ----- self-attention: one lane-dense QKV projection (weights streamed bf16) -----
    wqkv = wqkv_ref[0].astype(jnp.float32)                       # (D, 3D)
    qkv = jnp.dot(x, wqkv, preferred_element_type=jnp.float32) \
        + bqkv_ref[pl.ds(l, 1)]                                  # (B*S, 3D)

    wot = wot_ref[0].astype(jnp.float32)                         # (D, D) = Wo^T

    attn = jnp.zeros((bs, d), jnp.float32)
    for h in range(NUM_HEADS):                                   # static 4-iteration loop
        lo = h * HEAD_DIM
        hi = lo + HEAD_DIM
        q3 = qkv[:, lo:hi].reshape(batch, seq, HEAD_DIM)
        k3 = qkv[:, d + lo:d + hi].reshape(batch, seq, HEAD_DIM)
        v3 = qkv[:, 2 * d + lo:2 * d + hi].reshape(batch, seq, HEAD_DIM)
        s = jnp.einsum('bqd,bkd->bqk', q3, k3,
                       preferred_element_type=jnp.float32) * scale      # (B, S, S)
        m = jnp.max(s, axis=-1, keepdims=True)
        e = jnp.exp(s - m)
        p = e / jnp.sum(e, axis=-1, keepdims=True)
        ctx = jnp.einsum('bqk,bkd->bqd', p, v3,
                         preferred_element_type=jnp.float32)            # (B, S, Hd)
        # per-head row-slice of Wo^T: summing over heads == concat_heads @ Wo^T
        attn = attn + jnp.dot(ctx.reshape(bs, HEAD_DIM), wot[lo:hi, :],
                              preferred_element_type=jnp.float32)

    v6 = vec_ref[l]                                              # (6, D): bo,g1,be1,b2,g2,be2
    attn = attn + v6[0:1]                                        # out_proj bias
    y = _layernorm(x + attn, v6[1:2], v6[2:3])                   # residual + norm1

    # ----- feed-forward (B folded into the matmul M dimension, weights streamed bf16) -----
    w1 = w1_ref[0].astype(jnp.float32)                           # (D, F)
    hdn = jnp.maximum(
        jnp.dot(y, w1, preferred_element_type=jnp.float32) + b1_ref[pl.ds(l, 1)], 0.0)
    w2 = w2_ref[0].astype(jnp.float32)                           # (F, D)
    z = jnp.dot(hdn, w2, preferred_element_type=jnp.float32) + v6[3:4]
    o_ref[...] = _layernorm(y + z, v6[4:5], v6[5:6])             # residual + norm2


# ---------------------------------------------------------------------------
# Wrapper: single pallas_call for the whole 8-layer stack.
# ---------------------------------------------------------------------------
def multihead_attention_forward(x_sbd, packed):
    """x_sbd: (S, B, D) float32 (PyTorch batch_first=False). Returns (S, B, D)."""
    S, B, D = x_sbd.shape
    F, L = DIM_FF, NUM_LAYERS
    x2 = jnp.transpose(x_sbd, (1, 0, 2)).reshape(B * S, D)

    kern = functools.partial(encoder_layer_kernel, batch=B, seq=S)
    out = pl.pallas_call(
        kern,
        out_shape=jax.ShapeDtypeStruct((B * S, D), jnp.float32),
        grid=(L,),
        in_specs=[
            pl.BlockSpec((B * S, D), lambda l: (0, 0)),            # x (fetched once)
            pl.BlockSpec((1, D, 3 * D), lambda l: (l, 0, 0)),      # Wqkv (bf16, streamed)
            pl.BlockSpec((1, D, D), lambda l: (l, 0, 0)),          # Wo^T (bf16, streamed)
            pl.BlockSpec((1, D, F), lambda l: (l, 0, 0)),          # W1^T (bf16, streamed)
            pl.BlockSpec((1, F, D), lambda l: (l, 0, 0)),          # W2^T (bf16, streamed)
            pl.BlockSpec((L, 3 * D), lambda l: (0, 0)),            # qkv bias, all layers (once)
            pl.BlockSpec((L, F), lambda l: (0, 0)),                # FFN bias1, all layers (once)
            pl.BlockSpec((L, 6, D), lambda l: (0, 0, 0)),          # small vectors, all layers (once)
        ],
        out_specs=pl.BlockSpec((B * S, D), lambda l: (0, 0)),      # resident accumulator
        input_output_aliases={0: 0},                               # reuse activation buffer in place
        compiler_params=pltpu.CompilerParams(
            dimension_semantics=("arbitrary",)),                   # layers are sequential
    )(x2, packed["wqkv"], packed["wot"], packed["w1t"], packed["w2t"],
      packed["bqkv"], packed["b1"], packed["vec6"])
    return jnp.transpose(out.reshape(B, S, D), (1, 0, 2))


# ---------------------------------------------------------------------------
# Parameter init (PyTorch-layout shapes) + packing into stacked / pre-transposed
# kernel-side arrays (done once, outside the kernel).  Big weights go to bf16.
# ---------------------------------------------------------------------------
def init_params(key):
    D, F = FEATURE_DIM, DIM_FF
    layers = []
    for _ in range(NUM_LAYERS):
        key, *ks = jax.random.split(key, 9)
        in_w = jax.random.normal(ks[0], (3 * D, D), jnp.float32) * 0.05   # in_proj_weight
        in_b = jax.random.normal(ks[1], (3 * D,), jnp.float32) * 0.02     # in_proj_bias
        wo = jax.random.normal(ks[2], (D, D), jnp.float32) * 0.05         # out_proj.weight
        bo = jax.random.normal(ks[3], (D,), jnp.float32) * 0.02           # out_proj.bias
        w1 = jax.random.normal(ks[4], (F, D), jnp.float32) * 0.05         # linear1.weight
        b1 = jax.random.normal(ks[5], (F,), jnp.float32) * 0.02           # linear1.bias
        w2 = jax.random.normal(ks[6], (D, F), jnp.float32) * 0.02         # linear2.weight
        b2 = jax.random.normal(ks[7], (D,), jnp.float32) * 0.02           # linear2.bias
        layers.append(dict(
            wq=in_w[:D], wk=in_w[D:2 * D], wv=in_w[2 * D:],
            bq=in_b[:D], bk=in_b[D:2 * D], bv=in_b[2 * D:],
            wo=wo, bo=bo,
            g1=jnp.ones((D,), jnp.float32), be1=jnp.zeros((D,), jnp.float32),
            w1=w1, b1=b1, w2=w2, b2=b2,
            g2=jnp.ones((D,), jnp.float32), be2=jnp.zeros((D,), jnp.float32),
        ))
    return layers


def pack_params(layers):
    wqkv, wot, w1t, w2t, bqkv, b1, vec6 = [], [], [], [], [], [], []
    for p in layers:
        # x @ (Wq^T | Wk^T | Wv^T): columns are already in PyTorch head-major order.
        wqkv.append(jnp.concatenate([p["wq"].T, p["wk"].T, p["wv"].T], axis=1))   # (D, 3D)
        wot.append(p["wo"].T)                                                     # (D, D)
        w1t.append(p["w1"].T)                                                     # (D, F)
        w2t.append(p["w2"].T)                                                     # (F, D)
        bqkv.append(jnp.concatenate([p["bq"], p["bk"], p["bv"]]))                 # (3D,)
        b1.append(p["b1"])                                                        # (F,)
        vec6.append(jnp.stack([p["bo"], p["g1"], p["be1"],
                               p["b2"], p["g2"], p["be2"]]))                      # (6, D)
    return dict(
        wqkv=jnp.stack(wqkv).astype(jnp.bfloat16),
        wot=jnp.stack(wot).astype(jnp.bfloat16),
        w1t=jnp.stack(w1t).astype(jnp.bfloat16),
        w2t=jnp.stack(w2t).astype(jnp.bfloat16),
        bqkv=jnp.stack(bqkv),                      # small params stay f32
        b1=jnp.stack(b1),
        vec6=jnp.stack(vec6),
    )


# ---------------------------------------------------------------------------
# Pure-JAX reference (same math, no Pallas)
# ---------------------------------------------------------------------------
def _ref_layer(x, p):  # x: (B, S, D)
    B, S, D = x.shape
    q = x @ p["wq"].T + p["bq"]
    k = x @ p["wk"].T + p["bk"]
    v = x @ p["wv"].T + p["bv"]

    def split(t):
        return t.reshape(B, S, NUM_HEADS, HEAD_DIM).transpose(0, 2, 1, 3)

    qh, kh, vh = split(q), split(k), split(v)
    s = jnp.einsum('bhqd,bhkd->bhqk', qh, kh) / math.sqrt(HEAD_DIM)
    a = jax.nn.softmax(s, axis=-1)
    ctx = jnp.einsum('bhqk,bhkd->bhqd', a, vh).transpose(0, 2, 1, 3).reshape(B, S, D)
    attn_out = ctx @ p["wo"].T + p["bo"]
    x = _layernorm(x + attn_out, p["g1"], p["be1"])
    h = jax.nn.relu(x @ p["w1"].T + p["b1"])
    y = h @ p["w2"].T + p["b2"]
    return _layernorm(x + y, p["g2"], p["be2"])


def reference_forward(x_sbd, layers):
    x = jnp.transpose(x_sbd, (1, 0, 2))
    for p in layers:
        x = _ref_layer(x, p)
    return jnp.transpose(x, (1, 0, 2))


def quantize_layers_to_bf16_weights(layers):
    """Reference model with the same bf16-rounded weights the kernel streams."""
    out = []
    for p in layers:
        q = dict(p)
        for k in ("wq", "wk", "wv", "wo", "w1", "w2"):
            q[k] = p[k].astype(jnp.bfloat16).astype(jnp.float32)
        out.append(q)
    return out


if __name__ == "__main__":
    key = jax.random.PRNGKey(0)
    pkey, xkey = jax.random.split(key)
    layers = init_params(pkey)
    packed = pack_params(layers)

    S, B = 8, 2
    x = jax.random.normal(xkey, (S, B, FEATURE_DIM), jnp.float32)

    out = jax.jit(multihead_attention_forward)(x, packed)
    out = jax.block_until_ready(out)

    assert out.shape == (S, B, FEATURE_DIM)
    assert bool(jnp.isfinite(out).all())

    # Exact-math check: reference using the identical bf16-rounded streaming weights.
    ref_q = reference_forward(x, quantize_layers_to_bf16_weights(layers))
    err_q = float(jnp.max(jnp.abs(out - ref_q)))
    assert err_q < 1e-3, f"mismatch vs bf16-weight reference: {err_q}"

    # Sanity check vs the full-f32 module (bf16 weight streaming perturbs numerics slightly).
    ref = reference_forward(x, layers)
    err = float(jnp.max(jnp.abs(out - ref)))
    assert err < 3e-2, f"mismatch vs f32 reference: {err}"

    print("KERNEL_OK")
</pallas_src>

<mosaic_0001>
module attributes {stable_mosaic.version = 11 : i64} {
  func.func @encoder_layer_kernel(%arg0: i32, %arg1: memref<16x64xf32, #tpu.memory_space<vmem>>, %arg2: memref<1x64x192xbf16, #tpu.memory_space<vmem>>, %arg3: memref<1x64x64xbf16, #tpu.memory_space<vmem>>, %arg4: memref<1x64x2048xbf16, #tpu.memory_space<vmem>>, %arg5: memref<1x2048x64xbf16, #tpu.memory_space<vmem>>, %arg6: memref<8x192xf32, #tpu.memory_space<vmem>>, %arg7: memref<8x2048xf32, #tpu.memory_space<vmem>>, %arg8: memref<8x6x64xf32, #tpu.memory_space<vmem>>, %arg9: memref<16x64xf32, #tpu.memory_space<vmem>>) attributes {dimension_semantics = [#tpu.dimension_semantics<arbitrary>], iteration_bounds = array<i64: 8>, scalar_prefetch = 0 : i64, scratch_operands = 0 : i64, tpu.core_type = #tpu.core_type<tc>, window_params = [{pipeline_mode = #tpu.pipeline_mode<synchronous>, transform_indices = @transform_0, window_bounds = array<i64: 16, 64>}, {transform_indices = @transform_1, window_bounds = array<i64: 1, 64, 192>}, {transform_indices = @transform_2, window_bounds = array<i64: 1, 64, 64>}, {transform_indices = @transform_3, window_bounds = array<i64: 1, 64, 2048>}, {transform_indices = @transform_4, window_bounds = array<i64: 1, 2048, 64>}, {pipeline_mode = #tpu.pipeline_mode<synchronous>, transform_indices = @transform_5, window_bounds = array<i64: 8, 192>}, {pipeline_mode = #tpu.pipeline_mode<synchronous>, transform_indices = @transform_6, window_bounds = array<i64: 8, 2048>}, {pipeline_mode = #tpu.pipeline_mode<synchronous>, transform_indices = @transform_7, window_bounds = array<i64: 8, 6, 64>}, {pipeline_mode = #tpu.pipeline_mode<synchronous>, transform_indices = @transform_8, window_bounds = array<i64: 16, 64>}]} {
    %c0_i32 = arith.constant 0 : i32
    %0 = arith.cmpi eq, %arg0, %c0_i32 : i32
    %1 = arith.extui %0 : i1 to i32
    %c0_i32_0 = arith.constant 0 : i32
    %2 = arith.cmpi ne, %1, %c0_i32_0 : i32
    scf.if %2 {
      %c0_58 = arith.constant 0 : index
      %c0_59 = arith.constant 0 : index
      %182 = vector.load %arg1[%c0_58, %c0_59] : memref<16x64xf32, #tpu.memory_space<vmem>>, vector<16x64xf32>
      %c0_60 = arith.constant 0 : index
      %c0_61 = arith.constant 0 : index
      %183 = vector.load %arg9[%c0_60, %c0_61] : memref<16x64xf32, #tpu.memory_space<vmem>>, vector<16x64xf32>
      tpu.vector_store %arg9[%c0_60, %c0_61], %182 {strides = array<i32>} : memref<16x64xf32, #tpu.memory_space<vmem>>, vector<16x64xf32>,
    } else {
    }
    %c0 = arith.constant 0 : index
    %c0_1 = arith.constant 0 : index
    %3 = vector.load %arg9[%c0, %c0_1] : memref<16x64xf32, #tpu.memory_space<vmem>>, vector<16x64xf32>
    %c0_2 = arith.constant 0 : index
    %c0_3 = arith.constant 0 : index
    %c0_4 = arith.constant 0 : index
    %4 = vector.load %arg2[%c0_2, %c0_3, %c0_4] : memref<1x64x192xbf16, #tpu.memory_space<vmem>>, vector<1x64x192xbf16>
    %5 = vector.shape_cast %4 : vector<1x64x192xbf16> to vector<64x192xbf16>
    %6 = arith.extf %5 : vector<64x192xbf16> to vector<64x192xf32>
    %cst = arith.constant dense<0.000000e+00> : vector<16x192xf32>
    %7 = tpu.matmul %3, %6, %cst {dimension_numbers = #tpu.dot_dimension_numbers<[1], [0], [0], [1], [0, 0, 1, 1], [], []>} : vector<16x64xf32>, vector<64x192xf32>, vector<16x192xf32> -> vector<16x192xf32>
    %8 = arith.index_cast %arg0 : i32 to index
    %c0_5 = arith.constant 0 : index
    %9 = vector.load %arg6[%8, %c0_5] : memref<8x192xf32, #tpu.memory_space<vmem>>, vector<1x192xf32>
    %10 = vector.broadcast %9 : vector<1x192xf32> to vector<16x192xf32>
    %11 = arith.addf %7, %10 : vector<16x192xf32>
    %c0_6 = arith.constant 0 : index
    %c0_7 = arith.constant 0 : index
    %c0_8 = arith.constant 0 : index
    %12 = vector.load %arg3[%c0_6, %c0_7, %c0_8] : memref<1x64x64xbf16, #tpu.memory_space<vmem>>, vector<1x64x64xbf16>
    %13 = vector.shape_cast %12 : vector<1x64x64xbf16> to vector<64x64xbf16>
    %14 = arith.extf %13 : vector<64x64xbf16> to vector<64x64xf32>
    %cst_9 = arith.constant 0.000000e+00 : f32
    %15 = vector.broadcast %cst_9 : f32 to vector<16x64xf32>
    %16 = vector.extract_strided_slice %11 {offsets = [0, 0], sizes = [16, 16], strides = [1, 1]} : vector<16x192xf32> to vector<16x16xf32>
    %17 = vector.shape_cast %16 : vector<16x16xf32> to vector<2x8x16xf32>
    %18 = vector.extract_strided_slice %11 {offsets = [0, 64], sizes = [16, 16], strides = [1, 1]} : vector<16x192xf32> to vector<16x16xf32>
    %19 = vector.shape_cast %18 : vector<16x16xf32> to vector<2x8x16xf32>
    %20 = vector.extract_strided_slice %11 {offsets = [0, 128], sizes = [16, 16], strides = [1, 1]} : vector<16x192xf32> to vector<16x16xf32>
    %21 = vector.shape_cast %20 : vector<16x16xf32> to vector<2x8x16xf32>
    "tpu.trace_start"() <{level = 10 : i32, message = "bqd,bkd->bqk"}> : () -> ()
    %cst_10 = arith.constant dense<0.000000e+00> : vector<2x8x8xf32>
    %22 = tpu.matmul %17, %19, %cst_10 {dimension_numbers = #tpu.dot_dimension_numbers<[2], [2], [1], [1], [0, 0, 0, 1, 1, 1], [0], [0]>} : vector<2x8x16xf32>, vector<2x8x16xf32>, vector<2x8x8xf32> -> vector<2x8x8xf32>
    "tpu.trace_stop"() : () -> ()
    %cst_11 = arith.constant 2.500000e-01 : f32
    %23 = vector.broadcast %cst_11 : f32 to vector<2x8x8xf32>
    %24 = arith.mulf %22, %23 : vector<2x8x8xf32>
    %cst_12 = arith.constant dense<0xFF800000> : vector<2x8xf32>
    %25 = vector.multi_reduction <maximumf>, %24, %cst_12 [2] : vector<2x8x8xf32> to vector<2x8xf32>
    %26 = vector.shape_cast %25 : vector<2x8xf32> to vector<2x8x1xf32>
    %27 = vector.broadcast %26 : vector<2x8x1xf32> to vector<2x8x8xf32>
    %28 = arith.subf %24, %27 : vector<2x8x8xf32>
    %29 = math.exp %28 : vector<2x8x8xf32>
    %cst_13 = arith.constant dense<0.000000e+00> : vector<2x8xf32>
    %30 = vector.multi_reduction <add>, %29, %cst_13 [2] : vector<2x8x8xf32> to vector<2x8xf32>
    %31 = vector.shape_cast %30 : vector<2x8xf32> to vector<2x8x1xf32>
    %32 = vector.broadcast %31 : vector<2x8x1xf32> to vector<2x8x8xf32>
    %33 = arith.divf %29, %32 : vector<2x8x8xf32>
    "tpu.trace_start"() <{level = 10 : i32, message = "bqk,bkd->bqd"}> : () -> ()
    %cst_14 = arith.constant dense<0.000000e+00> : vector<2x8x16xf32>
    %34 = tpu.matmul %33, %21, %cst_14 {dimension_numbers = #tpu.dot_dimension_numbers<[2], [1], [1], [2], [0, 0, 0, 1, 1, 2], [0], [0]>} : vector<2x8x8xf32>, vector<2x8x16xf32>, vector<2x8x16xf32> -> vector<2x8x16xf32>
    "tpu.trace_stop"() : () -> ()
    %35 = vector.shape_cast %34 : vector<2x8x16xf32> to vector<16x16xf32>
    %36 = vector.extract_strided_slice %14 {offsets = [0, 0], sizes = [16, 64], strides = [1, 1]} : vector<64x64xf32> to vector<16x64xf32>
    %cst_15 = arith.constant dense<0.000000e+00> : vector<16x64xf32>
    %37 = tpu.matmul %35, %36, %cst_15 {dimension_numbers = #tpu.dot_dimension_numbers<[1], [0], [0], [1], [0, 0, 1, 1], [], []>} : vector<16x16xf32>, vector<16x64xf32>, vector<16x64xf32> -> vector<16x64xf32>
    %38 = arith.addf %15, %37 : vector<16x64xf32>
    %39 = vector.extract_strided_slice %11 {offsets = [0, 16], sizes = [16, 16], strides = [1, 1]} : vector<16x192xf32> to vector<16x16xf32>
    %40 = vector.shape_cast %39 : vector<16x16xf32> to vector<2x8x16xf32>
    %41 = vector.extract_strided_slice %11 {offsets = [0, 80], sizes = [16, 16], strides = [1, 1]} : vector<16x192xf32> to vector<16x16xf32>
    %42 = vector.shape_cast %41 : vector<16x16xf32> to vector<2x8x16xf32>
    %43 = vector.extract_strided_slice %11 {offsets = [0, 144], sizes = [16, 16], strides = [1, 1]} : vector<16x192xf32> to vector<16x16xf32>
    %44 = vector.shape_cast %43 : vector<16x16xf32> to vector<2x8x16xf32>
    "tpu.trace_start"() <{level = 10 : i32, message = "bqd,bkd->bqk"}> : () -> ()
    %cst_16 = arith.constant dense<0.000000e+00> : vector<2x8x8xf32>
    %45 = tpu.matmul %40, %42, %cst_16 {dimension_numbers = #tpu.dot_dimension_numbers<[2], [2], [1], [1], [0, 0, 0, 1, 1, 1], [0], [0]>} : vector<2x8x16xf32>, vector<2x8x16xf32>, vector<2x8x8xf32> -> vector<2x8x8xf32>
    "tpu.trace_stop"() : () -> ()
    %cst_17 = arith.constant 2.500000e-01 : f32
    %46 = vector.broadcast %cst_17 : f32 to vector<2x8x8xf32>
    %47 = arith.mulf %45, %46 : vector<2x8x8xf32>
    %cst_18 = arith.constant dense<0xFF800000> : vector<2x8xf32>
    %48 = vector.multi_reduction <maximumf>, %47, %cst_18 [2] : vector<2x8x8xf32> to vector<2x8xf32>
    %49 = vector.shape_cast %48 : vector<2x8xf32> to vector<2x8x1xf32>
    %50 = vector.broadcast %49 : vector<2x8x1xf32> to vector<2x8x8xf32>
    %51 = arith.subf %47, %50 : vector<2x8x8xf32>
    %52 = math.exp %51 : vector<2x8x8xf32>
    %cst_19 = arith.constant dense<0.000000e+00> : vector<2x8xf32>
    %53 = vector.multi_reduction <add>, %52, %cst_19 [2] : vector<2x8x8xf32> to vector<2x8xf32>
    %54 = vector.shape_cast %53 : vector<2x8xf32> to vector<2x8x1xf32>
    %55 = vector.broadcast %54 : vector<2x8x1xf32> to vector<2x8x8xf32>
    %56 = arith.divf %52, %55 : vector<2x8x8xf32>
    "tpu.trace_start"() <{level = 10 : i32, message = "bqk,bkd->bqd"}> : () -> ()
    %cst_20 = arith.constant dense<0.000000e+00> : vector<2x8x16xf32>
    %57 = tpu.matmul %56, %44, %cst_20 {dimension_numbers = #tpu.dot_dimension_numbers<[2], [1], [1], [2], [0, 0, 0, 1, 1, 2], [0], [0]>} : vector<2x8x8xf32>, vector<2x8x16xf32>, vector<2x8x16xf32> -> vector<2x8x16xf32>
    "tpu.trace_stop"() : () -> ()
    %58 = vector.shape_cast %57 : vector<2x8x16xf32> to vector<16x16xf32>
    %59 = vector.extract_strided_slice %14 {offsets = [16, 0], sizes = [16, 64], strides = [1, 1]} : vector<64x64xf32> to vector<16x64xf32>
    %cst_21 = arith.constant dense<0.000000e+00> : vector<16x64xf32>
    %60 = tpu.matmul %58, %59, %cst_21 {dimension_numbers = #tpu.dot_dimension_numbers<[1], [0], [0], [1], [0, 0, 1, 1], [], []>} : vector<16x16xf32>, vector<16x64xf32>, vector<16x64xf32> -> vector<16x64xf32>
    %61 = arith.addf %38, %60 : vector<16x64xf32>
    %62 = vector.extract_strided_slice %11 {offsets = [0, 32], sizes = [16, 16], strides = [1, 1]} : vector<16x192xf32> to vector<16x16xf32>
    %63 = vector.shape_cast %62 : vector<16x16xf32> to vector<2x8x16xf32>
    %64 = vector.extract_strided_slice %11 {offsets = [0, 96], sizes = [16, 16], strides = [1, 1]} : vector<16x192xf32> to vector<16x16xf32>
    %65 = vector.shape_cast %64 : vector<16x16xf32> to vector<2x8x16xf32>
    %66 = vector.extract_strided_slice %11 {offsets = [0, 160], sizes = [16, 16], strides = [1, 1]} : vector<16x192xf32> to vector<16x16xf32>
    %67 = vector.shape_cast %66 : vector<16x16xf32> to vector<2x8x16xf32>
    "tpu.trace_start"() <{level = 10 : i32, message = "bqd,bkd->bqk"}> : () -> ()
    %cst_22 = arith.constant dense<0.000000e+00> : vector<2x8x8xf32>
    %68 = tpu.matmul %63, %65, %cst_22 {dimension_numbers = #tpu.dot_dimension_numbers<[2], [2], [1], [1], [0, 0, 0, 1, 1, 1], [0], [0]>} : vector<2x8x16xf32>, vector<2x8x16xf32>, vector<2x8x8xf32> -> vector<2x8x8xf32>
    "tpu.trace_stop"() : () -> ()
    %cst_23 = arith.constant 2.500000e-01 : f32
    %69 = vector.broadcast %cst_23 : f32 to vector<2x8x8xf32>
    %70 = arith.mulf %68, %69 : vector<2x8x8xf32>
    %cst_24 = arith.constant dense<0xFF800000> : vector<2x8xf32>
    %71 = vector.multi_reduction <maximumf>, %70, %cst_24 [2] : vector<2x8x8xf32> to vector<2x8xf32>
    %72 = vector.shape_cast %71 : vector<2x8xf32> to vector<2x8x1xf32>
    %73 = vector.broadcast %72 : vector<2x8x1xf32> to vector<2x8x8xf32>
    %74 = arith.subf %70, %73 : vector<2x8x8xf32>
    %75 = math.exp %74 : vector<2x8x8xf32>
    %cst_25 = arith.constant dense<0.000000e+00> : vector<2x8xf32>
    %76 = vector.multi_reduction <add>, %75, %cst_25 [2] : vector<2x8x8xf32> to vector<2x8xf32>
    %77 = vector.shape_cast %76 : vector<2x8xf32> to vector<2x8x1xf32>
    %78 = vector.broadcast %77 : vector<2x8x1xf32> to vector<2x8x8xf32>
    %79 = arith.divf %75, %78 : vector<2x8x8xf32>
    "tpu.trace_start"() <{level = 10 : i32, message = "bqk,bkd->bqd"}> : () -> ()
    %cst_26 = arith.constant dense<0.000000e+00> : vector<2x8x16xf32>
    %80 = tpu.matmul %79, %67, %cst_26 {dimension_numbers = #tpu.dot_dimension_numbers<[2], [1], [1], [2], [0, 0, 0, 1, 1, 2], [0], [0]>} : vector<2x8x8xf32>, vector<2x8x16xf32>, vector<2x8x16xf32> -> vector<2x8x16xf32>
    "tpu.trace_stop"() : () -> ()
    %81 = vector.shape_cast %80 : vector<2x8x16xf32> to vector<16x16xf32>
    %82 = vector.extract_strided_slice %14 {offsets = [32, 0], sizes = [16, 64], strides = [1, 1]} : vector<64x64xf32> to vector<16x64xf32>
    %cst_27 = arith.constant dense<0.000000e+00> : vector<16x64xf32>
    %83 = tpu.matmul %81, %82, %cst_27 {dimension_numbers = #tpu.dot_dimension_numbers<[1], [0], [0], [1], [0, 0, 1, 1], [], []>} : vector<16x16xf32>, vector<16x64xf32>, vector<16x64xf32> -> vector<16x64xf32>
    %84 = arith.addf %61, %83 : vector<16x64xf32>
    %85 = vector.extract_strided_slice %11 {offsets = [0, 48], sizes = [16, 16], strides = [1, 1]} : vector<16x192xf32> to vector<16x16xf32>
    %86 = vector.shape_cast %85 : vector<16x16xf32> to vector<2x8x16xf32>
    %87 = vector.extract_strided_slice %11 {offsets = [0, 112], sizes = [16, 16], strides = [1, 1]} : vector<16x192xf32> to vector<16x16xf32>
    %88 = vector.shape_cast %87 : vector<16x16xf32> to vector<2x8x16xf32>
    %89 = vector.extract_strided_slice %11 {offsets = [0, 176], sizes = [16, 16], strides = [1, 1]} : vector<16x192xf32> to vector<16x16xf32>
    %90 = vector.shape_cast %89 : vector<16x16xf32> to vector<2x8x16xf32>
    "tpu.trace_start"() <{level = 10 : i32, message = "bqd,bkd->bqk"}> : () -> ()
    %cst_28 = arith.constant dense<0.000000e+00> : vector<2x8x8xf32>
    %91 = tpu.matmul %86, %88, %cst_28 {dimension_numbers = #tpu.dot_dimension_numbers<[2], [2], [1], [1], [0, 0, 0, 1, 1, 1], [0], [0]>} : vector<2x8x16xf32>, vector<2x8x16xf32>, vector<2x8x8xf32> -> vector<2x8x8xf32>
    "tpu.trace_stop"() : () -> ()
    %cst_29 = arith.constant 2.500000e-01 : f32
    %92 = vector.broadcast %cst_29 : f32 to vector<2x8x8xf32>
    %93 = arith.mulf %91, %92 : vector<2x8x8xf32>
    %cst_30 = arith.constant dense<0xFF800000> : vector<2x8xf32>
    %94 = vector.multi_reduction <maximumf>, %93, %cst_30 [2] : vector<2x8x8xf32> to vector<2x8xf32>
    %95 = vector.shape_cast %94 : vector<2x8xf32> to vector<2x8x1xf32>
    %96 = vector.broadcast %95 : vector<2x8x1xf32> to vector<2x8x8xf32>
    %97 = arith.subf %93, %96 : vector<2x8x8xf32>
    %98 = math.exp %97 : vector<2x8x8xf32>
    %cst_31 = arith.constant dense<0.000000e+00> : vector<2x8xf32>
    %99 = vector.multi_reduction <add>, %98, %cst_31 [2] : vector<2x8x8xf32> to vector<2x8xf32>
    %100 = vector.shape_cast %99 : vector<2x8xf32> to vector<2x8x1xf32>
    %101 = vector.broadcast %100 : vector<2x8x1xf32> to vector<2x8x8xf32>
    %102 = arith.divf %98, %101 : vector<2x8x8xf32>
    "tpu.trace_start"() <{level = 10 : i32, message = "bqk,bkd->bqd"}> : () -> ()
    %cst_32 = arith.constant dense<0.000000e+00> : vector<2x8x16xf32>
    %103 = tpu.matmul %102, %90, %cst_32 {dimension_numbers = #tpu.dot_dimension_numbers<[2], [1], [1], [2], [0, 0, 0, 1, 1, 2], [0], [0]>} : vector<2x8x8xf32>, vector<2x8x16xf32>, vector<2x8x16xf32> -> vector<2x8x16xf32>
    "tpu.trace_stop"() : () -> ()
    %104 = vector.shape_cast %103 : vector<2x8x16xf32> to vector<16x16xf32>
    %105 = vector.extract_strided_slice %14 {offsets = [48, 0], sizes = [16, 64], strides = [1, 1]} : vector<64x64xf32> to vector<16x64xf32>
    %cst_33 = arith.constant dense<0.000000e+00> : vector<16x64xf32>
    %106 = tpu.matmul %104, %105, %cst_33 {dimension_numbers = #tpu.dot_dimension_numbers<[1], [0], [0], [1], [0, 0, 1, 1], [], []>} : vector<16x16xf32>, vector<16x64xf32>, vector<16x64xf32> -> vector<16x64xf32>
    %107 = arith.addf %84, %106 : vector<16x64xf32>
    %108 = arith.index_cast %arg0 : i32 to index
    %c0_34 = arith.constant 0 : index
    %c0_35 = arith.constant 0 : index
    %109 = vector.load %arg8[%108, %c0_34, %c0_35] : memref<8x6x64xf32, #tpu.memory_space<vmem>>, vector<1x6x64xf32>
    %110 = vector.shape_cast %109 : vector<1x6x64xf32> to vector<6x64xf32>
    %111 = vector.extract_strided_slice %110 {offsets = [0, 0], sizes = [1, 64], strides = [1, 1]} : vector<6x64xf32> to vector<1x64xf32>
    %112 = vector.broadcast %111 : vector<1x64xf32> to vector<16x64xf32>
    %113 = arith.addf %107, %112 : vector<16x64xf32>
    %114 = arith.addf %3, %113 : vector<16x64xf32>
    %115 = vector.extract_strided_slice %110 {offsets = [1, 0], sizes = [1, 64], strides = [1, 1]} : vector<6x64xf32> to vector<1x64xf32>
    %116 = vector.extract_strided_slice %110 {offsets = [2, 0], sizes = [1, 64], strides = [1, 1]} : vector<6x64xf32> to vector<1x64xf32>
    %cst_36 = arith.constant dense<0.000000e+00> : vector<16xf32>
    %117 = vector.multi_reduction <add>, %114, %cst_36 [1] : vector<16x64xf32> to vector<16xf32>
    %118 = vector.shape_cast %117 : vector<16xf32> to vector<16x1xf32>
    %cst_37 = arith.constant 6.400000e+01 : f32
    %119 = vector.broadcast %cst_37 : f32 to vector<16x1xf32>
    %120 = arith.divf %118, %119 : vector<16x1xf32>
    %121 = vector.broadcast %120 : vector<16x1xf32> to vector<16x64xf32>
    %122 = arith.subf %114, %121 : vector<16x64xf32>
    %123 = arith.mulf %122, %122 : vector<16x64xf32>
    %cst_38 = arith.constant dense<0.000000e+00> : vector<16xf32>
    %124 = vector.multi_reduction <add>, %123, %cst_38 [1] : vector<16x64xf32> to vector<16xf32>
    %125 = vector.shape_cast %124 : vector<16xf32> to vector<16x1xf32>
    %cst_39 = arith.constant 6.400000e+01 : f32
    %126 = vector.broadcast %cst_39 : f32 to vector<16x1xf32>
    %127 = arith.divf %125, %126 : vector<16x1xf32>
    %128 = vector.broadcast %120 : vector<16x1xf32> to vector<16x64xf32>
    %129 = arith.subf %114, %128 : vector<16x64xf32>
    %cst_40 = arith.constant 9.99999974E-6 : f32
    %130 = vector.broadcast %cst_40 : f32 to vector<16x1xf32>
    %131 = arith.addf %127, %130 : vector<16x1xf32>
    %132 = math.rsqrt %131 : vector<16x1xf32>
    %133 = vector.broadcast %132 : vector<16x1xf32> to vector<16x64xf32>
    %134 = arith.mulf %129, %133 : vector<16x64xf32>
    %135 = vector.broadcast %115 : vector<1x64xf32> to vector<16x64xf32>
    %136 = arith.mulf %134, %135 : vector<16x64xf32>
    %137 = vector.broadcast %116 : vector<1x64xf32> to vector<16x64xf32>
    %138 = arith.addf %136, %137 : vector<16x64xf32>
    %c0_41 = arith.constant 0 : index
    %c0_42 = arith.constant 0 : index
    %c0_43 = arith.constant 0 : index
    %139 = vector.load %arg4[%c0_41, %c0_42, %c0_43] : memref<1x64x2048xbf16, #tpu.memory_space<vmem>>, vector<1x64x2048xbf16>
    %140 = vector.shape_cast %139 : vector<1x64x2048xbf16> to vector<64x2048xbf16>
    %141 = arith.extf %140 : vector<64x2048xbf16> to vector<64x2048xf32>
    %cst_44 = arith.constant dense<0.000000e+00> : vector<16x2048xf32>
    %142 = tpu.matmul %138, %141, %cst_44 {dimension_numbers = #tpu.dot_dimension_numbers<[1], [0], [0], [1], [0, 0, 1, 1], [], []>} : vector<16x64xf32>, vector<64x2048xf32>, vector<16x2048xf32> -> vector<16x2048xf32>
    %143 = arith.index_cast %arg0 : i32 to index
    %c0_45 = arith.constant 0 : index
    %144 = vector.load %arg7[%143, %c0_45] : memref<8x2048xf32, #tpu.memory_space<vmem>>, vector<1x2048xf32>
    %145 = vector.broadcast %144 : vector<1x2048xf32> to vector<16x2048xf32>
    %146 = arith.addf %142, %145 : vector<16x2048xf32>
    %cst_46 = arith.constant 0.000000e+00 : f32
    %147 = vector.broadcast %cst_46 : f32 to vector<16x2048xf32>
    %148 = arith.maximumf %146, %147 : vector<16x2048xf32>
    %c0_47 = arith.constant 0 : index
    %c0_48 = arith.constant 0 : index
    %c0_49 = arith.constant 0 : index
    %149 = vector.load %arg5[%c0_47, %c0_48, %c0_49] : memref<1x2048x64xbf16, #tpu.memory_space<vmem>>, vector<1x2048x64xbf16>
    %150 = vector.shape_cast %149 : vector<1x2048x64xbf16> to vector<2048x64xbf16>
    %151 = arith.extf %150 : vector<2048x64xbf16> to vector<2048x64xf32>
    %cst_50 = arith.constant dense<0.000000e+00> : vector<16x64xf32>
    %152 = tpu.matmul %148, %151, %cst_50 {dimension_numbers = #tpu.dot_dimension_numbers<[1], [0], [0], [1], [0, 0, 1, 1], [], []>} : vector<16x2048xf32>, vector<2048x64xf32>, vector<16x64xf32> -> vector<16x64xf32>
    %153 = vector.extract_strided_slice %110 {offsets = [3, 0], sizes = [1, 64], strides = [1, 1]} : vector<6x64xf32> to vector<1x64xf32>
    %154 = vector.broadcast %153 : vector<1x64xf32> to vector<16x64xf32>
    %155 = arith.addf %152, %154 : vector<16x64xf32>
    %156 = arith.addf %138, %155 : vector<16x64xf32>
    %157 = vector.extract_strided_slice %110 {offsets = [4, 0], sizes = [1, 64], strides = [1, 1]} : vector<6x64xf32> to vector<1x64xf32>
    %158 = vector.extract_strided_slice %110 {offsets = [5, 0], sizes = [1, 64], strides = [1, 1]} : vector<6x64xf32> to vector<1x64xf32>
    %cst_51 = arith.constant dense<0.000000e+00> : vector<16xf32>
    %159 = vector.multi_reduction <add>, %156, %cst_51 [1] : vector<16x64xf32> to vector<16xf32>
    %160 = vector.shape_cast %159 : vector<16xf32> to vector<16x1xf32>
    %cst_52 = arith.constant 6.400000e+01 : f32
    %161 = vector.broadcast %cst_52 : f32 to vector<16x1xf32>
    %162 = arith.divf %160, %161 : vector<16x1xf32>
    %163 = vector.broadcast %162 : vector<16x1xf32> to vector<16x64xf32>
    %164 = arith.subf %156, %163 : vector<16x64xf32>
    %165 = arith.mulf %164, %164 : vector<16x64xf32>
    %cst_53 = arith.constant dense<0.000000e+00> : vector<16xf32>
    %166 = vector.multi_reduction <add>, %165, %cst_53 [1] : vector<16x64xf32> to vector<16xf32>
    %167 = vector.shape_cast %166 : vector<16xf32> to vector<16x1xf32>
    %cst_54 = arith.constant 6.400000e+01 : f32
    %168 = vector.broadcast %cst_54 : f32 to vector<16x1xf32>
    %169 = arith.divf %167, %168 : vector<16x1xf32>
    %170 = vector.broadcast %162 : vector<16x1xf32> to vector<16x64xf32>
    %171 = arith.subf %156, %170 : vector<16x64xf32>
    %cst_55 = arith.constant 9.99999974E-6 : f32
    %172 = vector.broadcast %cst_55 : f32 to vector<16x1xf32>
    %173 = arith.addf %169, %172 : vector<16x1xf32>
    %174 = math.rsqrt %173 : vector<16x1xf32>
    %175 = vector.broadcast %174 : vector<16x1xf32> to vector<16x64xf32>
    %176 = arith.mulf %171, %175 : vector<16x64xf32>
    %177 = vector.broadcast %157 : vector<1x64xf32> to vector<16x64xf32>
    %178 = arith.mulf %176, %177 : vector<16x64xf32>
    %179 = vector.broadcast %158 : vector<1x64xf32> to vector<16x64xf32>
    %180 = arith.addf %178, %179 : vector<16x64xf32>
    %c0_56 = arith.constant 0 : index
    %c0_57 = arith.constant 0 : index
    %181 = vector.load %arg9[%c0_56, %c0_57] : memref<16x64xf32, #tpu.memory_space<vmem>>, vector<16x64xf32>
    tpu.vector_store %arg9[%c0_56, %c0_57], %180 {strides = array<i32>} : memref<16x64xf32, #tpu.memory_space<vmem>>, vector<16x64xf32>,
    return
  }
  func.func @transform_0(%arg0: i32) -> (i32, i32) {
    %c0_i32 = arith.constant 0 : i32
    %c0_i32_0 = arith.constant 0 : i32
    %c0_i32_1 = arith.constant 0 : i32
    return %c0_i32, %c0_i32_0 : i32, i32
  }
  func.func @transform_1(%arg0: i32) -> (i32, i32, i32) {
    %c0_i32 = arith.constant 0 : i32
    %c0_i32_0 = arith.constant 0 : i32
    %c0_i32_1 = arith.constant 0 : i32
    return %arg0, %c0_i32, %c0_i32_0 : i32, i32, i32
  }
  func.func @transform_2(%arg0: i32) -> (i32, i32, i32) {
    %c0_i32 = arith.constant 0 : i32
    %c0_i32_0 = arith.constant 0 : i32
    %c0_i32_1 = arith.constant 0 : i32
    return %arg0, %c0_i32, %c0_i32_0 : i32, i32, i32
  }
  func.func @transform_3(%arg0: i32) -> (i32, i32, i32) {
    %c0_i32 = arith.constant 0 : i32
    %c0_i32_0 = arith.constant 0 : i32
    %c0_i32_1 = arith.constant 0 : i32
    return %arg0, %c0_i32, %c0_i32_0 : i32, i32, i32
  }
  func.func @transform_4(%arg0: i32) -> (i32, i32, i32) {
    %c0_i32 = arith.constant 0 : i32
    %c0_i32_0 = arith.constant 0 : i32
    %c0_i32_1 = arith.constant 0 : i32
    return %arg0, %c0_i32, %c0_i32_0 : i32, i32, i32
  }
  func.func @transform_5(%arg0: i32) -> (i32, i32) {
    %c0_i32 = arith.constant 0 : i32
    %c0_i32_0 = arith.constant 0 : i32
    %c0_i32_1 = arith.constant 0 : i32
    return %c0_i32, %c0_i32_0 : i32, i32
  }
  func.func @transform_6(%arg0: i32) -> (i32, i32) {
    %c0_i32 = arith.constant 0 : i32
    %c0_i32_0 = arith.constant 0 : i32
    %c0_i32_1 = arith.constant 0 : i32
    return %c0_i32, %c0_i32_0 : i32, i32
  }
  func.func @transform_7(%arg0: i32) -> (i32, i32, i32) {
    %c0_i32 = arith.constant 0 : i32
    %c0_i32_0 = arith.constant 0 : i32
    %c0_i32_1 = arith.constant 0 : i32
    %c0_i32_2 = arith.constant 0 : i32
    return %c0_i32, %c0_i32_0, %c0_i32_1 : i32, i32, i32
  }
  func.func @transform_8(%arg0: i32) -> (i32, i32) {
    %c0_i32 = arith.constant 0 : i32
    %c0_i32_0 = arith.constant 0 : i32
    %c0_i32_1 = arith.constant 0 : i32
    return %c0_i32, %c0_i32_0 : i32, i32
  }
}

</mosaic_0001>

<llo_original>
// kernel: multihead_attention_forward.1
$region0: #{multihead_attention_forward.1}
  #allocation0 [shape = 'u32[]', space=smem, size = 0x4, offset = 0x4, fixed_abs, tag = 'smem constant byte address 0x4 - core index']
  #allocation1 [shape = 'u32[72,128]{1,0:T(1,128)}', space=vmem, size = 0x9000, scoped, tag = 'internal scratch']
  %s0 = inlined_call_operand.vmem [shape: f32[16,64], index: 0, kind: input, shape index: {}, may-alias: {0,8}]
  %s1 = inlined_call_operand.vmem [shape: bf16[8,64,192], index: 1, kind: input, shape index: {}]
  %s2 = inlined_call_operand.vmem [shape: bf16[8,64,64], index: 2, kind: input, shape index: {}]
  %s3 = inlined_call_operand.vmem [shape: bf16[8,64,2048], index: 3, kind: input, shape index: {}]
  %s4 = inlined_call_operand.vmem [shape: bf16[8,2048,64], index: 4, kind: input, shape index: {}]
  %s5 = inlined_call_operand.vmem [shape: f32[8,192], index: 5, kind: input, shape index: {}]
  %s6 = inlined_call_operand.vmem [shape: f32[8,2048], index: 6, kind: input, shape index: {}]
  %s7 = inlined_call_operand.vmem [shape: f32[8,6,64], index: 7, kind: input, shape index: {}]
  %s8 = inlined_call_operand.vmem [shape: f32[16,64], index: 8, kind: output, shape index: {}, may-alias: {0,8}]
  %s9 = sld [smem:[#allocation0]]
  $region69: #{multihead_attention_forward.1} parent=0
    _
  %s11 = ssub.s32 1, %s9
  %s12 = scalar_select 0, %s11, %s9
  loop: start=0, step=1, limit=10
  $region2: #{multihead_attention_forward.1} parent=0 // loop_pre_header
    _
  $region3: #{multihead_attention_forward.1} parent=0 // loop_header
    %s14 = sphi 0, %s18
    %p15 = scmp.ge.s32.totalorder %s14, 10
    %s22 = sphi 0, %s22
    %s24 = sphi 0, %s22
    %s25 = sphi 0, %s24
    %s39 = sphi 0, %s25
    %s45 = sphi 0, %s47
    %s48 = sphi 0, %s45
    %s49 = sphi 0, %s48
    %s65 = sphi 0, %s49
    %s71 = sphi 0, %s73
    %s74 = sphi 0, %s71
    %s75 = sphi 0, %s74
    %s91 = sphi 0, %s75
    %s97 = sphi 0, %s99
    %s100 = sphi 0, %s97
    %s101 = sphi 0, %s100
    %s117 = sphi 0, %s101
    %s123 = sphi 0, %s125
    %s126 = sphi 0, %s123
    %s127 = sphi 0, %s126
    %s143 = sphi 0, %s127
    %s147 = sphi 0, %s147
    %s149 = sphi 0, %s147
    %s150 = sphi 0, %s149
    %s164 = sphi 0, %s150
    %s168 = sphi 0, %s168
    %s170 = sphi 0, %s168
    %s171 = sphi 0, %s170
    %s185 = sphi 0, %s171
    %s189 = sphi 0, %s189
    %s191 = sphi 0, %s189
    %s192 = sphi 0, %s191
    %s206 = sphi 0, %s192
    %s210 = sphi 0, %s210
    %s212 = sphi 0, %s210
    %s213 = sphi 0, %s212
    %s227 = sphi 0, %s213
  $region4: #{multihead_attention_forward.1} parent=0 // loop_header_branch
    %17 = sbr.rel (%p15) target = $region8
  $region5: #{multihead_attention_forward.1} parent=0 // loop_body
    %s19 = ssub.s32 %s14, 1
    %s20 = ssub.s32 %s14, 2
    %s21 = sadd.s32 %s14, 1
    %s23 = sadd.s32 %s22, 1
    %p26 = scmp.eq.s32.totalorder %s14, 7
    %p27 = scmp.ne.s32.totalorder %s22, %s24
    %p28 = scmp.eq.s32.totalorder %s14, 0
    %p29 = por %p27, %p28
    %p30 = scmp.ne.s32.totalorder %s22, %s24
    %p31 = scmp.eq.s32.totalorder %s19, 7
    %p32 = por %p30, %p31
    %p33 = scmp.ne.s32.totalorder %s24, %s25
    %p34 = scmp.eq.s32.totalorder %s19, 0
    %p35 = por %p33, %p34
    %p36 = scmp.ne.s32.totalorder %s24, %s25
    %p37 = scmp.eq.s32.totalorder %s20, 7
    %p38 = por %p36, %p37
    %p40 = scmp.ne.s32.totalorder %s25, %s39
    %p41 = scmp.eq.s32.totalorder %s20, 0
    %p42 = por %p40, %p41
    %s43 = ssub.s32 %s14, %s21
    %p44 = scmp.eq.s32.totalorder %s43, 0
    %s46 = sadd.s32 %s45, 1
    %s47 = scalar_select %p44, %s45, %s46
    %p50 = pneg %p44
    %p51 = scmp.eq.s32.totalorder %s14, 7
    %p52 = por %p50, %p51
    %p53 = scmp.ne.s32.totalorder %s45, %s48
    %p54 = scmp.eq.s32.totalorder %s14, 0
    %p55 = por %p53, %p54
    %p56 = scmp.ne.s32.totalorder %s45, %s48
    %p57 = scmp.eq.s32.totalorder %s19, 7
    %p58 = por %p56, %p57
    %p59 = scmp.ne.s32.totalorder %s48, %s49
    %p60 = scmp.eq.s32.totalorder %s19, 0
    %p61 = por %p59, %p60
    %p62 = scmp.ne.s32.totalorder %s48, %s49
    %p63 = scmp.eq.s32.totalorder %s20, 7
    %p64 = por %p62, %p63
    %p66 = scmp.ne.s32.totalorder %s49, %s65
    %p67 = scmp.eq.s32.totalorder %s20, 0
    %p68 = por %p66, %p67
    %s69 = ssub.s32 %s14, %s21
    %p70 = scmp.eq.s32.totalorder %s69, 0
    %s72 = sadd.s32 %s71, 1
    %s73 = scalar_select %p70, %s71, %s72
    %p76 = pneg %p70
    %p77 = scmp.eq.s32.totalorder %s14, 7
    %p78 = por %p76, %p77
    %p79 = scmp.ne.s32.totalorder %s71, %s74
    %p80 = scmp.eq.s32.totalorder %s14, 0
    %p81 = por %p79, %p80
    %p82 = scmp.ne.s32.totalorder %s71, %s74
    %p83 = scmp.eq.s32.totalorder %s19, 7
    %p84 = por %p82, %p83
    %p85 = scmp.ne.s32.totalorder %s74, %s75
    %p86 = scmp.eq.s32.totalorder %s19, 0
    %p87 = por %p85, %p86
    %p88 = scmp.ne.s32.totalorder %s74, %s75
    %p89 = scmp.eq.s32.totalorder %s20, 7
    %p90 = por %p88, %p89
    %p92 = scmp.ne.s32.totalorder %s75, %s91
    %p93 = scmp.eq.s32.totalorder %s20, 0
    %p94 = por %p92, %p93
    %s95 = ssub.s32 %s14, %s21
    %p96 = scmp.eq.s32.totalorder %s95, 0
    %s98 = sadd.s32 %s97, 1
    %s99 = scalar_select %p96, %s97, %s98
    %p102 = pneg %p96
    %p103 = scmp.eq.s32.totalorder %s14, 7
    %p104 = por %p102, %p103
    %p105 = scmp.ne.s32.totalorder %s97, %s100
    %p106 = scmp.eq.s32.totalorder %s14, 0
    %p107 = por %p105, %p106
    %p108 = scmp.ne.s32.totalorder %s97, %s100
    %p109 = scmp.eq.s32.totalorder %s19, 7
    %p110 = por %p108, %p109
    %p111 = scmp.ne.s32.totalorder %s100, %s101
    %p112 = scmp.eq.s32.totalorder %s19, 0
    %p113 = por %p111, %p112
    %p114 = scmp.ne.s32.totalorder %s100, %s101
    %p115 = scmp.eq.s32.totalorder %s20, 7
    %p116 = por %p114, %p115
    %p118 = scmp.ne.s32.totalorder %s101, %s117
    %p119 = scmp.eq.s32.totalorder %s20, 0
    %p120 = por %p118, %p119
    %s121 = ssub.s32 %s14, %s21
    %p122 = scmp.eq.s32.totalorder %s121, 0
    %s124 = sadd.s32 %s123, 1
    %s125 = scalar_select %p122, %s123, %s124
    %p128 = pneg %p122
    %p129 = scmp.eq.s32.totalorder %s14, 7
    %p130 = por %p128, %p129
    %p131 = scmp.ne.s32.totalorder %s123, %s126
    %p132 = scmp.eq.s32.totalorder %s14, 0
    %p133 = por %p131, %p132
    %p134 = scmp.ne.s32.totalorder %s123, %s126
    %p135 = scmp.eq.s32.totalorder %s19, 7
    %p136 = por %p134, %p135
    %p137 = scmp.ne.s32.totalorder %s126, %s127
    %p138 = scmp.eq.s32.totalorder %s19, 0
    %p139 = por %p137, %p138
    %p140 = scmp.ne.s32.totalorder %s126, %s127
    %p141 = scmp.eq.s32.totalorder %s20, 7
    %p142 = por %p140, %p141
    %p144 = scmp.ne.s32.totalorder %s127, %s143
    %p145 = scmp.eq.s32.totalorder %s20, 0
    %p146 = por %p144, %p145
    %s148 = sadd.s32 %s147, 1
    %p151 = scmp.eq.s32.totalorder %s14, 7
    %p152 = scmp.ne.s32.totalorder %s147, %s149
    %p153 = scmp.eq.s32.totalorder %s14, 0
    %p154 = por %p152, %p153
    %p155 = scmp.ne.s32.totalorder %s147, %s149
    %p156 = scmp.eq.s32.totalorder %s19, 7
    %p157 = por %p155, %p156
    %p158 = scmp.ne.s32.totalorder %s149, %s150
    %p159 = scmp.eq.s32.totalorder %s19, 0
    %p160 = por %p158, %p159
    %p161 = scmp.ne.s32.totalorder %s149, %s150
    %p162 = scmp.eq.s32.totalorder %s20, 7
    %p163 = por %p161, %p162
    %p165 = scmp.ne.s32.totalorder %s150, %s164
    %p166 = scmp.eq.s32.totalorder %s20, 0
    %p167 = por %p165, %p166
    %s169 = sadd.s32 %s168, 1
    %p172 = scmp.eq.s32.totalorder %s14, 7
    %p173 = scmp.ne.s32.totalorder %s168, %s170
    %p174 = scmp.eq.s32.totalorder %s14, 0
    %p175 = por %p173, %p174
    %p176 = scmp.ne.s32.totalorder %s168, %s170
    %p177 = scmp.eq.s32.totalorder %s19, 7
    %p178 = por %p176, %p177
    %p179 = scmp.ne.s32.totalorder %s170, %s171
    %p180 = scmp.eq.s32.totalorder %s19, 0
    %p181 = por %p179, %p180
    %p182 = scmp.ne.s32.totalorder %s170, %s171
    %p183 = scmp.eq.s32.totalorder %s20, 7
    %p184 = por %p182, %p183
    %p186 = scmp.ne.s32.totalorder %s171, %s185
    %p187 = scmp.eq.s32.totalorder %s20, 0
    %p188 = por %p186, %p187
    %s190 = sadd.s32 %s189, 1
    %p193 = scmp.eq.s32.totalorder %s14, 7
    %p194 = scmp.ne.s32.totalorder %s189, %s191
    %p195 = scmp.eq.s32.totalorder %s14, 0
    %p196 = por %p194, %p195
    %p197 = scmp.ne.s32.totalorder %s189, %s191
    %p198 = scmp.eq.s32.totalorder %s19, 7
    %p199 = por %p197, %p198
    %p200 = scmp.ne.s32.totalorder %s191, %s192
    %p201 = scmp.eq.s32.totalorder %s19, 0
    %p202 = por %p200, %p201
    %p203 = scmp.ne.s32.totalorder %s191, %s192
    %p204 = scmp.eq.s32.totalorder %s20, 7
    %p205 = por %p203, %p204
    %p207 = scmp.ne.s32.totalorder %s192, %s206
    %p208 = scmp.eq.s32.totalorder %s20, 0
    %p209 = por %p207, %p208
    %s211 = sadd.s32 %s210, 1
    %p214 = scmp.eq.s32.totalorder %s14, 7
    %p215 = scmp.ne.s32.totalorder %s210, %s212
    %p216 = scmp.eq.s32.totalorder %s14, 0
    %p217 = por %p215, %p216
    %p218 = scmp.ne.s32.totalorder %s210, %s212
    %p219 = scmp.eq.s32.totalorder %s19, 7
    %p220 = por %p218, %p219
    %p221 = scmp.ne.s32.totalorder %s212, %s213
    %p222 = scmp.eq.s32.totalorder %s19, 0
    %p223 = por %p221, %p222
    %p224 = scmp.ne.s32.totalorder %s212, %s213
    %p225 = scmp.eq.s32.totalorder %s20, 7
    %p226 = por %p224, %p225
    %p228 = scmp.ne.s32.totalorder %s213, %s227
    %p229 = scmp.eq.s32.totalorder %s20, 0
    %p230 = por %p228, %p229
    %p231 = scmp.le.s32.totalorder 1, %s14
    %p232 = scmp.lt.s32.totalorder %s14, 9
    %p233 = pnand %p231, %p232
    %p234 = pneg %p233
    // Predicated region
    $region9: #{multihead_attention_forward.1} parent=5 // pred_check
      _
    $region10: #{multihead_attention_forward.1} parent=5 // pred_check_branch
      %236 = sbr.rel (%p233) target = $region12
    $region11: #{multihead_attention_forward.1} parent=5 // pred_region
      %s237 = ssub.s32 %s14, 1
      // Predicated region
      $region13: #{multihead_attention_forward.1} parent=11 // pred_check
        %p238 = pneg %p35
      $region14: #{multihead_attention_forward.1} parent=11 // pred_check_branch
        %240 = sbr.rel (%p238) target = $region16
      $region15: #{multihead_attention_forward.1} parent=11 // pred_region
        _
      $region16: #{multihead_attention_forward.1} parent=11 // pred_fallthru
        _
      // Predicated region
      $region17: #{multihead_attention_forward.1} parent=11 // pred_check
        %p241 = pneg %p160
      $region18: #{multihead_attention_forward.1} parent=11 // pred_check_branch
        %243 = sbr.rel (%p241) target = $region20
      $region19: #{multihead_attention_forward.1} parent=11 // pred_region
        _
      $region20: #{multihead_attention_forward.1} parent=11 // pred_fallthru
        _
      // Predicated region
      $region21: #{multihead_attention_forward.1} parent=11 // pred_check
        %p244 = pneg %p181
      $region22: #{multihead_attention_forward.1} parent=11 // pred_check_branch
        %246 = sbr.rel (%p244) target = $region24
      $region23: #{multihead_attention_forward.1} parent=11 // pred_region
        _
      $region24: #{multihead_attention_forward.1} parent=11 // pred_fallthru
        _
      // Predicated region
      $region25: #{multihead_attention_forward.1} parent=11 // pred_check
        %p247 = pneg %p202
      $region26: #{multihead_attention_forward.1} parent=11 // pred_check_branch
        %249 = sbr.rel (%p247) target = $region28
      $region27: #{multihead_attention_forward.1} parent=11 // pred_region
        _
      $region28: #{multihead_attention_forward.1} parent=11 // pred_fallthru
        _
    $region12: #{multihead_attention_forward.1} parent=5 // pred_fallthru
      _
    %p250 = scmp.lt.s32.totalorder %s14, 8
    // Predicated region
    $region29: #{multihead_attention_forward.1} parent=5 // pred_check
      %p251 = pneg %p250
    $region30: #{multihead_attention_forward.1} parent=5 // pred_check_branch
      %253 = sbr.rel (%p251) target = $region32
    $region31: #{multihead_attention_forward.1} parent=5 // pred_region
      // Predicated region
      $region33: #{multihead_attention_forward.1} parent=31 // pred_check
        %p254 = pneg %p55
      $region34: #{multihead_attention_forward.1} parent=31 // pred_check_branch
        %256 = sbr.rel (%p254) target = $region36
      $region35: #{multihead_attention_forward.1} parent=31 // pred_region
        %p257 = scmp.lt.s32.totalorder %s14, 7
        %s258 = scalar_select %p257, %s14, 7
        %s259 = smul.addr %s258, 16
        %s260 = smul.addr %s259, 4
        %s261 = scalar_lea.vmem %s1, %s260
      $region36: #{multihead_attention_forward.1} parent=31 // pred_fallthru
        _
      // Predicated region
      $region37: #{multihead_attention_forward.1} parent=31 // pred_check
        %p262 = pneg %p81
      $region38: #{multihead_attention_forward.1} parent=31 // pred_check_branch
        %264 = sbr.rel (%p262) target = $region40
      $region39: #{multihead_attention_forward.1} parent=31 // pred_region
        %p265 = scmp.lt.s32.totalorder %s14, 7
        %s266 = scalar_select %p265, %s14, 7
        %s267 = smul.addr %s266, 8
        %s268 = smul.addr %s267, 4
        %s269 = scalar_lea.vmem %s2, %s268
      $region40: #{multihead_attention_forward.1} parent=31 // pred_fallthru
        _
      // Predicated region
      $region41: #{multihead_attention_forward.1} parent=31 // pred_check
        %p270 = pneg %p107
      $region42: #{multihead_attention_forward.1} parent=31 // pred_check_branch
        %272 = sbr.rel (%p270) target = $region44
      $region43: #{multihead_attention_forward.1} parent=31 // pred_region
        %p273 = scmp.lt.s32.totalorder %s14, 7
        %s274 = scalar_select %p273, %s14, 7
        %s275 = smul.addr %s274, 128
        %s276 = smul.addr %s275, 4
        %s277 = scalar_lea.vmem %s3, %s276
      $region44: #{multihead_attention_forward.1} parent=31 // pred_fallthru
        _
      // Predicated region
      $region45: #{multihead_attention_forward.1} parent=31 // pred_check
        %p278 = pneg %p133
      $region46: #{multihead_attention_forward.1} parent=31 // pred_check_branch
        %280 = sbr.rel (%p278) target = $region48
      $region47: #{multihead_attention_forward.1} parent=31 // pred_region
        %p281 = scmp.lt.s32.totalorder %s14, 7
        %s282 = scalar_select %p281, %s14, 7
        %s283 = smul.addr %s282, 256
        %s284 = smul.addr %s283, 4
        %s285 = scalar_lea.vmem %s4, %s284
      $region48: #{multihead_attention_forward.1} parent=31 // pred_fallthru
        _
    $region32: #{multihead_attention_forward.1} parent=5 // pred_fallthru
      _
    %p286 = scmp.le.s32.totalorder 1, %s14
    %p287 = scmp.lt.s32.totalorder %s14, 9
    %p288 = pnand %p286, %p287
    %p289 = pneg %p288
    // Predicated region
    $region49: #{multihead_attention_forward.1} parent=5 // pred_check
      _
    $region50: #{multihead_attention_forward.1} parent=5 // pred_check_branch
      %291 = sbr.rel (%p288) target = $region52
    $region51: #{multihead_attention_forward.1} parent=5 // pred_region
      %s292 = ssub.s32 %s14, 1
      %p293 = pneg %p35
      %p294 = pneg %p32
      %p295 = scmp.lt.s32.totalorder %s19, 7
      %s296 = scalar_select %p295, %s19, 7
      %s297 = smul.addr %s296, 16
      %s298 = smul.addr %s297, 4
      %s299 = scalar_lea.vmem %s1, %s298
      %p300 = pneg %p61
      %p301 = pneg %p58
      %p302 = scmp.lt.s32.totalorder %s19, 7
      %s303 = scalar_select %p302, %s19, 7
      %s304 = smul.addr %s303, 8
      %s305 = smul.addr %s304, 4
      %s306 = scalar_lea.vmem %s2, %s305
      %p307 = pneg %p87
      %p308 = pneg %p84
      %p309 = scmp.lt.s32.totalorder %s19, 7
      %s310 = scalar_select %p309, %s19, 7
      %s311 = smul.addr %s310, 128
      %s312 = smul.addr %s311, 4
      %s313 = scalar_lea.vmem %s3, %s312
      %p314 = pneg %p113
      %p315 = pneg %p110
      %p316 = scmp.lt.s32.totalorder %s19, 7
      %s317 = scalar_select %p316, %s19, 7
      %s318 = smul.addr %s317, 256
      %s319 = smul.addr %s318, 4
      %s320 = scalar_lea.vmem %s4, %s319
      %p321 = pneg %p139
      %p322 = pneg %p136
      %p323 = pneg %p160
      %p324 = pneg %p157
      %p325 = pneg %p181
      %p326 = pneg %p178
      %p327 = pneg %p202
      %p328 = pneg %p199
      %p329 = pneg %p223
      %p330 = pneg %p220
      %p331 = scmp.lt.s32.totalorder %s19, 7
      %s332 = scalar_select %p331, %s19, 7
      %s333 = smul.addr %s332, 16
      %s334 = smul.addr %s333, 4
      %s335 = scalar_lea.vmem %s1, %s334
      %p336 = scmp.lt.s32.totalorder %s19, 7
      %s337 = scalar_select %p336, %s19, 7
      %s338 = smul.addr %s337, 8
      %s339 = smul.addr %s338, 4
      %s340 = scalar_lea.vmem %s2, %s339
      %p341 = scmp.lt.s32.totalorder %s19, 7
      %s342 = scalar_select %p341, %s19, 7
      %s343 = smul.addr %s342, 128
      %s344 = smul.addr %s343, 4
      %s345 = scalar_lea.vmem %s3, %s344
      %p346 = scmp.lt.s32.totalorder %s19, 7
      %s347 = scalar_select %p346, %s19, 7
      %s348 = smul.addr %s347, 256
      %s349 = smul.addr %s348, 4
      %s350 = scalar_lea.vmem %s4, %s349
      %p351 = scmp.eq.s32.totalorder %s19, 0
      // Predicated region
      $region53: #{multihead_attention_forward.1} parent=51 // pred_check
        %p352 = pneg %p351
      $region54: #{multihead_attention_forward.1} parent=51 // pred_check_branch
        %354 = sbr.rel (%p352) target = $region56
      $region55: #{multihead_attention_forward.1} parent=51 // pred_region
        %v355 = vld [vmem:[%s0] sm:$0xff]
        %v356 = vld [vmem:[%s0 + $0x8] sm:$0xff]
        %vm357 = vcmask 523264
        %358 = vst.msk [vmem:[%s8] sm:$0xff] %vm357, %v355
        %359 = vst.msk [vmem:[%s8 + $0x8] sm:$0xff] %vm357, %v356
      $region56: #{multihead_attention_forward.1} parent=51 // pred_fallthru
        _
      %v360 = vld [vmem:[%s8] sm:$0xff]
      %v361 = vld [vmem:[%s8 + $0x8] sm:$0xff]
      %v362 = vld [vmem:[%s335] sm:$0xff]
      %v363 = vld [vmem:[%s335 + $0x8] sm:$0xff]
      %v364 = vld [vmem:[%s335 + $0x10] sm:$0xff]
      %v365 = vld [vmem:[%s335 + $0x18] sm:$0xff]
      %v366 = vld [vmem:[%s335 + $0x20] sm:$0xff]
      %v367 = vld [vmem:[%s335 + $0x28] sm:$0xff]
      %v368 = vld [vmem:[%s335 + $0x30] sm:$0xff]
      %v369 = vld [vmem:[%s335 + $0x38] sm:$0xff]
      %v370 = vunpack.c.l.bf16 %v362
      %v371 = vunpack.c.h.bf16 %v362
      %v372 = vunpack.c.l.bf16 %v363
      %v373 = vunpack.c.h.bf16 %v363
      %v374 = vunpack.c.l.bf16 %v364
      %v375 = vunpack.c.h.bf16 %v364
      %v376 = vunpack.c.l.bf16 %v365
      %v377 = vunpack.c.h.bf16 %v365
      %v378 = vunpack.c.l.bf16 %v366
      %v379 = vunpack.c.h.bf16 %v366
      %v380 = vunpack.c.l.bf16 %v367
      %v381 = vunpack.c.h.bf16 %v367
      %v382 = vunpack.c.l.bf16 %v368
      %v383 = vunpack.c.h.bf16 %v368
      %v384 = vunpack.c.l.bf16 %v369
      %v385 = vunpack.c.h.bf16 %v369
      %s386 = sshra.s32 %s19, 3
      %s387 = sand.u32 %s19, 7
      %s388 = sshra.s32 %s19, 3
      %s389 = sand.u32 %s19, 7
      %s390 = smul.u32 %s386, 2
      %s391 = smul.u32 %s390, 8
      %s392 = sadd.s32 %s391, %s389
      %s393 = scalar_lea.vmem %s5, %s392
      %v394 = vld [vmem:[%s393] ss:$8 sm:$0x3]
      %v396 = vperm.slane %v394, 0
      %v397 = vperm.slane %v394, 1
      %vm400 = vcmask 523264
      %v402 = vsel %vm400, %v360, 0
      %v405 = vsel %vm400, %v361, 0
      %407 = vmatpush.msra.mxu0 0.0
      %408 = vmatpush.msra.mxu0 0.0
      %409 = vmatpush.msra.mxu0 0.0
      %410 = vmatpush.msra.mxu0 0.0
      %411 = vmatpush.msra.mxu0 0.0
      %412 = vmatpush.msra.mxu0 0.0
      %413 = vmatpush.msra.mxu0 0.0
      %414 = vmatpush.msra.mxu0 0.0
      %415 = vmatpush.msra.mxu0 %v384
      %416 = vmatpush.msra.mxu0 %v382
      %417 = vmatpush.msra.mxu0 %v380
      %418 = vmatpush.msra.mxu0 %v378
      %419 = vmatpush.msra.mxu0 %v376
      %420 = vmatpush.msra.mxu0 %v374
      %421 = vmatpush.msra.mxu0 %v372
      %422 = vmatpush.msra.mxu0 %v370
      %423 = vmatmul.f32.gmra.mxu0 %v402
      %v424 = vpop.f32.mrf.mxu0
      %v425 = vadd.f32 %v396, %v424
      %426 = vmatmul.f32.gmra.mxu0 %v405
      %v427 = vpop.f32.mrf.mxu0
      %v428 = vadd.f32 %v396, %v427
      %429 = vdwg.mxu0
      %430 = vmatpush.msra.mxu0 0.0
      %431 = vmatpush.msra.mxu0 0.0
      %432 = vmatpush.msra.mxu0 0.0
      %433 = vmatpush.msra.mxu0 0.0
      %434 = vmatpush.msra.mxu0 0.0
      %435 = vmatpush.msra.mxu0 0.0
      %436 = vmatpush.msra.mxu0 0.0
      %437 = vmatpush.msra.mxu0 0.0
      %438 = vmatpush.msra.mxu0 %v385
      %439 = vmatpush.msra.mxu0 %v383
      %440 = vmatpush.msra.mxu0 %v381
      %441 = vmatpush.msra.mxu0 %v379
      %442 = vmatpush.msra.mxu0 %v377
      %443 = vmatpush.msra.mxu0 %v375
      %444 = vmatpush.msra.mxu0 %v373
      %445 = vmatpush.msra.mxu0 %v371
      %446 = vmatmul.f32.gmra.mxu0 %v402
      %v447 = vpop.f32.mrf.mxu0
      %v448 = vadd.f32 %v397, %v447
      %449 = vmatmul.f32.gmra.mxu0 %v405
      %v450 = vpop.f32.mrf.mxu0
      %v451 = vadd.f32 %v397, %v450
      %452 = vdwg.mxu0
      %v453 = vld [vmem:[%s340] sm:$0xf]
      %v454 = vld [vmem:[%s340 + $0x4] sm:$0xf]
      %v455 = vld [vmem:[%s340 + $0x8] sm:$0xf]
      %v456 = vld [vmem:[%s340 + $0xc] sm:$0xf]
      %v457 = vld [vmem:[%s340 + $0x10] sm:$0xf]
      %v458 = vld [vmem:[%s340 + $0x14] sm:$0xf]
      %v459 = vld [vmem:[%s340 + $0x18] sm:$0xf]
      %v460 = vld [vmem:[%s340 + $0x1c] sm:$0xf]
      %v461 = vunpack.c.l.bf16 %v453
      %v462 = vunpack.c.l.bf16 %v454
      %v463 = vunpack.c.l.bf16 %v455
      %v464 = vunpack.c.l.bf16 %v456
      %v465 = vunpack.c.l.bf16 %v457
      %v466 = vunpack.c.l.bf16 %v458
      %v467 = vunpack.c.l.bf16 %v459
      %v468 = vunpack.c.l.bf16 %v460
      %470 = vrot.lane.b32.xlu0 %v425, 64
      %v471 = vpop.permute.xlu0 %470
      %vm472 = vcmask 130048
      %v473 = vsel %vm472, %v425, 0
      %v475 = vsel %vm472, %v471, 0
      %477 = vmatpush.xpose.msra.mxu0 0.0
      %478 = vmatpush.xpose.msra.mxu0 0.0
      %479 = vmatpush.xpose.msra.mxu0 0.0
      %480 = vmatpush.xpose.msra.mxu0 0.0
      %481 = vmatpush.xpose.msra.mxu0 0.0
      %482 = vmatpush.xpose.msra.mxu0 0.0
      %483 = vmatpush.xpose.msra.mxu0 0.0
      %484 = vmatpush.xpose.msra.mxu0 0.0
      %485 = vmatpush.xpose.msra.mxu0 0.0
      %486 = vmatpush.xpose.msra.mxu0 0.0
      %487 = vmatpush.xpose.msra.mxu0 0.0
      %488 = vmatpush.xpose.msra.mxu0 0.0
      %489 = vmatpush.xpose.msra.mxu0 0.0
      %490 = vmatpush.xpose.msra.mxu0 0.0
      %491 = vmatpush.xpose.msra.mxu0 0.0
      %492 = vmatpush.xpose.msra.mxu0 %v475
      %493 = vmatmul.f32.gmra.mxu0 %v473
      %v494 = vpop.f32.mrf.mxu0
      %v495 = vadd.f32 0.0, %v494
      %496 = vdwg.mxu0
      %498 = vrot.lane.b32.xlu0 %v428, 64
      %v499 = vpop.permute.xlu0 %498
      %v500 = vsel %vm472, %v428, 0
      %v502 = vsel %vm472, %v499, 0
      %504 = vmatpush.xpose.msra.mxu0 0.0
      %505 = vmatpush.xpose.msra.mxu0 0.0
      %506 = vmatpush.xpose.msra.mxu0 0.0
      %507 = vmatpush.xpose.msra.mxu0 0.0
      %508 = vmatpush.xpose.msra.mxu0 0.0
      %509 = vmatpush.xpose.msra.mxu0 0.0
      %510 = vmatpush.xpose.msra.mxu0 0.0
      %511 = vmatpush.xpose.msra.mxu0 0.0
      %512 = vmatpush.xpose.msra.mxu0 0.0
      %513 = vmatpush.xpose.msra.mxu0 0.0
      %514 = vmatpush.xpose.msra.mxu0 0.0
      %515 = vmatpush.xpose.msra.mxu0 0.0
      %516 = vmatpush.xpose.msra.mxu0 0.0
      %517 = vmatpush.xpose.msra.mxu0 0.0
      %518 = vmatpush.xpose.msra.mxu0 0.0
      %519 = vmatpush.xpose.msra.mxu0 %v502
      %520 = vmatmul.f32.gmra.mxu0 %v500
      %v521 = vpop.f32.mrf.mxu0
      %v522 = vadd.f32 0.0, %v521
      %523 = vdwg.mxu0
      %v524 = vmul.f32 %v495, 0.25
      %v525 = vmul.f32 %v522, 0.25
      %vm526 = vcmask 64512
      %v527 = vsel %vm526, %v524, -inf
      %528 = vmax.xlane.f32.xlu0 %v527
      %v529 = vpop.xlane.xlu0 %528
      %v530 = vsel %vm526, %v525, -inf
      %531 = vmax.xlane.f32.xlu0 %v530
      %v532 = vpop.xlane.xlu0 %531
      %v533 = vsub.f32 %v524, %v529
      %v534 = vsub.f32 %v525, %v532
      %v535 = vmul.f32 %v533, 1.442695
      %v536 = vpow.pop %v535
      %v537 = vmul.f32 %v534, 1.442695
      %v538 = vpow.pop %v537
      %v539 = vsel %vm526, %v536, 0.0
      %540 = vadd.xlane.f32.xlu0 %v539
      %v541 = vpop.xlane.xlu0 %540
      %v542 = vsel %vm526, %v538, 0.0
      %543 = vadd.xlane.f32.xlu0 %v542
      %v544 = vpop.xlane.xlu0 %543
      %v545 = vrcp.pop %v541
      %v546 = vmul.f32 %v541, %v545
      %v547 = vsub.f32 1.0, %v546
      %v548 = vmul.f32 %v545, %v547
      %v549 = vadd.f32 %v545, %v548
      %vm550 = vweird.f32 %v541
      %vm551 = vweird.f32 %v545
      %vm552 = vmor %vm550, %vm551
      %v553 = vsel %vm552, %v545, %v549
      %v554 = vand.u32 2147483647, %v541
      %vm555 = vcmp.eq.f32.partialorder %v554, 8.507059e+37
      %v556 = vand.u32 %v541, 2147483648
      %v557 = vor.u32 1.1754944e-38, %v556
      %v558 = vsel %vm555, %v557, %v553
      %v559 = vmul.f32 %v536, %v558
      %v560 = vrcp.pop %v544
      %v561 = vmul.f32 %v544, %v560
      %v562 = vsub.f32 1.0, %v561
      %v563 = vmul.f32 %v560, %v562
      %v564 = vadd.f32 %v560, %v563
      %vm565 = vweird.f32 %v544
      %vm566 = vweird.f32 %v560
      %vm567 = vmor %vm565, %vm566
      %v568 = vsel %vm567, %v560, %v564
      %v569 = vand.u32 2147483647, %v544
      %vm570 = vcmp.eq.f32.partialorder %v569, 8.507059e+37
      %v571 = vand.u32 %v544, 2147483648
      %v572 = vor.u32 1.1754944e-38, %v571
      %v573 = vsel %vm570, %v572, %v568
      %v574 = vmul.f32 %v538, %v573
      %v576 = vsel %vm526, %v559, 0
      %578 = vmatpush.msra.mxu0 0.0
      %579 = vmatpush.msra.mxu0 0.0
      %580 = vmatpush.msra.mxu0 0.0
      %581 = vmatpush.msra.mxu0 0.0
      %582 = vmatpush.msra.mxu0 0.0
      %583 = vmatpush.msra.mxu0 0.0
      %584 = vmatpush.msra.mxu0 0.0
      %585 = vmatpush.msra.mxu0 0.0
      %586 = vmatpush.msra.mxu0 0.0
      %587 = vmatpush.msra.mxu0 0.0
      %588 = vmatpush.msra.mxu0 0.0
      %589 = vmatpush.msra.mxu0 0.0
      %590 = vmatpush.msra.mxu0 0.0
      %591 = vmatpush.msra.mxu0 0.0
      %592 = vmatpush.msra.mxu0 0.0
      %593 = vmatpush.msra.mxu0 %v448
      %594 = vmatmul.f32.gmra.mxu0 %v576
      %v595 = vpop.f32.mrf.mxu0
      %v596 = vadd.f32 0.0, %v595
      %597 = vdwg.mxu0
      %v599 = vsel %vm526, %v574, 0
      %601 = vmatpush.msra.mxu0 0.0
      %602 = vmatpush.msra.mxu0 0.0
      %603 = vmatpush.msra.mxu0 0.0
      %604 = vmatpush.msra.mxu0 0.0
      %605 = vmatpush.msra.mxu0 0.0
      %606 = vmatpush.msra.mxu0 0.0
      %607 = vmatpush.msra.mxu0 0.0
      %608 = vmatpush.msra.mxu0 0.0
      %609 = vmatpush.msra.mxu0 0.0
      %610 = vmatpush.msra.mxu0 0.0
      %611 = vmatpush.msra.mxu0 0.0
      %612 = vmatpush.msra.mxu0 0.0
      %613 = vmatpush.msra.mxu0 0.0
      %614 = vmatpush.msra.mxu0 0.0
      %615 = vmatpush.msra.mxu0 0.0
      %616 = vmatpush.msra.mxu0 %v451
      %617 = vmatmul.f32.gmra.mxu0 %v599
      %v618 = vpop.f32.mrf.mxu0
      %v619 = vadd.f32 0.0, %v618
      %620 = vdwg.mxu0
      %621 = vrot.lane.b32.xlu0 %v425, 112
      %v622 = vpop.permute.xlu0 %621
      %623 = vrot.lane.b32.xlu0 %v425, 48
      %v624 = vpop.permute.xlu0 %623
      %v625 = vsel %vm472, %v622, 0
      %v627 = vsel %vm472, %v624, 0
      %629 = vmatpush.xpose.msra.mxu0 0.0
      %630 = vmatpush.xpose.msra.mxu0 0.0
      %631 = vmatpush.xpose.msra.mxu0 0.0
      %632 = vmatpush.xpose.msra.mxu0 0.0
      %633 = vmatpush.xpose.msra.mxu0 0.0
      %634 = vmatpush.xpose.msra.mxu0 0.0
      %635 = vmatpush.xpose.msra.mxu0 0.0
      %636 = vmatpush.xpose.msra.mxu0 0.0
      %637 = vmatpush.xpose.msra.mxu0 0.0
      %638 = vmatpush.xpose.msra.mxu0 0.0
      %639 = vmatpush.xpose.msra.mxu0 0.0
      %640 = vmatpush.xpose.msra.mxu0 0.0
      %641 = vmatpush.xpose.msra.mxu0 0.0
      %642 = vmatpush.xpose.msra.mxu0 0.0
      %643 = vmatpush.xpose.msra.mxu0 0.0
      %644 = vmatpush.xpose.msra.mxu0 %v627
      %645 = vmatmul.f32.gmra.mxu0 %v625
      %v646 = vpop.f32.mrf.mxu0
      %v647 = vadd.f32 0.0, %v646
      %648 = vdwg.mxu0
      %649 = vrot.lane.b32.xlu0 %v428, 112
      %v650 = vpop.permute.xlu0 %649
      %651 = vrot.lane.b32.xlu0 %v428, 48
      %v652 = vpop.permute.xlu0 %651
      %v653 = vsel %vm472, %v650, 0
      %v655 = vsel %vm472, %v652, 0
      %657 = vmatpush.xpose.msra.mxu0 0.0
      %658 = vmatpush.xpose.msra.mxu0 0.0
      %659 = vmatpush.xpose.msra.mxu0 0.0
      %660 = vmatpush.xpose.msra.mxu0 0.0
      %661 = vmatpush.xpose.msra.mxu0 0.0
      %662 = vmatpush.xpose.msra.mxu0 0.0
      %663 = vmatpush.xpose.msra.mxu0 0.0
      %664 = vmatpush.xpose.msra.mxu0 0.0
      %665 = vmatpush.xpose.msra.mxu0 0.0
      %666 = vmatpush.xpose.msra.mxu0 0.0
      %667 = vmatpush.xpose.msra.mxu0 0.0
      %668 = vmatpush.xpose.msra.mxu0 0.0
      %669 = vmatpush.xpose.msra.mxu0 0.0
      %670 = vmatpush.xpose.msra.mxu0 0.0
      %671 = vmatpush.xpose.msra.mxu0 0.0
      %672 = vmatpush.xpose.msra.mxu0 %v655
      %673 = vmatmul.f32.gmra.mxu0 %v653
      %v674 = vpop.f32.mrf.mxu0
      %v675 = vadd.f32 0.0, %v674
      %676 = vdwg.mxu0
      %v677 = vmul.f32 %v647, 0.25
      %v678 = vmul.f32 %v675, 0.25
      %v679 = vsel %vm526, %v677, -inf
      %680 = vmax.xlane.f32.xlu0 %v679
      %v681 = vpop.xlane.xlu0 %680
      %v682 = vsel %vm526, %v678, -inf
      %683 = vmax.xlane.f32.xlu0 %v682
      %v684 = vpop.xlane.xlu0 %683
      %v685 = vsub.f32 %v677, %v681
      %v686 = vsub.f32 %v678, %v684
      %v687 = vmul.f32 %v685, 1.442695
      %v688 = vpow.pop %v687
      %v689 = vmul.f32 %v686, 1.442695
      %v690 = vpow.pop %v689
      %v691 = vsel %vm526, %v688, 0.0
      %692 = vadd.xlane.f32.xlu0 %v691
      %v693 = vpop.xlane.xlu0 %692
      %v694 = vsel %vm526, %v690, 0.0
      %695 = vadd.xlane.f32.xlu0 %v694
      %v696 = vpop.xlane.xlu0 %695
      %v697 = vrcp.pop %v693
      %v698 = vmul.f32 %v693, %v697
      %v699 = vsub.f32 1.0, %v698
      %v700 = vmul.f32 %v697, %v699
      %v701 = vadd.f32 %v697, %v700
      %vm702 = vweird.f32 %v693
      %vm703 = vweird.f32 %v697
      %vm704 = vmor %vm702, %vm703
      %v705 = vsel %vm704, %v697, %v701
      %v706 = vand.u32 2147483647, %v693
      %vm707 = vcmp.eq.f32.partialorder %v706, 8.507059e+37
      %v708 = vand.u32 %v693, 2147483648
      %v709 = vor.u32 1.1754944e-38, %v708
      %v710 = vsel %vm707, %v709, %v705
      %v711 = vmul.f32 %v688, %v710
      %v712 = vrcp.pop %v696
      %v713 = vmul.f32 %v696, %v712
      %v714 = vsub.f32 1.0, %v713
      %v715 = vmul.f32 %v712, %v714
      %v716 = vadd.f32 %v712, %v715
      %vm717 = vweird.f32 %v696
      %vm718 = vweird.f32 %v712
      %vm719 = vmor %vm717, %vm718
      %v720 = vsel %vm719, %v712, %v716
      %v721 = vand.u32 2147483647, %v696
      %vm722 = vcmp.eq.f32.partialorder %v721, 8.507059e+37
      %v723 = vand.u32 %v696, 2147483648
      %v724 = vor.u32 1.1754944e-38, %v723
      %v725 = vsel %vm722, %v724, %v720
      %v726 = vmul.f32 %v690, %v725
      %728 = vrot.lane.b32.xlu0 %v448, 112
      %v729 = vpop.permute.xlu0 %728
      %v732 = vsel %vm526, %v711, 0
      %734 = vmatpush.msra.mxu0 0.0
      %735 = vmatpush.msra.mxu0 0.0
      %736 = vmatpush.msra.mxu0 0.0
      %737 = vmatpush.msra.mxu0 0.0
      %738 = vmatpush.msra.mxu0 0.0
      %739 = vmatpush.msra.mxu0 0.0
      %740 = vmatpush.msra.mxu0 0.0
      %741 = vmatpush.msra.mxu0 0.0
      %742 = vmatpush.msra.mxu0 0.0
      %743 = vmatpush.msra.mxu0 0.0
      %744 = vmatpush.msra.mxu0 0.0
      %745 = vmatpush.msra.mxu0 0.0
      %746 = vmatpush.msra.mxu0 0.0
      %747 = vmatpush.msra.mxu0 0.0
      %748 = vmatpush.msra.mxu0 0.0
      %749 = vmatpush.msra.mxu0 %v729
      %750 = vmatmul.f32.gmra.mxu0 %v732
      %v751 = vpop.f32.mrf.mxu0
      %v752 = vadd.f32 0.0, %v751
      %753 = vdwg.mxu0
      %755 = vrot.lane.b32.xlu0 %v451, 112
      %v756 = vpop.permute.xlu0 %755
      %v759 = vsel %vm526, %v726, 0
      %761 = vmatpush.msra.mxu0 0.0
      %762 = vmatpush.msra.mxu0 0.0
      %763 = vmatpush.msra.mxu0 0.0
      %764 = vmatpush.msra.mxu0 0.0
      %765 = vmatpush.msra.mxu0 0.0
      %766 = vmatpush.msra.mxu0 0.0
      %767 = vmatpush.msra.mxu0 0.0
      %768 = vmatpush.msra.mxu0 0.0
      %769 = vmatpush.msra.mxu0 0.0
      %770 = vmatpush.msra.mxu0 0.0
      %771 = vmatpush.msra.mxu0 0.0
      %772 = vmatpush.msra.mxu0 0.0
      %773 = vmatpush.msra.mxu0 0.0
      %774 = vmatpush.msra.mxu0 0.0
      %775 = vmatpush.msra.mxu0 0.0
      %776 = vmatpush.msra.mxu0 %v756
      %777 = vmatmul.f32.gmra.mxu0 %v759
      %v778 = vpop.f32.mrf.mxu0
      %v779 = vadd.f32 0.0, %v778
      %780 = vdwg.mxu0
      %v782 = vsel %vm472, %v752, 0
      %v785 = vsel %vm472, %v779, 0
      %787 = vmatpush.msra.mxu0 0.0
      %788 = vmatpush.msra.mxu0 0.0
      %789 = vmatpush.msra.mxu0 0.0
      %790 = vmatpush.msra.mxu0 0.0
      %791 = vmatpush.msra.mxu0 0.0
      %792 = vmatpush.msra.mxu0 0.0
      %793 = vmatpush.msra.mxu0 0.0
      %794 = vmatpush.msra.mxu0 0.0
      %795 = vmatpush.msra.mxu0 0.0
      %796 = vmatpush.msra.mxu0 0.0
      %797 = vmatpush.msra.mxu0 0.0
      %798 = vmatpush.msra.mxu0 0.0
      %799 = vmatpush.msra.mxu0 0.0
      %800 = vmatpush.msra.mxu0 0.0
      %801 = vmatpush.msra.mxu0 %v464
      %802 = vmatpush.msra.mxu0 %v463
      %803 = vmatmul.f32.gmra.mxu0 %v782
      %v804 = vpop.f32.mrf.mxu0
      %v805 = vadd.f32 0.0, %v804
      %806 = vmatmul.f32.gmra.mxu0 %v785
      %v807 = vpop.f32.mrf.mxu0
      %v808 = vadd.f32 0.0, %v807
      %809 = vdwg.mxu0
      %v811 = vsel %vm472, %v596, 0
      %v814 = vsel %vm472, %v619, 0
      %816 = vmatpush.msra.mxu0 0.0
      %817 = vmatpush.msra.mxu0 0.0
      %818 = vmatpush.msra.mxu0 0.0
      %819 = vmatpush.msra.mxu0 0.0
      %820 = vmatpush.msra.mxu0 0.0
      %821 = vmatpush.msra.mxu0 0.0
      %822 = vmatpush.msra.mxu0 0.0
      %823 = vmatpush.msra.mxu0 0.0
      %824 = vmatpush.msra.mxu0 0.0
      %825 = vmatpush.msra.mxu0 0.0
      %826 = vmatpush.msra.mxu0 0.0
      %827 = vmatpush.msra.mxu0 0.0
      %828 = vmatpush.msra.mxu0 0.0
      %829 = vmatpush.msra.mxu0 0.0
      %830 = vmatpush.msra.mxu0 %v462
      %831 = vmatpush.msra.mxu0 %v461
      %832 = vmatmul.f32.gmra.mxu0 %v811
      %v833 = vpop.f32.mrf.mxu0
      %v834 = vadd.f32 %v805, %v833
      %835 = vmatmul.f32.gmra.mxu0 %v814
      %v836 = vpop.f32.mrf.mxu0
      %v837 = vadd.f32 %v808, %v836
      %838 = vdwg.mxu0
      %839 = vrot.lane.b32.xlu0 %v425, 96
      %v840 = vpop.permute.xlu0 %839
      %841 = vrot.lane.b32.xlu0 %v425, 32
      %v842 = vpop.permute.xlu0 %841
      %v843 = vsel %vm472, %v840, 0
      %v845 = vsel %vm472, %v842, 0
      %847 = vmatpush.xpose.msra.mxu0 0.0
      %848 = vmatpush.xpose.msra.mxu0 0.0
      %849 = vmatpush.xpose.msra.mxu0 0.0
      %850 = vmatpush.xpose.msra.mxu0 0.0
      %851 = vmatpush.xpose.msra.mxu0 0.0
      %852 = vmatpush.xpose.msra.mxu0 0.0
      %853 = vmatpush.xpose.msra.mxu0 0.0
      %854 = vmatpush.xpose.msra.mxu0 0.0
      %855 = vmatpush.xpose.msra.mxu0 0.0
      %856 = vmatpush.xpose.msra.mxu0 0.0
      %857 = vmatpush.xpose.msra.mxu0 0.0
      %858 = vmatpush.xpose.msra.mxu0 0.0
      %859 = vmatpush.xpose.msra.mxu0 0.0
      %860 = vmatpush.xpose.msra.mxu0 0.0
      %861 = vmatpush.xpose.msra.mxu0 0.0
      %862 = vmatpush.xpose.msra.mxu0 %v845
      %863 = vmatmul.f32.gmra.mxu0 %v843
      %v864 = vpop.f32.mrf.mxu0
      %v865 = vadd.f32 0.0, %v864
      %866 = vdwg.mxu0
      %867 = vrot.lane.b32.xlu0 %v428, 96
      %v868 = vpop.permute.xlu0 %867
      %869 = vrot.lane.b32.xlu0 %v428, 32
      %v870 = vpop.permute.xlu0 %869
      %v871 = vsel %vm472, %v868, 0
      %v873 = vsel %vm472, %v870, 0
      %875 = vmatpush.xpose.msra.mxu0 0.0
      %876 = vmatpush.xpose.msra.mxu0 0.0
      %877 = vmatpush.xpose.msra.mxu0 0.0
      %878 = vmatpush.xpose.msra.mxu0 0.0
      %879 = vmatpush.xpose.msra.mxu0 0.0
      %880 = vmatpush.xpose.msra.mxu0 0.0
      %881 = vmatpush.xpose.msra.mxu0 0.0
      %882 = vmatpush.xpose.msra.mxu0 0.0
      %883 = vmatpush.xpose.msra.mxu0 0.0
      %884 = vmatpush.xpose.msra.mxu0 0.0
      %885 = vmatpush.xpose.msra.mxu0 0.0
      %886 = vmatpush.xpose.msra.mxu0 0.0
      %887 = vmatpush.xpose.msra.mxu0 0.0
      %888 = vmatpush.xpose.msra.mxu0 0.0
      %889 = vmatpush.xpose.msra.mxu0 0.0
      %890 = vmatpush.xpose.msra.mxu0 %v873
      %891 = vmatmul.f32.gmra.mxu0 %v871
      %v892 = vpop.f32.mrf.mxu0
      %v893 = vadd.f32 0.0, %v892
      %894 = vdwg.mxu0
      %v895 = vmul.f32 %v865, 0.25
      %v896 = vmul.f32 %v893, 0.25
      %v897 = vsel %vm526, %v895, -inf
      %898 = vmax.xlane.f32.xlu0 %v897
      %v899 = vpop.xlane.xlu0 %898
      %v900 = vsel %vm526, %v896, -inf
      %901 = vmax.xlane.f32.xlu0 %v900
      %v902 = vpop.xlane.xlu0 %901
      %v903 = vsub.f32 %v895, %v899
      %v904 = vsub.f32 %v896, %v902
      %v905 = vmul.f32 %v903, 1.442695
      %v906 = vpow.pop %v905
      %v907 = vmul.f32 %v904, 1.442695
      %v908 = vpow.pop %v907
      %v909 = vsel %vm526, %v906, 0.0
      %910 = vadd.xlane.f32.xlu0 %v909
      %v911 = vpop.xlane.xlu0 %910
      %v912 = vsel %vm526, %v908, 0.0
      %913 = vadd.xlane.f32.xlu0 %v912
      %v914 = vpop.xlane.xlu0 %913
      %v915 = vrcp.pop %v911
      %v916 = vmul.f32 %v911, %v915
      %v917 = vsub.f32 1.0, %v916
      %v918 = vmul.f32 %v915, %v917
      %v919 = vadd.f32 %v915, %v918
      %vm920 = vweird.f32 %v911
      %vm921 = vweird.f32 %v915
      %vm922 = vmor %vm920, %vm921
      %v923 = vsel %vm922, %v915, %v919
      %v924 = vand.u32 2147483647, %v911
      %vm925 = vcmp.eq.f32.partialorder %v924, 8.507059e+37
      %v926 = vand.u32 %v911, 2147483648
      %v927 = vor.u32 1.1754944e-38, %v926
      %v928 = vsel %vm925, %v927, %v923
      %v929 = vmul.f32 %v906, %v928
      %v930 = vrcp.pop %v914
      %v931 = vmul.f32 %v914, %v930
      %v932 = vsub.f32 1.0, %v931
      %v933 = vmul.f32 %v930, %v932
      %v934 = vadd.f32 %v930, %v933
      %vm935 = vweird.f32 %v914
      %vm936 = vweird.f32 %v930
      %vm937 = vmor %vm935, %vm936
      %v938 = vsel %vm937, %v930, %v934
      %v939 = vand.u32 2147483647, %v914
      %vm940 = vcmp.eq.f32.partialorder %v939, 8.507059e+37
      %v941 = vand.u32 %v914, 2147483648
      %v942 = vor.u32 1.1754944e-38, %v941
      %v943 = vsel %vm940, %v942, %v938
      %v944 = vmul.f32 %v908, %v943
      %945 = vrot.lane.b32.xlu0 %v448, 96
      %v946 = vpop.permute.xlu0 %945
      %v949 = vsel %vm526, %v929, 0
      %951 = vmatpush.msra.mxu0 0.0
      %952 = vmatpush.msra.mxu0 0.0
      %953 = vmatpush.msra.mxu0 0.0
      %954 = vmatpush.msra.mxu0 0.0
      %955 = vmatpush.msra.mxu0 0.0
      %956 = vmatpush.msra.mxu0 0.0
      %957 = vmatpush.msra.mxu0 0.0
      %958 = vmatpush.msra.mxu0 0.0
      %959 = vmatpush.msra.mxu0 0.0
      %960 = vmatpush.msra.mxu0 0.0
      %961 = vmatpush.msra.mxu0 0.0
      %962 = vmatpush.msra.mxu0 0.0
      %963 = vmatpush.msra.mxu0 0.0
      %964 = vmatpush.msra.mxu0 0.0
      %965 = vmatpush.msra.mxu0 0.0
      %966 = vmatpush.msra.mxu0 %v946
      %967 = vmatmul.f32.gmra.mxu0 %v949
      %v968 = vpop.f32.mrf.mxu0
      %v969 = vadd.f32 0.0, %v968
      %970 = vdwg.mxu0
      %971 = vrot.lane.b32.xlu0 %v451, 96
      %v972 = vpop.permute.xlu0 %971
      %v975 = vsel %vm526, %v944, 0
      %977 = vmatpush.msra.mxu0 0.0
      %978 = vmatpush.msra.mxu0 0.0
      %979 = vmatpush.msra.mxu0 0.0
      %980 = vmatpush.msra.mxu0 0.0
      %981 = vmatpush.msra.mxu0 0.0
      %982 = vmatpush.msra.mxu0 0.0
      %983 = vmatpush.msra.mxu0 0.0
      %984 = vmatpush.msra.mxu0 0.0
      %985 = vmatpush.msra.mxu0 0.0
      %986 = vmatpush.msra.mxu0 0.0
      %987 = vmatpush.msra.mxu0 0.0
      %988 = vmatpush.msra.mxu0 0.0
      %989 = vmatpush.msra.mxu0 0.0
      %990 = vmatpush.msra.mxu0 0.0
      %991 = vmatpush.msra.mxu0 0.0
      %992 = vmatpush.msra.mxu0 %v972
      %993 = vmatmul.f32.gmra.mxu0 %v975
      %v994 = vpop.f32.mrf.mxu0
      %v995 = vadd.f32 0.0, %v994
      %996 = vdwg.mxu0
      %v998 = vsel %vm472, %v969, 0
      %v1001 = vsel %vm472, %v995, 0
      %1003 = vmatpush.msra.mxu0 0.0
      %1004 = vmatpush.msra.mxu0 0.0
      %1005 = vmatpush.msra.mxu0 0.0
      %1006 = vmatpush.msra.mxu0 0.0
      %1007 = vmatpush.msra.mxu0 0.0
      %1008 = vmatpush.msra.mxu0 0.0
      %1009 = vmatpush.msra.mxu0 0.0
      %1010 = vmatpush.msra.mxu0 0.0
      %1011 = vmatpush.msra.mxu0 0.0
      %1012 = vmatpush.msra.mxu0 0.0
      %1013 = vmatpush.msra.mxu0 0.0
      %1014 = vmatpush.msra.mxu0 0.0
      %1015 = vmatpush.msra.mxu0 0.0
      %1016 = vmatpush.msra.mxu0 0.0
      %1017 = vmatpush.msra.mxu0 %v466
      %1018 = vmatpush.msra.mxu0 %v465
      %1019 = vmatmul.f32.gmra.mxu0 %v998
      %v1020 = vpop.f32.mrf.mxu0
      %v1021 = vadd.f32 0.0, %v1020
      %1022 = vmatmul.f32.gmra.mxu0 %v1001
      %v1023 = vpop.f32.mrf.mxu0
      %v1024 = vadd.f32 0.0, %v1023
      %1025 = vdwg.mxu0
      %v1026 = vadd.f32 %v834, %v1021
      %v1027 = vadd.f32 %v837, %v1024
      %1028 = vrot.lane.b32.xlu0 %v425, 80
      %v1029 = vpop.permute.xlu0 %1028
      %1030 = vrot.lane.b32.xlu0 %v425, 16
      %v1031 = vpop.permute.xlu0 %1030
      %v1032 = vsel %vm472, %v1029, 0
      %v1034 = vsel %vm472, %v1031, 0
      %1036 = vmatpush.xpose.msra.mxu0 0.0
      %1037 = vmatpush.xpose.msra.mxu0 0.0
      %1038 = vmatpush.xpose.msra.mxu0 0.0
      %1039 = vmatpush.xpose.msra.mxu0 0.0
      %1040 = vmatpush.xpose.msra.mxu0 0.0
      %1041 = vmatpush.xpose.msra.mxu0 0.0
      %1042 = vmatpush.xpose.msra.mxu0 0.0
      %1043 = vmatpush.xpose.msra.mxu0 0.0
      %1044 = vmatpush.xpose.msra.mxu0 0.0
      %1045 = vmatpush.xpose.msra.mxu0 0.0
      %1046 = vmatpush.xpose.msra.mxu0 0.0
      %1047 = vmatpush.xpose.msra.mxu0 0.0
      %1048 = vmatpush.xpose.msra.mxu0 0.0
      %1049 = vmatpush.xpose.msra.mxu0 0.0
      %1050 = vmatpush.xpose.msra.mxu0 0.0
      %1051 = vmatpush.xpose.msra.mxu0 %v1034
      %1052 = vmatmul.f32.gmra.mxu0 %v1032
      %v1053 = vpop.f32.mrf.mxu0
      %v1054 = vadd.f32 0.0, %v1053
      %1055 = vdwg.mxu0
      %1056 = vrot.lane.b32.xlu0 %v428, 80
      %v1057 = vpop.permute.xlu0 %1056
      %1058 = vrot.lane.b32.xlu0 %v428, 16
      %v1059 = vpop.permute.xlu0 %1058
      %v1060 = vsel %vm472, %v1057, 0
      %v1062 = vsel %vm472, %v1059, 0
      %1064 = vmatpush.xpose.msra.mxu0 0.0
      %1065 = vmatpush.xpose.msra.mxu0 0.0
      %1066 = vmatpush.xpose.msra.mxu0 0.0
      %1067 = vmatpush.xpose.msra.mxu0 0.0
      %1068 = vmatpush.xpose.msra.mxu0 0.0
      %1069 = vmatpush.xpose.msra.mxu0 0.0
      %1070 = vmatpush.xpose.msra.mxu0 0.0
      %1071 = vmatpush.xpose.msra.mxu0 0.0
      %1072 = vmatpush.xpose.msra.mxu0 0.0
      %1073 = vmatpush.xpose.msra.mxu0 0.0
      %1074 = vmatpush.xpose.msra.mxu0 0.0
      %1075 = vmatpush.xpose.msra.mxu0 0.0
      %1076 = vmatpush.xpose.msra.mxu0 0.0
      %1077 = vmatpush.xpose.msra.mxu0 0.0
      %1078 = vmatpush.xpose.msra.mxu0 0.0
      %1079 = vmatpush.xpose.msra.mxu0 %v1062
      %1080 = vmatmul.f32.gmra.mxu0 %v1060
      %v1081 = vpop.f32.mrf.mxu0
      %v1082 = vadd.f32 0.0, %v1081
      %1083 = vdwg.mxu0
      %v1084 = vmul.f32 %v1054, 0.25
      %v1085 = vmul.f32 %v1082, 0.25
      %v1086 = vsel %vm526, %v1084, -inf
      %1087 = vmax.xlane.f32.xlu0 %v1086
      %v1088 = vpop.xlane.xlu0 %1087
      %v1089 = vsel %vm526, %v1085, -inf
      %1090 = vmax.xlane.f32.xlu0 %v1089
      %v1091 = vpop.xlane.xlu0 %1090
      %v1092 = vsub.f32 %v1084, %v1088
      %v1093 = vsub.f32 %v1085, %v1091
      %v1094 = vmul.f32 %v1092, 1.442695
      %v1095 = vpow.pop %v1094
      %v1096 = vmul.f32 %v1093, 1.442695
      %v1097 = vpow.pop %v1096
      %v1098 = vsel %vm526, %v1095, 0.0
      %1099 = vadd.xlane.f32.xlu0 %v1098
      %v1100 = vpop.xlane.xlu0 %1099
      %v1101 = vsel %vm526, %v1097, 0.0
      %1102 = vadd.xlane.f32.xlu0 %v1101
      %v1103 = vpop.xlane.xlu0 %1102
      %v1104 = vrcp.pop %v1100
      %v1105 = vmul.f32 %v1100, %v1104
      %v1106 = vsub.f32 1.0, %v1105
      %v1107 = vmul.f32 %v1104, %v1106
      %v1108 = vadd.f32 %v1104, %v1107
      %vm1109 = vweird.f32 %v1100
      %vm1110 = vweird.f32 %v1104
      %vm1111 = vmor %vm1109, %vm1110
      %v1112 = vsel %vm1111, %v1104, %v1108
      %v1113 = vand.u32 2147483647, %v1100
      %vm1114 = vcmp.eq.f32.partialorder %v1113, 8.507059e+37
      %v1115 = vand.u32 %v1100, 2147483648
      %v1116 = vor.u32 1.1754944e-38, %v1115
      %v1117 = vsel %vm1114, %v1116, %v1112
      %v1118 = vmul.f32 %v1095, %v1117
      %v1119 = vrcp.pop %v1103
      %v1120 = vmul.f32 %v1103, %v1119
      %v1121 = vsub.f32 1.0, %v1120
      %v1122 = vmul.f32 %v1119, %v1121
      %v1123 = vadd.f32 %v1119, %v1122
      %vm1124 = vweird.f32 %v1103
      %vm1125 = vweird.f32 %v1119
      %vm1126 = vmor %vm1124, %vm1125
      %v1127 = vsel %vm1126, %v1119, %v1123
      %v1128 = vand.u32 2147483647, %v1103
      %vm1129 = vcmp.eq.f32.partialorder %v1128, 8.507059e+37
      %v1130 = vand.u32 %v1103, 2147483648
      %v1131 = vor.u32 1.1754944e-38, %v1130
      %v1132 = vsel %vm1129, %v1131, %v1127
      %v1133 = vmul.f32 %v1097, %v1132
      %1134 = vrot.lane.b32.xlu0 %v448, 80
      %v1135 = vpop.permute.xlu0 %1134
      %v1138 = vsel %vm526, %v1118, 0
      %1140 = vmatpush.msra.mxu0 0.0
      %1141 = vmatpush.msra.mxu0 0.0
      %1142 = vmatpush.msra.mxu0 0.0
      %1143 = vmatpush.msra.mxu0 0.0
      %1144 = vmatpush.msra.mxu0 0.0
      %1145 = vmatpush.msra.mxu0 0.0
      %1146 = vmatpush.msra.mxu0 0.0
      %1147 = vmatpush.msra.mxu0 0.0
      %1148 = vmatpush.msra.mxu0 0.0
      %1149 = vmatpush.msra.mxu0 0.0
      %1150 = vmatpush.msra.mxu0 0.0
      %1151 = vmatpush.msra.mxu0 0.0
      %1152 = vmatpush.msra.mxu0 0.0
      %1153 = vmatpush.msra.mxu0 0.0
      %1154 = vmatpush.msra.mxu0 0.0
      %1155 = vmatpush.msra.mxu0 %v1135
      %1156 = vmatmul.f32.gmra.mxu0 %v1138
      %v1157 = vpop.f32.mrf.mxu0
      %v1158 = vadd.f32 0.0, %v1157
      %1159 = vdwg.mxu0
      %1160 = vrot.lane.b32.xlu0 %v451, 80
      %v1161 = vpop.permute.xlu0 %1160
      %v1164 = vsel %vm526, %v1133, 0
      %1166 = vmatpush.msra.mxu0 0.0
      %1167 = vmatpush.msra.mxu0 0.0
      %1168 = vmatpush.msra.mxu0 0.0
      %1169 = vmatpush.msra.mxu0 0.0
      %1170 = vmatpush.msra.mxu0 0.0
      %1171 = vmatpush.msra.mxu0 0.0
      %1172 = vmatpush.msra.mxu0 0.0
      %1173 = vmatpush.msra.mxu0 0.0
      %1174 = vmatpush.msra.mxu0 0.0
      %1175 = vmatpush.msra.mxu0 0.0
      %1176 = vmatpush.msra.mxu0 0.0
      %1177 = vmatpush.msra.mxu0 0.0
      %1178 = vmatpush.msra.mxu0 0.0
      %1179 = vmatpush.msra.mxu0 0.0
      %1180 = vmatpush.msra.mxu0 0.0
      %1181 = vmatpush.msra.mxu0 %v1161
      %1182 = vmatmul.f32.gmra.mxu0 %v1164
      %v1183 = vpop.f32.mrf.mxu0
      %v1184 = vadd.f32 0.0, %v1183
      %1185 = vdwg.mxu0
      %v1187 = vsel %vm472, %v1158, 0
      %v1190 = vsel %vm472, %v1184, 0
      %1192 = vmatpush.msra.mxu0 0.0
      %1193 = vmatpush.msra.mxu0 0.0
      %1194 = vmatpush.msra.mxu0 0.0
      %1195 = vmatpush.msra.mxu0 0.0
      %1196 = vmatpush.msra.mxu0 0.0
      %1197 = vmatpush.msra.mxu0 0.0
      %1198 = vmatpush.msra.mxu0 0.0
      %1199 = vmatpush.msra.mxu0 0.0
      %1200 = vmatpush.msra.mxu0 0.0
      %1201 = vmatpush.msra.mxu0 0.0
      %1202 = vmatpush.msra.mxu0 0.0
      %1203 = vmatpush.msra.mxu0 0.0
      %1204 = vmatpush.msra.mxu0 0.0
      %1205 = vmatpush.msra.mxu0 0.0
      %1206 = vmatpush.msra.mxu0 %v468
      %1207 = vmatpush.msra.mxu0 %v467
      %1208 = vmatmul.f32.gmra.mxu0 %v1187
      %v1209 = vpop.f32.mrf.mxu0
      %v1210 = vadd.f32 0.0, %v1209
      %1211 = vmatmul.f32.gmra.mxu0 %v1190
      %v1212 = vpop.f32.mrf.mxu0
      %v1213 = vadd.f32 0.0, %v1212
      %1214 = vdwg.mxu0
      %v1215 = vadd.f32 %v1026, %v1210
      %v1216 = vadd.f32 %v1027, %v1213
      %s1217 = smul.u32 %s19, 8
      %s1218 = scalar_lea.vmem %s7, %s1217
      %v1219 = vld [vmem:[%s1218] sm:$0x3f]
      %v1220 = vperm.slane %v1219, 0
      %v1221 = vadd.f32 %v1215, %v1220
      %v1222 = vadd.f32 %v1216, %v1220
      %v1223 = vadd.f32 %v360, %v1221
      %v1224 = vadd.f32 %v361, %v1222
      %v1225 = vsel %vm400, %v1223, 0.0
      %1226 = vadd.xlane.f32.xlu0 %v1225
      %v1227 = vpop.xlane.xlu0 %1226
      %v1228 = vsel %vm400, %v1224, 0.0
      %1229 = vadd.xlane.f32.xlu0 %v1228
      %v1230 = vpop.xlane.xlu0 %1229
      %v1231 = vrcp.pop 64.0
      %v1232 = vmul.f32 64.0, %v1231
      %v1233 = vsub.f32 1.0, %v1232
      %v1234 = vmul.f32 %v1231, %v1233
      %v1235 = vadd.f32 %v1231, %v1234
      %vm1236 = vweird.f32 %v1231
      %v1237 = vsel %vm1236, %v1231, %v1235
      %v1238 = vmul.f32 %v1227, %v1237
      %v1239 = vmul.f32 %v1230, %v1237
      %v1240 = vsub.f32 %v1223, %v1238
      %v1241 = vsub.f32 %v1224, %v1239
      %v1242 = vmul.f32 %v1240, %v1240
      %v1243 = vmul.f32 %v1241, %v1241
      %v1244 = vsel %vm400, %v1242, 0.0
      %1245 = vadd.xlane.f32.xlu0 %v1244
      %v1246 = vpop.xlane.xlu0 %1245
      %v1247 = vsel %vm400, %v1243, 0.0
      %1248 = vadd.xlane.f32.xlu0 %v1247
      %v1249 = vpop.xlane.xlu0 %1248
      %v1250 = vmul.f32 %v1246, %v1237
      %v1251 = vmul.f32 %v1249, %v1237
      %v1252 = vadd.f32 %v1250, 1e-05
      %v1253 = vadd.f32 %v1251, 1e-05
      %v1254 = vrsqrt.pop %v1252
      %v1255 = vmul.f32 %v1254, %v1252
      %v1256 = vmul.f32 %v1255, %v1254
      %v1257 = vmul.f32 0.5, %v1256
      %v1258 = vsub.f32 1.5, %v1257
      %v1259 = vmul.f32 %v1254, %v1258
      %vm1260 = vweird.f32 %v1252
      %vm1261 = vweird.f32 %v1254
      %vm1262 = vmor %vm1260, %vm1261
      %v1263 = vsel %vm1262, %v1254, %v1259
      %v1264 = vrsqrt.pop %v1253
      %v1265 = vmul.f32 %v1264, %v1253
      %v1266 = vmul.f32 %v1265, %v1264
      %v1267 = vmul.f32 0.5, %v1266
      %v1268 = vsub.f32 1.5, %v1267
      %v1269 = vmul.f32 %v1264, %v1268
      %vm1270 = vweird.f32 %v1253
      %vm1271 = vweird.f32 %v1264
      %vm1272 = vmor %vm1270, %vm1271
      %v1273 = vsel %vm1272, %v1264, %v1269
      %v1274 = vmul.f32 %v1240, %v1263
      %v1275 = vmul.f32 %v1241, %v1273
      %v1276 = vperm.slane %v1219, 1
      %v1277 = vmul.f32 %v1274, %v1276
      %v1278 = vmul.f32 %v1275, %v1276
      %v1279 = vperm.slane %v1219, 2
      %v1280 = vadd.f32 %v1277, %v1279
      %v1281 = vadd.f32 %v1278, %v1279
      %v1282 = vld [vmem:[%s345] sm:$0xff]
      %v1283 = vld [vmem:[%s345 + $0x8] sm:$0xff]
      %v1284 = vld [vmem:[%s345 + $0x10] sm:$0xff]
      %v1285 = vld [vmem:[%s345 + $0x18] sm:$0xff]
      %v1286 = vld [vmem:[%s345 + $0x20] sm:$0xff]
      %v1287 = vld [vmem:[%s345 + $0x28] sm:$0xff]
      %v1288 = vld [vmem:[%s345 + $0x30] sm:$0xff]
      %v1289 = vld [vmem:[%s345 + $0x38] sm:$0xff]
      %v1290 = vld [vmem:[%s345 + $0x40] sm:$0xff]
      %v1291 = vld [vmem:[%s345 + $0x48] sm:$0xff]
      %v1292 = vld [vmem:[%s345 + $0x50] sm:$0xff]
      %v1293 = vld [vmem:[%s345 + $0x58] sm:$0xff]
      %v1294 = vld [vmem:[%s345 + $0x60] sm:$0xff]
      %v1295 = vld [vmem:[%s345 + $0x68] sm:$0xff]
      %v1296 = vld [vmem:[%s345 + $0x70] sm:$0xff]
      %v1297 = vld [vmem:[%s345 + $0x78] sm:$0xff]
      %v1298 = vld [vmem:[%s345 + $0x80] sm:$0xff]
      %v1299 = vld [vmem:[%s345 + $0x88] sm:$0xff]
      %v1300 = vld [vmem:[%s345 + $0x90] sm:$0xff]
      %v1301 = vld [vmem:[%s345 + $0x98] sm:$0xff]
      %v1302 = vld [vmem:[%s345 + $0xa0] sm:$0xff]
      %v1303 = vld [vmem:[%s345 + $0xa8] sm:$0xff]
      %v1304 = vld [vmem:[%s345 + $0xb0] sm:$0xff]
      %v1305 = vld [vmem:[%s345 + $0xb8] sm:$0xff]
      %v1306 = vld [vmem:[%s345 + $0xc0] sm:$0xff]
      %v1307 = vld [vmem:[%s345 + $0xc8] sm:$0xff]
      %v1308 = vld [vmem:[%s345 + $0xd0] sm:$0xff]
      %v1309 = vld [vmem:[%s345 + $0xd8] sm:$0xff]
      %v1310 = vld [vmem:[%s345 + $0xe0] sm:$0xff]
      %v1311 = vld [vmem:[%s345 + $0xe8] sm:$0xff]
      %v1312 = vld [vmem:[%s345 + $0xf0] sm:$0xff]
      %v1313 = vld [vmem:[%s345 + $0xf8] sm:$0xff]
      %v1314 = vld [vmem:[%s345 + $0x100] sm:$0xff]
      %v1315 = vld [vmem:[%s345 + $0x108] sm:$0xff]
      %v1316 = vld [vmem:[%s345 + $0x110] sm:$0xff]
      %v1317 = vld [vmem:[%s345 + $0x118] sm:$0xff]
      %v1318 = vld [vmem:[%s345 + $0x120] sm:$0xff]
      %v1319 = vld [vmem:[%s345 + $0x128] sm:$0xff]
      %v1320 = vld [vmem:[%s345 + $0x130] sm:$0xff]
      %v1321 = vld [vmem:[%s345 + $0x138] sm:$0xff]
      %v1322 = vld [vmem:[%s345 + $0x140] sm:$0xff]
      %v1323 = vld [vmem:[%s345 + $0x148] sm:$0xff]
      %v1324 = vld [vmem:[%s345 + $0x150] sm:$0xff]
      %v1325 = vld [vmem:[%s345 + $0x158] sm:$0xff]
      %v1326 = vld [vmem:[%s345 + $0x160] sm:$0xff]
      %v1327 = vld [vmem:[%s345 + $0x168] sm:$0xff]
      %v1328 = vld [vmem:[%s345 + $0x170] sm:$0xff]
      %v1329 = vld [vmem:[%s345 + $0x178] sm:$0xff]
      %v1330 = vld [vmem:[%s345 + $0x180] sm:$0xff]
      %v1331 = vld [vmem:[%s345 + $0x188] sm:$0xff]
      %v1332 = vld [vmem:[%s345 + $0x190] sm:$0xff]
      %v1333 = vld [vmem:[%s345 + $0x198] sm:$0xff]
      %v1334 = vld [vmem:[%s345 + $0x1a0] sm:$0xff]
      %v1335 = vld [vmem:[%s345 + $0x1a8] sm:$0xff]
      %v1336 = vld [vmem:[%s345 + $0x1b0] sm:$0xff]
      %v1337 = vld [vmem:[%s345 + $0x1b8] sm:$0xff]
      %v1338 = vld [vmem:[%s345 + $0x1c0] sm:$0xff]
      %v1339 = vld [vmem:[%s345 + $0x1c8] sm:$0xff]
      %v1340 = vld [vmem:[%s345 + $0x1d0] sm:$0xff]
      %v1341 = vld [vmem:[%s345 + $0x1d8] sm:$0xff]
      %v1342 = vld [vmem:[%s345 + $0x1e0] sm:$0xff]
      %v1343 = vld [vmem:[%s345 + $0x1e8] sm:$0xff]
      %v1344 = vld [vmem:[%s345 + $0x1f0] sm:$0xff]
      %v1345 = vld [vmem:[%s345 + $0x1f8] sm:$0xff]
      %v1346 = vunpack.c.l.bf16 %v1282
      %v1347 = vunpack.c.h.bf16 %v1282
      %v1348 = vunpack.c.l.bf16 %v1283
      %v1349 = vunpack.c.h.bf16 %v1283
      %v1350 = vunpack.c.l.bf16 %v1284
      %v1351 = vunpack.c.h.bf16 %v1284
      %v1352 = vunpack.c.l.bf16 %v1285
      %v1353 = vunpack.c.h.bf16 %v1285
      %v1354 = vunpack.c.l.bf16 %v1286
      %v1355 = vunpack.c.h.bf16 %v1286
      %v1356 = vunpack.c.l.bf16 %v1287
      %v1357 = vunpack.c.h.bf16 %v1287
      %v1358 = vunpack.c.l.bf16 %v1288
      %v1359 = vunpack.c.h.bf16 %v1288
      %v1360 = vunpack.c.l.bf16 %v1289
      %v1361 = vunpack.c.h.bf16 %v1289
      %v1362 = vunpack.c.l.bf16 %v1290
      %v1363 = vunpack.c.h.bf16 %v1290
      %v1364 = vunpack.c.l.bf16 %v1291
      %v1365 = vunpack.c.h.bf16 %v1291
      %v1366 = vunpack.c.l.bf16 %v1292
      %v1367 = vunpack.c.h.bf16 %v1292
      %v1368 = vunpack.c.l.bf16 %v1293
      %v1369 = vunpack.c.h.bf16 %v1293
      %v1370 = vunpack.c.l.bf16 %v1294
      %v1371 = vunpack.c.h.bf16 %v1294
      %v1372 = vunpack.c.l.bf16 %v1295
      %v1373 = vunpack.c.h.bf16 %v1295
      %v1374 = vunpack.c.l.bf16 %v1296
      %v1375 = vunpack.c.h.bf16 %v1296
      %v1376 = vunpack.c.l.bf16 %v1297
      %v1377 = vunpack.c.h.bf16 %v1297
      %v1378 = vunpack.c.l.bf16 %v1298
      %v1379 = vunpack.c.h.bf16 %v1298
      %v1380 = vunpack.c.l.bf16 %v1299
      %v1381 = vunpack.c.h.bf16 %v1299
      %v1382 = vunpack.c.l.bf16 %v1300
      %v1383 = vunpack.c.h.bf16 %v1300
      %v1384 = vunpack.c.l.bf16 %v1301
      %v1385 = vunpack.c.h.bf16 %v1301
      %v1386 = vunpack.c.l.bf16 %v1302
      %v1387 = vunpack.c.h.bf16 %v1302
      %v1388 = vunpack.c.l.bf16 %v1303
      %v1389 = vunpack.c.h.bf16 %v1303
      %v1390 = vunpack.c.l.bf16 %v1304
      %v1391 = vunpack.c.h.bf16 %v1304
      %v1392 = vunpack.c.l.bf16 %v1305
      %v1393 = vunpack.c.h.bf16 %v1305
      %v1394 = vunpack.c.l.bf16 %v1306
      %v1395 = vunpack.c.h.bf16 %v1306
      %v1396 = vunpack.c.l.bf16 %v1307
      %v1397 = vunpack.c.h.bf16 %v1307
      %v1398 = vunpack.c.l.bf16 %v1308
      %v1399 = vunpack.c.h.bf16 %v1308
      %v1400 = vunpack.c.l.bf16 %v1309
      %v1401 = vunpack.c.h.bf16 %v1309
      %v1402 = vunpack.c.l.bf16 %v1310
      %v1403 = vunpack.c.h.bf16 %v1310
      %v1404 = vunpack.c.l.bf16 %v1311
      %v1405 = vunpack.c.h.bf16 %v1311
      %v1406 = vunpack.c.l.bf16 %v1312
      %v1407 = vunpack.c.h.bf16 %v1312
      %v1408 = vunpack.c.l.bf16 %v1313
      %v1409 = vunpack.c.h.bf16 %v1313
      %v1410 = vunpack.c.l.bf16 %v1314
      %v1411 = vunpack.c.h.bf16 %v1314
      %v1412 = vunpack.c.l.bf16 %v1315
      %v1413 = vunpack.c.h.bf16 %v1315
      %v1414 = vunpack.c.l.bf16 %v1316
      %v1415 = vunpack.c.h.bf16 %v1316
      %v1416 = vunpack.c.l.bf16 %v1317
      %v1417 = vunpack.c.h.bf16 %v1317
      %v1418 = vunpack.c.l.bf16 %v1318
      %v1419 = vunpack.c.h.bf16 %v1318
      %v1420 = vunpack.c.l.bf16 %v1319
      %v1421 = vunpack.c.h.bf16 %v1319
      %v1422 = vunpack.c.l.bf16 %v1320
      %v1423 = vunpack.c.h.bf16 %v1320
      %v1424 = vunpack.c.l.bf16 %v1321
      %v1425 = vunpack.c.h.bf16 %v1321
      %v1426 = vunpack.c.l.bf16 %v1322
      %v1427 = vunpack.c.h.bf16 %v1322
      %v1428 = vunpack.c.l.bf16 %v1323
      %v1429 = vunpack.c.h.bf16 %v1323
      %v1430 = vunpack.c.l.bf16 %v1324
      %v1431 = vunpack.c.h.bf16 %v1324
      %v1432 = vunpack.c.l.bf16 %v1325
      %v1433 = vunpack.c.h.bf16 %v1325
      %v1434 = vunpack.c.l.bf16 %v1326
      %v1435 = vunpack.c.h.bf16 %v1326
      %v1436 = vunpack.c.l.bf16 %v1327
      %v1437 = vunpack.c.h.bf16 %v1327
      %v1438 = vunpack.c.l.bf16 %v1328
      %v1439 = vunpack.c.h.bf16 %v1328
      %v1440 = vunpack.c.l.bf16 %v1329
      %v1441 = vunpack.c.h.bf16 %v1329
      %v1442 = vunpack.c.l.bf16 %v1330
      %v1443 = vunpack.c.h.bf16 %v1330
      %v1444 = vunpack.c.l.bf16 %v1331
      %v1445 = vunpack.c.h.bf16 %v1331
      %v1446 = vunpack.c.l.bf16 %v1332
      %v1447 = vunpack.c.h.bf16 %v1332
      %v1448 = vunpack.c.l.bf16 %v1333
      %v1449 = vunpack.c.h.bf16 %v1333
      %v1450 = vunpack.c.l.bf16 %v1334
      %v1451 = vunpack.c.h.bf16 %v1334
      %v1452 = vunpack.c.l.bf16 %v1335
      %v1453 = vunpack.c.h.bf16 %v1335
      %v1454 = vunpack.c.l.bf16 %v1336
      %v1455 = vunpack.c.h.bf16 %v1336
      %v1456 = vunpack.c.l.bf16 %v1337
      %v1457 = vunpack.c.h.bf16 %v1337
      %v1458 = vunpack.c.l.bf16 %v1338
      %v1459 = vunpack.c.h.bf16 %v1338
      %v1460 = vunpack.c.l.bf16 %v1339
      %v1461 = vunpack.c.h.bf16 %v1339
      %v1462 = vunpack.c.l.bf16 %v1340
      %v1463 = vunpack.c.h.bf16 %v1340
      %v1464 = vunpack.c.l.bf16 %v1341
      %v1465 = vunpack.c.h.bf16 %v1341
      %v1466 = vunpack.c.l.bf16 %v1342
      %v1467 = vunpack.c.h.bf16 %v1342
      %v1468 = vunpack.c.l.bf16 %v1343
      %v1469 = vunpack.c.h.bf16 %v1343
      %v1470 = vunpack.c.l.bf16 %v1344
      %v1471 = vunpack.c.h.bf16 %v1344
      %v1472 = vunpack.c.l.bf16 %v1345
      %v1473 = vunpack.c.h.bf16 %v1345
      %s1474 = smul.u32 %s386, 16
      %s1475 = smul.u32 %s1474, 8
      %s1476 = sadd.s32 %s1475, %s389
      %s1477 = scalar_lea.vmem %s6, %s1476
      %v1478 = vld [vmem:[%s1477] ss:$8 sm:$0xf]
      %v1479 = vld [vmem:[%s1477] ss:$8 sm:$0xf0]
      %v1480 = vor.u32 %v1478, %v1479
      %s1481 = sadd.s32 %s1474, 8
      %s1482 = smul.u32 %s1481, 8
      %s1483 = sadd.s32 %s1482, %s389
      %s1484 = scalar_lea.vmem %s6, %s1483
      %v1485 = vld [vmem:[%s1484] ss:$8 sm:$0xf]
      %v1486 = vld [vmem:[%s1484] ss:$8 sm:$0xf0]
      %v1487 = vor.u32 %v1485, %v1486
      %v1490 = vperm.slane %v1480, 0
      %v1491 = vperm.slane %v1480, 1
      %v1492 = vperm.slane %v1480, 2
      %v1493 = vperm.slane %v1480, 3
      %v1494 = vperm.slane %v1480, 4
      %v1495 = vperm.slane %v1480, 5
      %v1496 = vperm.slane %v1480, 6
      %v1497 = vperm.slane %v1480, 7
      %v1498 = vperm.slane %v1487, 0
      %v1499 = vperm.slane %v1487, 1
      %v1500 = vperm.slane %v1487, 2
      %v1501 = vperm.slane %v1487, 3
      %v1502 = vperm.slane %v1487, 4
      %v1503 = vperm.slane %v1487, 5
      %v1504 = vperm.slane %v1487, 6
      %v1505 = vperm.slane %v1487, 7
      %v1523 = vsel %vm400, %v1280, 0
      %v1526 = vsel %vm400, %v1281, 0
      %1528 = vmatpush.msra.mxu0 0.0
      %1529 = vmatpush.msra.mxu0 0.0
      %1530 = vmatpush.msra.mxu0 0.0
      %1531 = vmatpush.msra.mxu0 0.0
      %1532 = vmatpush.msra.mxu0 0.0
      %1533 = vmatpush.msra.mxu0 0.0
      %1534 = vmatpush.msra.mxu0 0.0
      %1535 = vmatpush.msra.mxu0 0.0
      %1536 = vmatpush.msra.mxu0 %v1458
      %1537 = vmatpush.msra.mxu0 %v1442
      %1538 = vmatpush.msra.mxu0 %v1426
      %1539 = vmatpush.msra.mxu0 %v1410
      %1540 = vmatpush.msra.mxu0 %v1394
      %1541 = vmatpush.msra.mxu0 %v1378
      %1542 = vmatpush.msra.mxu0 %v1362
      %1543 = vmatpush.msra.mxu0 %v1346
      %1544 = vmatmul.f32.gmra.mxu0 %v1523
      %v1545 = vpop.f32.mrf.mxu0
      %v1546 = vadd.f32 %v1490, %v1545
      %1547 = vmatmul.f32.gmra.mxu0 %v1526
      %v1548 = vpop.f32.mrf.mxu0
      %v1549 = vadd.f32 %v1490, %v1548
      %1550 = vdwg.mxu0
      %1551 = vmatpush.msra.mxu0 0.0
      %1552 = vmatpush.msra.mxu0 0.0
      %1553 = vmatpush.msra.mxu0 0.0
      %1554 = vmatpush.msra.mxu0 0.0
      %1555 = vmatpush.msra.mxu0 0.0
      %1556 = vmatpush.msra.mxu0 0.0
      %1557 = vmatpush.msra.mxu0 0.0
      %1558 = vmatpush.msra.mxu0 0.0
      %1559 = vmatpush.msra.mxu0 %v1459
      %1560 = vmatpush.msra.mxu0 %v1443
      %1561 = vmatpush.msra.mxu0 %v1427
      %1562 = vmatpush.msra.mxu0 %v1411
      %1563 = vmatpush.msra.mxu0 %v1395
      %1564 = vmatpush.msra.mxu0 %v1379
      %1565 = vmatpush.msra.mxu0 %v1363
      %1566 = vmatpush.msra.mxu0 %v1347
      %1567 = vmatmul.f32.gmra.mxu0 %v1523
      %v1568 = vpop.f32.mrf.mxu0
      %v1569 = vadd.f32 %v1491, %v1568
      %1570 = vmatmul.f32.gmra.mxu0 %v1526
      %v1571 = vpop.f32.mrf.mxu0
      %v1572 = vadd.f32 %v1491, %v1571
      %1573 = vdwg.mxu0
      %1574 = vmatpush.msra.mxu0 0.0
      %1575 = vmatpush.msra.mxu0 0.0
      %1576 = vmatpush.msra.mxu0 0.0
      %1577 = vmatpush.msra.mxu0 0.0
      %1578 = vmatpush.msra.mxu0 0.0
      %1579 = vmatpush.msra.mxu0 0.0
      %1580 = vmatpush.msra.mxu0 0.0
      %1581 = vmatpush.msra.mxu0 0.0
      %1582 = vmatpush.msra.mxu0 %v1460
      %1583 = vmatpush.msra.mxu0 %v1444
      %1584 = vmatpush.msra.mxu0 %v1428
      %1585 = vmatpush.msra.mxu0 %v1412
      %1586 = vmatpush.msra.mxu0 %v1396
      %1587 = vmatpush.msra.mxu0 %v1380
      %1588 = vmatpush.msra.mxu0 %v1364
      %1589 = vmatpush.msra.mxu0 %v1348
      %1590 = vmatmul.f32.gmra.mxu0 %v1523
      %v1591 = vpop.f32.mrf.mxu0
      %v1592 = vadd.f32 %v1492, %v1591
      %1593 = vmatmul.f32.gmra.mxu0 %v1526
      %v1594 = vpop.f32.mrf.mxu0
      %v1595 = vadd.f32 %v1492, %v1594
      %1596 = vdwg.mxu0
      %1597 = vmatpush.msra.mxu0 0.0
      %1598 = vmatpush.msra.mxu0 0.0
      %1599 = vmatpush.msra.mxu0 0.0
      %1600 = vmatpush.msra.mxu0 0.0
      %1601 = vmatpush.msra.mxu0 0.0
      %1602 = vmatpush.msra.mxu0 0.0
      %1603 = vmatpush.msra.mxu0 0.0
      %1604 = vmatpush.msra.mxu0 0.0
      %1605 = vmatpush.msra.mxu0 %v1461
      %1606 = vmatpush.msra.mxu0 %v1445
      %1607 = vmatpush.msra.mxu0 %v1429
      %1608 = vmatpush.msra.mxu0 %v1413
      %1609 = vmatpush.msra.mxu0 %v1397
      %1610 = vmatpush.msra.mxu0 %v1381
      %1611 = vmatpush.msra.mxu0 %v1365
      %1612 = vmatpush.msra.mxu0 %v1349
      %1613 = vmatmul.f32.gmra.mxu0 %v1523
      %v1614 = vpop.f32.mrf.mxu0
      %v1615 = vadd.f32 %v1493, %v1614
      %1616 = vmatmul.f32.gmra.mxu0 %v1526
      %v1617 = vpop.f32.mrf.mxu0
      %v1618 = vadd.f32 %v1493, %v1617
      %1619 = vdwg.mxu0
      %1620 = vmatpush.msra.mxu0 0.0
      %1621 = vmatpush.msra.mxu0 0.0
      %1622 = vmatpush.msra.mxu0 0.0
      %1623 = vmatpush.msra.mxu0 0.0
      %1624 = vmatpush.msra.mxu0 0.0
      %1625 = vmatpush.msra.mxu0 0.0
      %1626 = vmatpush.msra.mxu0 0.0
      %1627 = vmatpush.msra.mxu0 0.0
      %1628 = vmatpush.msra.mxu0 %v1462
      %1629 = vmatpush.msra.mxu0 %v1446
      %1630 = vmatpush.msra.mxu0 %v1430
      %1631 = vmatpush.msra.mxu0 %v1414
      %1632 = vmatpush.msra.mxu0 %v1398
      %1633 = vmatpush.msra.mxu0 %v1382
      %1634 = vmatpush.msra.mxu0 %v1366
      %1635 = vmatpush.msra.mxu0 %v1350
      %1636 = vmatmul.f32.gmra.mxu0 %v1523
      %v1637 = vpop.f32.mrf.mxu0
      %v1638 = vadd.f32 %v1494, %v1637
      %1639 = vmatmul.f32.gmra.mxu0 %v1526
      %v1640 = vpop.f32.mrf.mxu0
      %v1641 = vadd.f32 %v1494, %v1640
      %1642 = vdwg.mxu0
      %1643 = vmatpush.msra.mxu0 0.0
      %1644 = vmatpush.msra.mxu0 0.0
      %1645 = vmatpush.msra.mxu0 0.0
      %1646 = vmatpush.msra.mxu0 0.0
      %1647 = vmatpush.msra.mxu0 0.0
      %1648 = vmatpush.msra.mxu0 0.0
      %1649 = vmatpush.msra.mxu0 0.0
      %1650 = vmatpush.msra.mxu0 0.0
      %1651 = vmatpush.msra.mxu0 %v1463
      %1652 = vmatpush.msra.mxu0 %v1447
      %1653 = vmatpush.msra.mxu0 %v1431
      %1654 = vmatpush.msra.mxu0 %v1415
      %1655 = vmatpush.msra.mxu0 %v1399
      %1656 = vmatpush.msra.mxu0 %v1383
      %1657 = vmatpush.msra.mxu0 %v1367
      %1658 = vmatpush.msra.mxu0 %v1351
      %1659 = vmatmul.f32.gmra.mxu0 %v1523
      %v1660 = vpop.f32.mrf.mxu0
      %v1661 = vadd.f32 %v1495, %v1660
      %1662 = vmatmul.f32.gmra.mxu0 %v1526
      %v1663 = vpop.f32.mrf.mxu0
      %v1664 = vadd.f32 %v1495, %v1663
      %1665 = vdwg.mxu0
      %1666 = vmatpush.msra.mxu0 0.0
      %1667 = vmatpush.msra.mxu0 0.0
      %1668 = vmatpush.msra.mxu0 0.0
      %1669 = vmatpush.msra.mxu0 0.0
      %1670 = vmatpush.msra.mxu0 0.0
      %1671 = vmatpush.msra.mxu0 0.0
      %1672 = vmatpush.msra.mxu0 0.0
      %1673 = vmatpush.msra.mxu0 0.0
      %1674 = vmatpush.msra.mxu0 %v1464
      %1675 = vmatpush.msra.mxu0 %v1448
      %1676 = vmatpush.msra.mxu0 %v1432
      %1677 = vmatpush.msra.mxu0 %v1416
      %1678 = vmatpush.msra.mxu0 %v1400
      %1679 = vmatpush.msra.mxu0 %v1384
      %1680 = vmatpush.msra.mxu0 %v1368
      %1681 = vmatpush.msra.mxu0 %v1352
      %1682 = vmatmul.f32.gmra.mxu0 %v1523
      %v1683 = vpop.f32.mrf.mxu0
      %v1684 = vadd.f32 %v1496, %v1683
      %1685 = vmatmul.f32.gmra.mxu0 %v1526
      %v1686 = vpop.f32.mrf.mxu0
      %v1687 = vadd.f32 %v1496, %v1686
      %1688 = vdwg.mxu0
      %1689 = vmatpush.msra.mxu0 0.0
      %1690 = vmatpush.msra.mxu0 0.0
      %1691 = vmatpush.msra.mxu0 0.0
      %1692 = vmatpush.msra.mxu0 0.0
      %1693 = vmatpush.msra.mxu0 0.0
      %1694 = vmatpush.msra.mxu0 0.0
      %1695 = vmatpush.msra.mxu0 0.0
      %1696 = vmatpush.msra.mxu0 0.0
      %1697 = vmatpush.msra.mxu0 %v1465
      %1698 = vmatpush.msra.mxu0 %v1449
      %1699 = vmatpush.msra.mxu0 %v1433
      %1700 = vmatpush.msra.mxu0 %v1417
      %1701 = vmatpush.msra.mxu0 %v1401
      %1702 = vmatpush.msra.mxu0 %v1385
      %1703 = vmatpush.msra.mxu0 %v1369
      %1704 = vmatpush.msra.mxu0 %v1353
      %1705 = vmatmul.f32.gmra.mxu0 %v1523
      %v1706 = vpop.f32.mrf.mxu0
      %v1707 = vadd.f32 %v1497, %v1706
      %1708 = vmatmul.f32.gmra.mxu0 %v1526
      %v1709 = vpop.f32.mrf.mxu0
      %v1710 = vadd.f32 %v1497, %v1709
      %1711 = vdwg.mxu0
      %1712 = vmatpush.msra.mxu0 0.0
      %1713 = vmatpush.msra.mxu0 0.0
      %1714 = vmatpush.msra.mxu0 0.0
      %1715 = vmatpush.msra.mxu0 0.0
      %1716 = vmatpush.msra.mxu0 0.0
      %1717 = vmatpush.msra.mxu0 0.0
      %1718 = vmatpush.msra.mxu0 0.0
      %1719 = vmatpush.msra.mxu0 0.0
      %1720 = vmatpush.msra.mxu0 %v1466
      %1721 = vmatpush.msra.mxu0 %v1450
      %1722 = vmatpush.msra.mxu0 %v1434
      %1723 = vmatpush.msra.mxu0 %v1418
      %1724 = vmatpush.msra.mxu0 %v1402
      %1725 = vmatpush.msra.mxu0 %v1386
      %1726 = vmatpush.msra.mxu0 %v1370
      %1727 = vmatpush.msra.mxu0 %v1354
      %1728 = vmatmul.f32.gmra.mxu0 %v1523
      %v1729 = vpop.f32.mrf.mxu0
      %v1730 = vadd.f32 %v1498, %v1729
      %1731 = vmatmul.f32.gmra.mxu0 %v1526
      %v1732 = vpop.f32.mrf.mxu0
      %v1733 = vadd.f32 %v1498, %v1732
      %1734 = vdwg.mxu0
      %1735 = vmatpush.msra.mxu0 0.0
      %1736 = vmatpush.msra.mxu0 0.0
      %1737 = vmatpush.msra.mxu0 0.0
      %1738 = vmatpush.msra.mxu0 0.0
      %1739 = vmatpush.msra.mxu0 0.0
      %1740 = vmatpush.msra.mxu0 0.0
      %1741 = vmatpush.msra.mxu0 0.0
      %1742 = vmatpush.msra.mxu0 0.0
      %1743 = vmatpush.msra.mxu0 %v1467
      %1744 = vmatpush.msra.mxu0 %v1451
      %1745 = vmatpush.msra.mxu0 %v1435
      %1746 = vmatpush.msra.mxu0 %v1419
      %1747 = vmatpush.msra.mxu0 %v1403
      %1748 = vmatpush.msra.mxu0 %v1387
      %1749 = vmatpush.msra.mxu0 %v1371
      %1750 = vmatpush.msra.mxu0 %v1355
      %1751 = vmatmul.f32.gmra.mxu0 %v1523
      %v1752 = vpop.f32.mrf.mxu0
      %v1753 = vadd.f32 %v1499, %v1752
      %1754 = vmatmul.f32.gmra.mxu0 %v1526
      %v1755 = vpop.f32.mrf.mxu0
      %v1756 = vadd.f32 %v1499, %v1755
      %1757 = vdwg.mxu0
      %1758 = vmatpush.msra.mxu0 0.0
      %1759 = vmatpush.msra.mxu0 0.0
      %1760 = vmatpush.msra.mxu0 0.0
      %1761 = vmatpush.msra.mxu0 0.0
      %1762 = vmatpush.msra.mxu0 0.0
      %1763 = vmatpush.msra.mxu0 0.0
      %1764 = vmatpush.msra.mxu0 0.0
      %1765 = vmatpush.msra.mxu0 0.0
      %1766 = vmatpush.msra.mxu0 %v1468
      %1767 = vmatpush.msra.mxu0 %v1452
      %1768 = vmatpush.msra.mxu0 %v1436
      %1769 = vmatpush.msra.mxu0 %v1420
      %1770 = vmatpush.msra.mxu0 %v1404
      %1771 = vmatpush.msra.mxu0 %v1388
      %1772 = vmatpush.msra.mxu0 %v1372
      %1773 = vmatpush.msra.mxu0 %v1356
      %1774 = vmatmul.f32.gmra.mxu0 %v1523
      %v1775 = vpop.f32.mrf.mxu0
      %v1776 = vadd.f32 %v1500, %v1775
      %1777 = vmatmul.f32.gmra.mxu0 %v1526
      %v1778 = vpop.f32.mrf.mxu0
      %v1779 = vadd.f32 %v1500, %v1778
      %1780 = vdwg.mxu0
      %1781 = vmatpush.msra.mxu0 0.0
      %1782 = vmatpush.msra.mxu0 0.0
      %1783 = vmatpush.msra.mxu0 0.0
      %1784 = vmatpush.msra.mxu0 0.0
      %1785 = vmatpush.msra.mxu0 0.0
      %1786 = vmatpush.msra.mxu0 0.0
      %1787 = vmatpush.msra.mxu0 0.0
      %1788 = vmatpush.msra.mxu0 0.0
      %1789 = vmatpush.msra.mxu0 %v1469
      %1790 = vmatpush.msra.mxu0 %v1453
      %1791 = vmatpush.msra.mxu0 %v1437
      %1792 = vmatpush.msra.mxu0 %v1421
      %1793 = vmatpush.msra.mxu0 %v1405
      %1794 = vmatpush.msra.mxu0 %v1389
      %1795 = vmatpush.msra.mxu0 %v1373
      %1796 = vmatpush.msra.mxu0 %v1357
      %1797 = vmatmul.f32.gmra.mxu0 %v1523
      %v1798 = vpop.f32.mrf.mxu0
      %v1799 = vadd.f32 %v1501, %v1798
      %1800 = vmatmul.f32.gmra.mxu0 %v1526
      %v1801 = vpop.f32.mrf.mxu0
      %v1802 = vadd.f32 %v1501, %v1801
      %1803 = vdwg.mxu0
      %1804 = vmatpush.msra.mxu0 0.0
      %1805 = vmatpush.msra.mxu0 0.0
      %1806 = vmatpush.msra.mxu0 0.0
      %1807 = vmatpush.msra.mxu0 0.0
      %1808 = vmatpush.msra.mxu0 0.0
      %1809 = vmatpush.msra.mxu0 0.0
      %1810 = vmatpush.msra.mxu0 0.0
      %1811 = vmatpush.msra.mxu0 0.0
      %1812 = vmatpush.msra.mxu0 %v1470
      %1813 = vmatpush.msra.mxu0 %v1454
      %1814 = vmatpush.msra.mxu0 %v1438
      %1815 = vmatpush.msra.mxu0 %v1422
      %1816 = vmatpush.msra.mxu0 %v1406
      %1817 = vmatpush.msra.mxu0 %v1390
      %1818 = vmatpush.msra.mxu0 %v1374
      %1819 = vmatpush.msra.mxu0 %v1358
      %1820 = vmatmul.f32.gmra.mxu0 %v1523
      %v1821 = vpop.f32.mrf.mxu0
      %v1822 = vadd.f32 %v1502, %v1821
      %1823 = vmatmul.f32.gmra.mxu0 %v1526
      %v1824 = vpop.f32.mrf.mxu0
      %v1825 = vadd.f32 %v1502, %v1824
      %1826 = vdwg.mxu0
      %1827 = vmatpush.msra.mxu0 0.0
      %1828 = vmatpush.msra.mxu0 0.0
      %1829 = vmatpush.msra.mxu0 0.0
      %1830 = vmatpush.msra.mxu0 0.0
      %1831 = vmatpush.msra.mxu0 0.0
      %1832 = vmatpush.msra.mxu0 0.0
      %1833 = vmatpush.msra.mxu0 0.0
      %1834 = vmatpush.msra.mxu0 0.0
      %1835 = vmatpush.msra.mxu0 %v1471
      %1836 = vmatpush.msra.mxu0 %v1455
      %1837 = vmatpush.msra.mxu0 %v1439
      %1838 = vmatpush.msra.mxu0 %v1423
      %1839 = vmatpush.msra.mxu0 %v1407
      %1840 = vmatpush.msra.mxu0 %v1391
      %1841 = vmatpush.msra.mxu0 %v1375
      %1842 = vmatpush.msra.mxu0 %v1359
      %1843 = vmatmul.f32.gmra.mxu0 %v1523
      %v1844 = vpop.f32.mrf.mxu0
      %v1845 = vadd.f32 %v1503, %v1844
      %1846 = vmatmul.f32.gmra.mxu0 %v1526
      %v1847 = vpop.f32.mrf.mxu0
      %v1848 = vadd.f32 %v1503, %v1847
      %1849 = vdwg.mxu0
      %1850 = vmatpush.msra.mxu0 0.0
      %1851 = vmatpush.msra.mxu0 0.0
      %1852 = vmatpush.msra.mxu0 0.0
      %1853 = vmatpush.msra.mxu0 0.0
      %1854 = vmatpush.msra.mxu0 0.0
      %1855 = vmatpush.msra.mxu0 0.0
      %1856 = vmatpush.msra.mxu0 0.0
      %1857 = vmatpush.msra.mxu0 0.0
      %1858 = vmatpush.msra.mxu0 %v1472
      %1859 = vmatpush.msra.mxu0 %v1456
      %1860 = vmatpush.msra.mxu0 %v1440
      %1861 = vmatpush.msra.mxu0 %v1424
      %1862 = vmatpush.msra.mxu0 %v1408
      %1863 = vmatpush.msra.mxu0 %v1392
      %1864 = vmatpush.msra.mxu0 %v1376
      %1865 = vmatpush.msra.mxu0 %v1360
      %1866 = vmatmul.f32.gmra.mxu0 %v1523
      %v1867 = vpop.f32.mrf.mxu0
      %v1868 = vadd.f32 %v1504, %v1867
      %1869 = vmatmul.f32.gmra.mxu0 %v1526
      %v1870 = vpop.f32.mrf.mxu0
      %v1871 = vadd.f32 %v1504, %v1870
      %1872 = vdwg.mxu0
      %1873 = vmatpush.msra.mxu0 0.0
      %1874 = vmatpush.msra.mxu0 0.0
      %1875 = vmatpush.msra.mxu0 0.0
      %1876 = vmatpush.msra.mxu0 0.0
      %1877 = vmatpush.msra.mxu0 0.0
      %1878 = vmatpush.msra.mxu0 0.0
      %1879 = vmatpush.msra.mxu0 0.0
      %1880 = vmatpush.msra.mxu0 0.0
      %1881 = vmatpush.msra.mxu0 %v1473
      %1882 = vmatpush.msra.mxu0 %v1457
      %1883 = vmatpush.msra.mxu0 %v1441
      %1884 = vmatpush.msra.mxu0 %v1425
      %1885 = vmatpush.msra.mxu0 %v1409
      %1886 = vmatpush.msra.mxu0 %v1393
      %1887 = vmatpush.msra.mxu0 %v1377
      %1888 = vmatpush.msra.mxu0 %v1361
      %1889 = vmatmul.f32.gmra.mxu0 %v1523
      %v1890 = vpop.f32.mrf.mxu0
      %v1891 = vadd.f32 %v1505, %v1890
      %1892 = vmatmul.f32.gmra.mxu0 %v1526
      %v1893 = vpop.f32.mrf.mxu0
      %v1894 = vadd.f32 %v1505, %v1893
      %1895 = vdwg.mxu0
      %v1896 = vmax.f32 %v1546, 0.0
      %v1897 = vmax.f32 %v1569, 0.0
      %v1898 = vmax.f32 %v1592, 0.0
      %v1899 = vmax.f32 %v1615, 0.0
      %v1900 = vmax.f32 %v1638, 0.0
      %v1901 = vmax.f32 %v1661, 0.0
      %v1902 = vmax.f32 %v1684, 0.0
      %v1903 = vmax.f32 %v1707, 0.0
      %v1904 = vmax.f32 %v1730, 0.0
      %v1905 = vmax.f32 %v1753, 0.0
      %v1906 = vmax.f32 %v1776, 0.0
      %v1907 = vmax.f32 %v1799, 0.0
      %v1908 = vmax.f32 %v1822, 0.0
      %v1909 = vmax.f32 %v1845, 0.0
      %v1910 = vmax.f32 %v1868, 0.0
      %v1911 = vmax.f32 %v1891, 0.0
      %v1912 = vmax.f32 %v1549, 0.0
      %v1913 = vmax.f32 %v1572, 0.0
      %v1914 = vmax.f32 %v1595, 0.0
      %v1915 = vmax.f32 %v1618, 0.0
      %v1916 = vmax.f32 %v1641, 0.0
      %v1917 = vmax.f32 %v1664, 0.0
      %v1918 = vmax.f32 %v1687, 0.0
      %v1919 = vmax.f32 %v1710, 0.0
      %v1920 = vmax.f32 %v1733, 0.0
      %v1921 = vmax.f32 %v1756, 0.0
      %v1922 = vmax.f32 %v1779, 0.0
      %v1923 = vmax.f32 %v1802, 0.0
      %v1924 = vmax.f32 %v1825, 0.0
      %v1925 = vmax.f32 %v1848, 0.0
      %v1926 = vmax.f32 %v1871, 0.0
      %v1927 = vmax.f32 %v1894, 0.0
      %v1928 = vld [vmem:[%s350] sm:$0xf]
      %v1929 = vld [vmem:[%s350 + $0x4] sm:$0xf]
      %v1930 = vld [vmem:[%s350 + $0x8] sm:$0xf]
      %v1931 = vld [vmem:[%s350 + $0xc] sm:$0xf]
      %v1932 = vld [vmem:[%s350 + $0x10] sm:$0xf]
      %v1933 = vld [vmem:[%s350 + $0x14] sm:$0xf]
      %v1934 = vld [vmem:[%s350 + $0x18] sm:$0xf]
      %v1935 = vld [vmem:[%s350 + $0x1c] sm:$0xf]
      %v1936 = vld [vmem:[%s350 + $0x20] sm:$0xf]
      %v1937 = vld [vmem:[%s350 + $0x24] sm:$0xf]
      %v1938 = vld [vmem:[%s350 + $0x28] sm:$0xf]
      %v1939 = vld [vmem:[%s350 + $0x2c] sm:$0xf]
      %v1940 = vld [vmem:[%s350 + $0x30] sm:$0xf]
      %v1941 = vld [vmem:[%s350 + $0x34] sm:$0xf]
      %v1942 = vld [vmem:[%s350 + $0x38] sm:$0xf]
      %v1943 = vld [vmem:[%s350 + $0x3c] sm:$0xf]
      %v1944 = vld [vmem:[%s350 + $0x40] sm:$0xf]
      %v1945 = vld [vmem:[%s350 + $0x44] sm:$0xf]
      %v1946 = vld [vmem:[%s350 + $0x48] sm:$0xf]
      %v1947 = vld [vmem:[%s350 + $0x4c] sm:$0xf]
      %v1948 = vld [vmem:[%s350 + $0x50] sm:$0xf]
      %v1949 = vld [vmem:[%s350 + $0x54] sm:$0xf]
      %v1950 = vld [vmem:[%s350 + $0x58] sm:$0xf]
      %v1951 = vld [vmem:[%s350 + $0x5c] sm:$0xf]
      %v1952 = vld [vmem:[%s350 + $0x60] sm:$0xf]
      %v1953 = vld [vmem:[%s350 + $0x64] sm:$0xf]
      %v1954 = vld [vmem:[%s350 + $0x68] sm:$0xf]
      %v1955 = vld [vmem:[%s350 + $0x6c] sm:$0xf]
      %v1956 = vld [vmem:[%s350 + $0x70] sm:$0xf]
      %v1957 = vld [vmem:[%s350 + $0x74] sm:$0xf]
      %v1958 = vld [vmem:[%s350 + $0x78] sm:$0xf]
      %v1959 = vld [vmem:[%s350 + $0x7c] sm:$0xf]
      %v1960 = vld [vmem:[%s350 + $0x80] sm:$0xf]
      %v1961 = vld [vmem:[%s350 + $0x84] sm:$0xf]
      %v1962 = vld [vmem:[%s350 + $0x88] sm:$0xf]
      %v1963 = vld [vmem:[%s350 + $0x8c] sm:$0xf]
      %v1964 = vld [vmem:[%s350 + $0x90] sm:$0xf]
      %v1965 = vld [vmem:[%s350 + $0x94] sm:$0xf]
      %v1966 = vld [vmem:[%s350 + $0x98] sm:$0xf]
      %v1967 = vld [vmem:[%s350 + $0x9c] sm:$0xf]
      %v1968 = vld [vmem:[%s350 + $0xa0] sm:$0xf]
      %v1969 = vld [vmem:[%s350 + $0xa4] sm:$0xf]
      %v1970 = vld [vmem:[%s350 + $0xa8] sm:$0xf]
      %v1971 = vld [vmem:[%s350 + $0xac] sm:$0xf]
      %v1972 = vld [vmem:[%s350 + $0xb0] sm:$0xf]
      %v1973 = vld [vmem:[%s350 + $0xb4] sm:$0xf]
      %v1974 = vld [vmem:[%s350 + $0xb8] sm:$0xf]
      %v1975 = vld [vmem:[%s350 + $0xbc] sm:$0xf]
      %v1976 = vld [vmem:[%s350 + $0xc0] sm:$0xf]
      %v1977 = vld [vmem:[%s350 + $0xc4] sm:$0xf]
      %v1978 = vld [vmem:[%s350 + $0xc8] sm:$0xf]
      %v1979 = vld [vmem:[%s350 + $0xcc] sm:$0xf]
      %v1980 = vld [vmem:[%s350 + $0xd0] sm:$0xf]
      %v1981 = vld [vmem:[%s350 + $0xd4] sm:$0xf]
      %v1982 = vld [vmem:[%s350 + $0xd8] sm:$0xf]
      %v1983 = vld [vmem:[%s350 + $0xdc] sm:$0xf]
      %v1984 = vld [vmem:[%s350 + $0xe0] sm:$0xf]
      %v1985 = vld [vmem:[%s350 + $0xe4] sm:$0xf]
      %v1986 = vld [vmem:[%s350 + $0xe8] sm:$0xf]
      %v1987 = vld [vmem:[%s350 + $0xec] sm:$0xf]
      %v1988 = vld [vmem:[%s350 + $0xf0] sm:$0xf]
      %v1989 = vld [vmem:[%s350 + $0xf4] sm:$0xf]
      %v1990 = vld [vmem:[%s350 + $0xf8] sm:$0xf]
      %v1991 = vld [vmem:[%s350 + $0xfc] sm:$0xf]
      %v1992 = vld [vmem:[%s350 + $0x100] sm:$0xf]
      %v1993 = vld [vmem:[%s350 + $0x104] sm:$0xf]
      %v1994 = vld [vmem:[%s350 + $0x108] sm:$0xf]
      %v1995 = vld [vmem:[%s350 + $0x10c] sm:$0xf]
      %v1996 = vld [vmem:[%s350 + $0x110] sm:$0xf]
      %v1997 = vld [vmem:[%s350 + $0x114] sm:$0xf]
      %v1998 = vld [vmem:[%s350 + $0x118] sm:$0xf]
      %v1999 = vld [vmem:[%s350 + $0x11c] sm:$0xf]
      %v2000 = vld [vmem:[%s350 + $0x120] sm:$0xf]
      %v2001 = vld [vmem:[%s350 + $0x124] sm:$0xf]
      %v2002 = vld [vmem:[%s350 + $0x128] sm:$0xf]
      %v2003 = vld [vmem:[%s350 + $0x12c] sm:$0xf]
      %v2004 = vld [vmem:[%s350 + $0x130] sm:$0xf]
      %v2005 = vld [vmem:[%s350 + $0x134] sm:$0xf]
      %v2006 = vld [vmem:[%s350 + $0x138] sm:$0xf]
      %v2007 = vld [vmem:[%s350 + $0x13c] sm:$0xf]
      %v2008 = vld [vmem:[%s350 + $0x140] sm:$0xf]
      %v2009 = vld [vmem:[%s350 + $0x144] sm:$0xf]
      %v2010 = vld [vmem:[%s350 + $0x148] sm:$0xf]
      %v2011 = vld [vmem:[%s350 + $0x14c] sm:$0xf]
      %v2012 = vld [vmem:[%s350 + $0x150] sm:$0xf]
      %v2013 = vld [vmem:[%s350 + $0x154] sm:$0xf]
      %v2014 = vld [vmem:[%s350 + $0x158] sm:$0xf]
      %v2015 = vld [vmem:[%s350 + $0x15c] sm:$0xf]
      %v2016 = vld [vmem:[%s350 + $0x160] sm:$0xf]
      %v2017 = vld [vmem:[%s350 + $0x164] sm:$0xf]
      %v2018 = vld [vmem:[%s350 + $0x168] sm:$0xf]
      %v2019 = vld [vmem:[%s350 + $0x16c] sm:$0xf]
      %v2020 = vld [vmem:[%s350 + $0x170] sm:$0xf]
      %v2021 = vld [vmem:[%s350 + $0x174] sm:$0xf]
      %v2022 = vld [vmem:[%s350 + $0x178] sm:$0xf]
      %v2023 = vld [vmem:[%s350 + $0x17c] sm:$0xf]
      %v2024 = vld [vmem:[%s350 + $0x180] sm:$0xf]
      %v2025 = vld [vmem:[%s350 + $0x184] sm:$0xf]
      %v2026 = vld [vmem:[%s350 + $0x188] sm:$0xf]
      %v2027 = vld [vmem:[%s350 + $0x18c] sm:$0xf]
      %v2028 = vld [vmem:[%s350 + $0x190] sm:$0xf]
      %v2029 = vld [vmem:[%s350 + $0x194] sm:$0xf]
      %v2030 = vld [vmem:[%s350 + $0x198] sm:$0xf]
      %v2031 = vld [vmem:[%s350 + $0x19c] sm:$0xf]
      %v2032 = vld [vmem:[%s350 + $0x1a0] sm:$0xf]
      %v2033 = vld [vmem:[%s350 + $0x1a4] sm:$0xf]
      %v2034 = vld [vmem:[%s350 + $0x1a8] sm:$0xf]
      %v2035 = vld [vmem:[%s350 + $0x1ac] sm:$0xf]
      %v2036 = vld [vmem:[%s350 + $0x1b0] sm:$0xf]
      %v2037 = vld [vmem:[%s350 + $0x1b4] sm:$0xf]
      %v2038 = vld [vmem:[%s350 + $0x1b8] sm:$0xf]
      %v2039 = vld [vmem:[%s350 + $0x1bc] sm:$0xf]
      %v2040 = vld [vmem:[%s350 + $0x1c0] sm:$0xf]
      %v2041 = vld [vmem:[%s350 + $0x1c4] sm:$0xf]
      %v2042 = vld [vmem:[%s350 + $0x1c8] sm:$0xf]
      %v2043 = vld [vmem:[%s350 + $0x1cc] sm:$0xf]
      %v2044 = vld [vmem:[%s350 + $0x1d0] sm:$0xf]
      %v2045 = vld [vmem:[%s350 + $0x1d4] sm:$0xf]
      %v2046 = vld [vmem:[%s350 + $0x1d8] sm:$0xf]
      %v2047 = vld [vmem:[%s350 + $0x1dc] sm:$0xf]
      %v2048 = vld [vmem:[%s350 + $0x1e0] sm:$0xf]
      %v2049 = vld [vmem:[%s350 + $0x1e4] sm:$0xf]
      %v2050 = vld [vmem:[%s350 + $0x1e8] sm:$0xf]
      %v2051 = vld [vmem:[%s350 + $0x1ec] sm:$0xf]
      %v2052 = vld [vmem:[%s350 + $0x1f0] sm:$0xf]
      %v2053 = vld [vmem:[%s350 + $0x1f4] sm:$0xf]
      %v2054 = vld [vmem:[%s350 + $0x1f8] sm:$0xf]
      %v2055 = vld [vmem:[%s350 + $0x1fc] sm:$0xf]
      %v2056 = vld [vmem:[%s350 + $0x200] sm:$0xf]
      %v2057 = vld [vmem:[%s350 + $0x204] sm:$0xf]
      %v2058 = vld [vmem:[%s350 + $0x208] sm:$0xf]
      %v2059 = vld [vmem:[%s350 + $0x20c] sm:$0xf]
      %v2060 = vld [vmem:[%s350 + $0x210] sm:$0xf]
      %v2061 = vld [vmem:[%s350 + $0x214] sm:$0xf]
      %v2062 = vld [vmem:[%s350 + $0x218] sm:$0xf]
      %v2063 = vld [vmem:[%s350 + $0x21c] sm:$0xf]
      %v2064 = vld [vmem:[%s350 + $0x220] sm:$0xf]
      %v2065 = vld [vmem:[%s350 + $0x224] sm:$0xf]
      %v2066 = vld [vmem:[%s350 + $0x228] sm:$0xf]
      %v2067 = vld [vmem:[%s350 + $0x22c] sm:$0xf]
      %v2068 = vld [vmem:[%s350 + $0x230] sm:$0xf]
      %v2069 = vld [vmem:[%s350 + $0x234] sm:$0xf]
      %v2070 = vld [vmem:[%s350 + $0x238] sm:$0xf]
      %v2071 = vld [vmem:[%s350 + $0x23c] sm:$0xf]
      %v2072 = vld [vmem:[%s350 + $0x240] sm:$0xf]
      %v2073 = vld [vmem:[%s350 + $0x244] sm:$0xf]
      %v2074 = vld [vmem:[%s350 + $0x248] sm:$0xf]
      %v2075 = vld [vmem:[%s350 + $0x24c] sm:$0xf]
      %v2076 = vld [vmem:[%s350 + $0x250] sm:$0xf]
      %v2077 = vld [vmem:[%s350 + $0x254] sm:$0xf]
      %v2078 = vld [vmem:[%s350 + $0x258] sm:$0xf]
      %v2079 = vld [vmem:[%s350 + $0x25c] sm:$0xf]
      %v2080 = vld [vmem:[%s350 + $0x260] sm:$0xf]
      %v2081 = vld [vmem:[%s350 + $0x264] sm:$0xf]
      %v2082 = vld [vmem:[%s350 + $0x268] sm:$0xf]
      %v2083 = vld [vmem:[%s350 + $0x26c] sm:$0xf]
      %v2084 = vld [vmem:[%s350 + $0x270] sm:$0xf]
      %v2085 = vld [vmem:[%s350 + $0x274] sm:$0xf]
      %v2086 = vld [vmem:[%s350 + $0x278] sm:$0xf]
      %v2087 = vld [vmem:[%s350 + $0x27c] sm:$0xf]
      %v2088 = vld [vmem:[%s350 + $0x280] sm:$0xf]
      %v2089 = vld [vmem:[%s350 + $0x284] sm:$0xf]
      %v2090 = vld [vmem:[%s350 + $0x288] sm:$0xf]
      %v2091 = vld [vmem:[%s350 + $0x28c] sm:$0xf]
      %v2092 = vld [vmem:[%s350 + $0x290] sm:$0xf]
      %v2093 = vld [vmem:[%s350 + $0x294] sm:$0xf]
      %v2094 = vld [vmem:[%s350 + $0x298] sm:$0xf]
      %v2095 = vld [vmem:[%s350 + $0x29c] sm:$0xf]
      %v2096 = vld [vmem:[%s350 + $0x2a0] sm:$0xf]
      %v2097 = vld [vmem:[%s350 + $0x2a4] sm:$0xf]
      %v2098 = vld [vmem:[%s350 + $0x2a8] sm:$0xf]
      %v2099 = vld [vmem:[%s350 + $0x2ac] sm:$0xf]
      %v2100 = vld [vmem:[%s350 + $0x2b0] sm:$0xf]
      %v2101 = vld [vmem:[%s350 + $0x2b4] sm:$0xf]
      %v2102 = vld [vmem:[%s350 + $0x2b8] sm:$0xf]
      %v2103 = vld [vmem:[%s350 + $0x2bc] sm:$0xf]
      %v2104 = vld [vmem:[%s350 + $0x2c0] sm:$0xf]
      %v2105 = vld [vmem:[%s350 + $0x2c4] sm:$0xf]
      %v2106 = vld [vmem:[%s350 + $0x2c8] sm:$0xf]
      %v2107 = vld [vmem:[%s350 + $0x2cc] sm:$0xf]
      %v2108 = vld [vmem:[%s350 + $0x2d0] sm:$0xf]
      %v2109 = vld [vmem:[%s350 + $0x2d4] sm:$0xf]
      %v2110 = vld [vmem:[%s350 + $0x2d8] sm:$0xf]
      %v2111 = vld [vmem:[%s350 + $0x2dc] sm:$0xf]
      %v2112 = vld [vmem:[%s350 + $0x2e0] sm:$0xf]
      %v2113 = vld [vmem:[%s350 + $0x2e4] sm:$0xf]
      %v2114 = vld [vmem:[%s350 + $0x2e8] sm:$0xf]
      %v2115 = vld [vmem:[%s350 + $0x2ec] sm:$0xf]
      %v2116 = vld [vmem:[%s350 + $0x2f0] sm:$0xf]
      %v2117 = vld [vmem:[%s350 + $0x2f4] sm:$0xf]
      %v2118 = vld [vmem:[%s350 + $0x2f8] sm:$0xf]
      %v2119 = vld [vmem:[%s350 + $0x2fc] sm:$0xf]
      %v2120 = vld [vmem:[%s350 + $0x300] sm:$0xf]
      %v2121 = vld [vmem:[%s350 + $0x304] sm:$0xf]
      %v2122 = vld [vmem:[%s350 + $0x308] sm:$0xf]
      %v2123 = vld [vmem:[%s350 + $0x30c] sm:$0xf]
      %v2124 = vld [vmem:[%s350 + $0x310] sm:$0xf]
      %v2125 = vld [vmem:[%s350 + $0x314] sm:$0xf]
      %v2126 = vld [vmem:[%s350 + $0x318] sm:$0xf]
      %v2127 = vld [vmem:[%s350 + $0x31c] sm:$0xf]
      %v2128 = vld [vmem:[%s350 + $0x320] sm:$0xf]
      %v2129 = vld [vmem:[%s350 + $0x324] sm:$0xf]
      %v2130 = vld [vmem:[%s350 + $0x328] sm:$0xf]
      %v2131 = vld [vmem:[%s350 + $0x32c] sm:$0xf]
      %v2132 = vld [vmem:[%s350 + $0x330] sm:$0xf]
      %v2133 = vld [vmem:[%s350 + $0x334] sm:$0xf]
      %v2134 = vld [vmem:[%s350 + $0x338] sm:$0xf]
      %v2135 = vld [vmem:[%s350 + $0x33c] sm:$0xf]
      %v2136 = vld [vmem:[%s350 + $0x340] sm:$0xf]
      %v2137 = vld [vmem:[%s350 + $0x344] sm:$0xf]
      %v2138 = vld [vmem:[%s350 + $0x348] sm:$0xf]
      %v2139 = vld [vmem:[%s350 + $0x34c] sm:$0xf]
      %v2140 = vld [vmem:[%s350 + $0x350] sm:$0xf]
      %v2141 = vld [vmem:[%s350 + $0x354] sm:$0xf]
      %v2142 = vld [vmem:[%s350 + $0x358] sm:$0xf]
      %v2143 = vld [vmem:[%s350 + $0x35c] sm:$0xf]
      %v2144 = vld [vmem:[%s350 + $0x360] sm:$0xf]
      %v2145 = vld [vmem:[%s350 + $0x364] sm:$0xf]
      %v2146 = vld [vmem:[%s350 + $0x368] sm:$0xf]
      %v2147 = vld [vmem:[%s350 + $0x36c] sm:$0xf]
      %v2148 = vld [vmem:[%s350 + $0x370] sm:$0xf]
      %v2149 = vld [vmem:[%s350 + $0x374] sm:$0xf]
      %v2150 = vld [vmem:[%s350 + $0x378] sm:$0xf]
      %v2151 = vld [vmem:[%s350 + $0x37c] sm:$0xf]
      %v2152 = vld [vmem:[%s350 + $0x380] sm:$0xf]
      %v2153 = vld [vmem:[%s350 + $0x384] sm:$0xf]
      %v2154 = vld [vmem:[%s350 + $0x388] sm:$0xf]
      %v2155 = vld [vmem:[%s350 + $0x38c] sm:$0xf]
      %v2156 = vld [vmem:[%s350 + $0x390] sm:$0xf]
      %v2157 = vld [vmem:[%s350 + $0x394] sm:$0xf]
      %v2158 = vld [vmem:[%s350 + $0x398] sm:$0xf]
      %v2159 = vld [vmem:[%s350 + $0x39c] sm:$0xf]
      %v2160 = vld [vmem:[%s350 + $0x3a0] sm:$0xf]
      %v2161 = vld [vmem:[%s350 + $0x3a4] sm:$0xf]
      %v2162 = vld [vmem:[%s350 + $0x3a8] sm:$0xf]
      %v2163 = vld [vmem:[%s350 + $0x3ac] sm:$0xf]
      %v2164 = vld [vmem:[%s350 + $0x3b0] sm:$0xf]
      %v2165 = vld [vmem:[%s350 + $0x3b4] sm:$0xf]
      %v2166 = vld [vmem:[%s350 + $0x3b8] sm:$0xf]
      %v2167 = vld [vmem:[%s350 + $0x3bc] sm:$0xf]
      %v2168 = vld [vmem:[%s350 + $0x3c0] sm:$0xf]
      %v2169 = vld [vmem:[%s350 + $0x3c4] sm:$0xf]
      %v2170 = vld [vmem:[%s350 + $0x3c8] sm:$0xf]
      %v2171 = vld [vmem:[%s350 + $0x3cc] sm:$0xf]
      %v2172 = vld [vmem:[%s350 + $0x3d0] sm:$0xf]
      %v2173 = vld [vmem:[%s350 + $0x3d4] sm:$0xf]
      %v2174 = vld [vmem:[%s350 + $0x3d8] sm:$0xf]
      %v2175 = vld [vmem:[%s350 + $0x3dc] sm:$0xf]
      %v2176 = vld [vmem:[%s350 + $0x3e0] sm:$0xf]
      %v2177 = vld [vmem:[%s350 + $0x3e4] sm:$0xf]
      %v2178 = vld [vmem:[%s350 + $0x3e8] sm:$0xf]
      %v2179 = vld [vmem:[%s350 + $0x3ec] sm:$0xf]
      %v2180 = vld [vmem:[%s350 + $0x3f0] sm:$0xf]
      %v2181 = vld [vmem:[%s350 + $0x3f4] sm:$0xf]
      %v2182 = vld [vmem:[%s350 + $0x3f8] sm:$0xf]
      %v2183 = vld [vmem:[%s350 + $0x3fc] sm:$0xf]
      %v2184 = vunpack.c.l.bf16 %v1928
      %v2185 = vunpack.c.l.bf16 %v1929
      %v2186 = vunpack.c.l.bf16 %v1930
      %v2187 = vunpack.c.l.bf16 %v1931
      %v2188 = vunpack.c.l.bf16 %v1932
      %v2189 = vunpack.c.l.bf16 %v1933
      %v2190 = vunpack.c.l.bf16 %v1934
      %v2191 = vunpack.c.l.bf16 %v1935
      %v2192 = vunpack.c.l.bf16 %v1936
      %v2193 = vunpack.c.l.bf16 %v1937
      %v2194 = vunpack.c.l.bf16 %v1938
      %v2195 = vunpack.c.l.bf16 %v1939
      %v2196 = vunpack.c.l.bf16 %v1940
      %v2197 = vunpack.c.l.bf16 %v1941
      %v2198 = vunpack.c.l.bf16 %v1942
      %v2199 = vunpack.c.l.bf16 %v1943
      %v2200 = vunpack.c.l.bf16 %v1944
      %v2201 = vunpack.c.l.bf16 %v1945
      %v2202 = vunpack.c.l.bf16 %v1946
      %v2203 = vunpack.c.l.bf16 %v1947
      %v2204 = vunpack.c.l.bf16 %v1948
      %v2205 = vunpack.c.l.bf16 %v1949
      %v2206 = vunpack.c.l.bf16 %v1950
      %v2207 = vunpack.c.l.bf16 %v1951
      %v2208 = vunpack.c.l.bf16 %v1952
      %v2209 = vunpack.c.l.bf16 %v1953
      %v2210 = vunpack.c.l.bf16 %v1954
      %v2211 = vunpack.c.l.bf16 %v1955
      %v2212 = vunpack.c.l.bf16 %v1956
      %v2213 = vunpack.c.l.bf16 %v1957
      %v2214 = vunpack.c.l.bf16 %v1958
      %v2215 = vunpack.c.l.bf16 %v1959
      %v2216 = vunpack.c.l.bf16 %v1960
      %v2217 = vunpack.c.l.bf16 %v1961
      %v2218 = vunpack.c.l.bf16 %v1962
      %v2219 = vunpack.c.l.bf16 %v1963
      %v2220 = vunpack.c.l.bf16 %v1964
      %v2221 = vunpack.c.l.bf16 %v1965
      %v2222 = vunpack.c.l.bf16 %v1966
      %v2223 = vunpack.c.l.bf16 %v1967
      %v2224 = vunpack.c.l.bf16 %v1968
      %v2225 = vunpack.c.l.bf16 %v1969
      %v2226 = vunpack.c.l.bf16 %v1970
      %v2227 = vunpack.c.l.bf16 %v1971
      %v2228 = vunpack.c.l.bf16 %v1972
      %v2229 = vunpack.c.l.bf16 %v1973
      %v2230 = vunpack.c.l.bf16 %v1974
      %v2231 = vunpack.c.l.bf16 %v1975
      %v2232 = vunpack.c.l.bf16 %v1976
      %v2233 = vunpack.c.l.bf16 %v1977
      %v2234 = vunpack.c.l.bf16 %v1978
      %v2235 = vunpack.c.l.bf16 %v1979
      %v2236 = vunpack.c.l.bf16 %v1980
      %v2237 = vunpack.c.l.bf16 %v1981
      %v2238 = vunpack.c.l.bf16 %v1982
      %v2239 = vunpack.c.l.bf16 %v1983
      %v2240 = vunpack.c.l.bf16 %v1984
      %v2241 = vunpack.c.l.bf16 %v1985
      %v2242 = vunpack.c.l.bf16 %v1986
      %v2243 = vunpack.c.l.bf16 %v1987
      %v2244 = vunpack.c.l.bf16 %v1988
      %v2245 = vunpack.c.l.bf16 %v1989
      %v2246 = vunpack.c.l.bf16 %v1990
      %v2247 = vunpack.c.l.bf16 %v1991
      %v2248 = vunpack.c.l.bf16 %v1992
      %v2249 = vunpack.c.l.bf16 %v1993
      %v2250 = vunpack.c.l.bf16 %v1994
      %v2251 = vunpack.c.l.bf16 %v1995
      %v2252 = vunpack.c.l.bf16 %v1996
      %v2253 = vunpack.c.l.bf16 %v1997
      %v2254 = vunpack.c.l.bf16 %v1998
      %v2255 = vunpack.c.l.bf16 %v1999
      %v2256 = vunpack.c.l.bf16 %v2000
      %v2257 = vunpack.c.l.bf16 %v2001
      %v2258 = vunpack.c.l.bf16 %v2002
      %v2259 = vunpack.c.l.bf16 %v2003
      %v2260 = vunpack.c.l.bf16 %v2004
      %v2261 = vunpack.c.l.bf16 %v2005
      %v2262 = vunpack.c.l.bf16 %v2006
      %v2263 = vunpack.c.l.bf16 %v2007
      %v2264 = vunpack.c.l.bf16 %v2008
      %v2265 = vunpack.c.l.bf16 %v2009
      %v2266 = vunpack.c.l.bf16 %v2010
      %v2267 = vunpack.c.l.bf16 %v2011
      %v2268 = vunpack.c.l.bf16 %v2012
      %v2269 = vunpack.c.l.bf16 %v2013
      %v2270 = vunpack.c.l.bf16 %v2014
      %v2271 = vunpack.c.l.bf16 %v2015
      %v2272 = vunpack.c.l.bf16 %v2016
      %v2273 = vunpack.c.l.bf16 %v2017
      %v2274 = vunpack.c.l.bf16 %v2018
      %v2275 = vunpack.c.l.bf16 %v2019
      %v2276 = vunpack.c.l.bf16 %v2020
      %v2277 = vunpack.c.l.bf16 %v2021
      %v2278 = vunpack.c.l.bf16 %v2022
      %v2279 = vunpack.c.l.bf16 %v2023
      %v2280 = vunpack.c.l.bf16 %v2024
      %v2281 = vunpack.c.l.bf16 %v2025
      %v2282 = vunpack.c.l.bf16 %v2026
      %v2283 = vunpack.c.l.bf16 %v2027
      %v2284 = vunpack.c.l.bf16 %v2028
      %v2285 = vunpack.c.l.bf16 %v2029
      %v2286 = vunpack.c.l.bf16 %v2030
      %v2287 = vunpack.c.l.bf16 %v2031
      %v2288 = vunpack.c.l.bf16 %v2032
      %v2289 = vunpack.c.l.bf16 %v2033
      %v2290 = vunpack.c.l.bf16 %v2034
      %v2291 = vunpack.c.l.bf16 %v2035
      %v2292 = vunpack.c.l.bf16 %v2036
      %v2293 = vunpack.c.l.bf16 %v2037
      %v2294 = vunpack.c.l.bf16 %v2038
      %v2295 = vunpack.c.l.bf16 %v2039
      %v2296 = vunpack.c.l.bf16 %v2040
      %v2297 = vunpack.c.l.bf16 %v2041
      %v2298 = vunpack.c.l.bf16 %v2042
      %v2299 = vunpack.c.l.bf16 %v2043
      %v2300 = vunpack.c.l.bf16 %v2044
      %v2301 = vunpack.c.l.bf16 %v2045
      %v2302 = vunpack.c.l.bf16 %v2046
      %v2303 = vunpack.c.l.bf16 %v2047
      %v2304 = vunpack.c.l.bf16 %v2048
      %v2305 = vunpack.c.l.bf16 %v2049
      %v2306 = vunpack.c.l.bf16 %v2050
      %v2307 = vunpack.c.l.bf16 %v2051
      %v2308 = vunpack.c.l.bf16 %v2052
      %v2309 = vunpack.c.l.bf16 %v2053
      %v2310 = vunpack.c.l.bf16 %v2054
      %v2311 = vunpack.c.l.bf16 %v2055
      %v2312 = vunpack.c.l.bf16 %v2056
      %v2313 = vunpack.c.l.bf16 %v2057
      %v2314 = vunpack.c.l.bf16 %v2058
      %v2315 = vunpack.c.l.bf16 %v2059
      %v2316 = vunpack.c.l.bf16 %v2060
      %v2317 = vunpack.c.l.bf16 %v2061
      %v2318 = vunpack.c.l.bf16 %v2062
      %v2319 = vunpack.c.l.bf16 %v2063
      %v2320 = vunpack.c.l.bf16 %v2064
      %v2321 = vunpack.c.l.bf16 %v2065
      %v2322 = vunpack.c.l.bf16 %v2066
      %v2323 = vunpack.c.l.bf16 %v2067
      %v2324 = vunpack.c.l.bf16 %v2068
      %v2325 = vunpack.c.l.bf16 %v2069
      %v2326 = vunpack.c.l.bf16 %v2070
      %v2327 = vunpack.c.l.bf16 %v2071
      %v2328 = vunpack.c.l.bf16 %v2072
      %v2329 = vunpack.c.l.bf16 %v2073
      %v2330 = vunpack.c.l.bf16 %v2074
      %v2331 = vunpack.c.l.bf16 %v2075
      %v2332 = vunpack.c.l.bf16 %v2076
      %v2333 = vunpack.c.l.bf16 %v2077
      %v2334 = vunpack.c.l.bf16 %v2078
      %v2335 = vunpack.c.l.bf16 %v2079
      %v2336 = vunpack.c.l.bf16 %v2080
      %v2337 = vunpack.c.l.bf16 %v2081
      %v2338 = vunpack.c.l.bf16 %v2082
      %v2339 = vunpack.c.l.bf16 %v2083
      %v2340 = vunpack.c.l.bf16 %v2084
      %v2341 = vunpack.c.l.bf16 %v2085
      %v2342 = vunpack.c.l.bf16 %v2086
      %v2343 = vunpack.c.l.bf16 %v2087
      %v2344 = vunpack.c.l.bf16 %v2088
      %v2345 = vunpack.c.l.bf16 %v2089
      %v2346 = vunpack.c.l.bf16 %v2090
      %v2347 = vunpack.c.l.bf16 %v2091
      %v2348 = vunpack.c.l.bf16 %v2092
      %v2349 = vunpack.c.l.bf16 %v2093
      %v2350 = vunpack.c.l.bf16 %v2094
      %v2351 = vunpack.c.l.bf16 %v2095
      %v2352 = vunpack.c.l.bf16 %v2096
      %v2353 = vunpack.c.l.bf16 %v2097
      %v2354 = vunpack.c.l.bf16 %v2098
      %v2355 = vunpack.c.l.bf16 %v2099
      %v2356 = vunpack.c.l.bf16 %v2100
      %v2357 = vunpack.c.l.bf16 %v2101
      %v2358 = vunpack.c.l.bf16 %v2102
      %v2359 = vunpack.c.l.bf16 %v2103
      %v2360 = vunpack.c.l.bf16 %v2104
      %v2361 = vunpack.c.l.bf16 %v2105
      %v2362 = vunpack.c.l.bf16 %v2106
      %v2363 = vunpack.c.l.bf16 %v2107
      %v2364 = vunpack.c.l.bf16 %v2108
      %v2365 = vunpack.c.l.bf16 %v2109
      %v2366 = vunpack.c.l.bf16 %v2110
      %v2367 = vunpack.c.l.bf16 %v2111
      %v2368 = vunpack.c.l.bf16 %v2112
      %v2369 = vunpack.c.l.bf16 %v2113
      %v2370 = vunpack.c.l.bf16 %v2114
      %v2371 = vunpack.c.l.bf16 %v2115
      %v2372 = vunpack.c.l.bf16 %v2116
      %v2373 = vunpack.c.l.bf16 %v2117
      %v2374 = vunpack.c.l.bf16 %v2118
      %v2375 = vunpack.c.l.bf16 %v2119
      %v2376 = vunpack.c.l.bf16 %v2120
      %v2377 = vunpack.c.l.bf16 %v2121
      %v2378 = vunpack.c.l.bf16 %v2122
      %v2379 = vunpack.c.l.bf16 %v2123
      %v2380 = vunpack.c.l.bf16 %v2124
      %v2381 = vunpack.c.l.bf16 %v2125
      %v2382 = vunpack.c.l.bf16 %v2126
      %v2383 = vunpack.c.l.bf16 %v2127
      %v2384 = vunpack.c.l.bf16 %v2128
      %v2385 = vunpack.c.l.bf16 %v2129
      %v2386 = vunpack.c.l.bf16 %v2130
      %v2387 = vunpack.c.l.bf16 %v2131
      %v2388 = vunpack.c.l.bf16 %v2132
      %v2389 = vunpack.c.l.bf16 %v2133
      %v2390 = vunpack.c.l.bf16 %v2134
      %v2391 = vunpack.c.l.bf16 %v2135
      %v2392 = vunpack.c.l.bf16 %v2136
      %v2393 = vunpack.c.l.bf16 %v2137
      %v2394 = vunpack.c.l.bf16 %v2138
      %v2395 = vunpack.c.l.bf16 %v2139
      %v2396 = vunpack.c.l.bf16 %v2140
      %v2397 = vunpack.c.l.bf16 %v2141
      %v2398 = vunpack.c.l.bf16 %v2142
      %v2399 = vunpack.c.l.bf16 %v2143
      %v2400 = vunpack.c.l.bf16 %v2144
      %v2401 = vunpack.c.l.bf16 %v2145
      %v2402 = vunpack.c.l.bf16 %v2146
      %v2403 = vunpack.c.l.bf16 %v2147
      %v2404 = vunpack.c.l.bf16 %v2148
      %v2405 = vunpack.c.l.bf16 %v2149
      %v2406 = vunpack.c.l.bf16 %v2150
      %v2407 = vunpack.c.l.bf16 %v2151
      %v2408 = vunpack.c.l.bf16 %v2152
      %v2409 = vunpack.c.l.bf16 %v2153
      %v2410 = vunpack.c.l.bf16 %v2154
      %v2411 = vunpack.c.l.bf16 %v2155
      %v2412 = vunpack.c.l.bf16 %v2156
      %v2413 = vunpack.c.l.bf16 %v2157
      %v2414 = vunpack.c.l.bf16 %v2158
      %v2415 = vunpack.c.l.bf16 %v2159
      %v2416 = vunpack.c.l.bf16 %v2160
      %v2417 = vunpack.c.l.bf16 %v2161
      %v2418 = vunpack.c.l.bf16 %v2162
      %v2419 = vunpack.c.l.bf16 %v2163
      %v2420 = vunpack.c.l.bf16 %v2164
      %v2421 = vunpack.c.l.bf16 %v2165
      %v2422 = vunpack.c.l.bf16 %v2166
      %v2423 = vunpack.c.l.bf16 %v2167
      %v2424 = vunpack.c.l.bf16 %v2168
      %v2425 = vunpack.c.l.bf16 %v2169
      %v2426 = vunpack.c.l.bf16 %v2170
      %v2427 = vunpack.c.l.bf16 %v2171
      %v2428 = vunpack.c.l.bf16 %v2172
      %v2429 = vunpack.c.l.bf16 %v2173
      %v2430 = vunpack.c.l.bf16 %v2174
      %v2431 = vunpack.c.l.bf16 %v2175
      %v2432 = vunpack.c.l.bf16 %v2176
      %v2433 = vunpack.c.l.bf16 %v2177
      %v2434 = vunpack.c.l.bf16 %v2178
      %v2435 = vunpack.c.l.bf16 %v2179
      %v2436 = vunpack.c.l.bf16 %v2180
      %v2437 = vunpack.c.l.bf16 %v2181
      %v2438 = vunpack.c.l.bf16 %v2182
      %v2439 = vunpack.c.l.bf16 %v2183
      %v2440 = vperm.slane %v1219, 3
      %2441 = vmatpush.msra.mxu0 %v2199
      %2442 = vmatpush.msra.mxu0 %v2198
      %2443 = vmatpush.msra.mxu0 %v2197
      %2444 = vmatpush.msra.mxu0 %v2196
      %2445 = vmatpush.msra.mxu0 %v2195
      %2446 = vmatpush.msra.mxu0 %v2194
      %2447 = vmatpush.msra.mxu0 %v2193
      %2448 = vmatpush.msra.mxu0 %v2192
      %2449 = vmatpush.msra.mxu0 %v2191
      %2450 = vmatpush.msra.mxu0 %v2190
      %2451 = vmatpush.msra.mxu0 %v2189
      %2452 = vmatpush.msra.mxu0 %v2188
      %2453 = vmatpush.msra.mxu0 %v2187
      %2454 = vmatpush.msra.mxu0 %v2186
      %2455 = vmatpush.msra.mxu0 %v2185
      %2456 = vmatpush.msra.mxu0 %v2184
      %2457 = vmatmul.f32.gmra.mxu0 %v1896
      %v2458 = vpop.f32.mrf.mxu0
      %v2459 = vadd.f32 %v2440, %v2458
      %2460 = vmatmul.f32.gmra.mxu0 %v1912
      %v2461 = vpop.f32.mrf.mxu0
      %v2462 = vadd.f32 %v2440, %v2461
      %2463 = vdwg.mxu0
      %2464 = vmatpush.msra.mxu0 %v2215
      %2465 = vmatpush.msra.mxu0 %v2214
      %2466 = vmatpush.msra.mxu0 %v2213
      %2467 = vmatpush.msra.mxu0 %v2212
      %2468 = vmatpush.msra.mxu0 %v2211
      %2469 = vmatpush.msra.mxu0 %v2210
      %2470 = vmatpush.msra.mxu0 %v2209
      %2471 = vmatpush.msra.mxu0 %v2208
      %2472 = vmatpush.msra.mxu0 %v2207
      %2473 = vmatpush.msra.mxu0 %v2206
      %2474 = vmatpush.msra.mxu0 %v2205
      %2475 = vmatpush.msra.mxu0 %v2204
      %2476 = vmatpush.msra.mxu0 %v2203
      %2477 = vmatpush.msra.mxu0 %v2202
      %2478 = vmatpush.msra.mxu0 %v2201
      %2479 = vmatpush.msra.mxu0 %v2200
      %2480 = vmatmul.f32.gmra.mxu0 %v1897
      %v2481 = vpop.f32.mrf.mxu0
      %v2482 = vadd.f32 %v2459, %v2481
      %2483 = vmatmul.f32.gmra.mxu0 %v1913
      %v2484 = vpop.f32.mrf.mxu0
      %v2485 = vadd.f32 %v2462, %v2484
      %2486 = vdwg.mxu0
      %2487 = vmatpush.msra.mxu0 %v2231
      %2488 = vmatpush.msra.mxu0 %v2230
      %2489 = vmatpush.msra.mxu0 %v2229
      %2490 = vmatpush.msra.mxu0 %v2228
      %2491 = vmatpush.msra.mxu0 %v2227
      %2492 = vmatpush.msra.mxu0 %v2226
      %2493 = vmatpush.msra.mxu0 %v2225
      %2494 = vmatpush.msra.mxu0 %v2224
      %2495 = vmatpush.msra.mxu0 %v2223
      %2496 = vmatpush.msra.mxu0 %v2222
      %2497 = vmatpush.msra.mxu0 %v2221
      %2498 = vmatpush.msra.mxu0 %v2220
      %2499 = vmatpush.msra.mxu0 %v2219
      %2500 = vmatpush.msra.mxu0 %v2218
      %2501 = vmatpush.msra.mxu0 %v2217
      %2502 = vmatpush.msra.mxu0 %v2216
      %2503 = vmatmul.f32.gmra.mxu0 %v1898
      %v2504 = vpop.f32.mrf.mxu0
      %v2505 = vadd.f32 %v2482, %v2504
      %2506 = vmatmul.f32.gmra.mxu0 %v1914
      %v2507 = vpop.f32.mrf.mxu0
      %v2508 = vadd.f32 %v2485, %v2507
      %2509 = vdwg.mxu0
      %2510 = vmatpush.msra.mxu0 %v2247
      %2511 = vmatpush.msra.mxu0 %v2246
      %2512 = vmatpush.msra.mxu0 %v2245
      %2513 = vmatpush.msra.mxu0 %v2244
      %2514 = vmatpush.msra.mxu0 %v2243
      %2515 = vmatpush.msra.mxu0 %v2242
      %2516 = vmatpush.msra.mxu0 %v2241
      %2517 = vmatpush.msra.mxu0 %v2240
      %2518 = vmatpush.msra.mxu0 %v2239
      %2519 = vmatpush.msra.mxu0 %v2238
      %2520 = vmatpush.msra.mxu0 %v2237
      %2521 = vmatpush.msra.mxu0 %v2236
      %2522 = vmatpush.msra.mxu0 %v2235
      %2523 = vmatpush.msra.mxu0 %v2234
      %2524 = vmatpush.msra.mxu0 %v2233
      %2525 = vmatpush.msra.mxu0 %v2232
      %2526 = vmatmul.f32.gmra.mxu0 %v1899
      %v2527 = vpop.f32.mrf.mxu0
      %v2528 = vadd.f32 %v2505, %v2527
      %2529 = vmatmul.f32.gmra.mxu0 %v1915
      %v2530 = vpop.f32.mrf.mxu0
      %v2531 = vadd.f32 %v2508, %v2530
      %2532 = vdwg.mxu0
      %2533 = vmatpush.msra.mxu0 %v2263
      %2534 = vmatpush.msra.mxu0 %v2262
      %2535 = vmatpush.msra.mxu0 %v2261
      %2536 = vmatpush.msra.mxu0 %v2260
      %2537 = vmatpush.msra.mxu0 %v2259
      %2538 = vmatpush.msra.mxu0 %v2258
      %2539 = vmatpush.msra.mxu0 %v2257
      %2540 = vmatpush.msra.mxu0 %v2256
      %2541 = vmatpush.msra.mxu0 %v2255
      %2542 = vmatpush.msra.mxu0 %v2254
      %2543 = vmatpush.msra.mxu0 %v2253
      %2544 = vmatpush.msra.mxu0 %v2252
      %2545 = vmatpush.msra.mxu0 %v2251
      %2546 = vmatpush.msra.mxu0 %v2250
      %2547 = vmatpush.msra.mxu0 %v2249
      %2548 = vmatpush.msra.mxu0 %v2248
      %2549 = vmatmul.f32.gmra.mxu0 %v1900
      %v2550 = vpop.f32.mrf.mxu0
      %v2551 = vadd.f32 %v2528, %v2550
      %2552 = vmatmul.f32.gmra.mxu0 %v1916
      %v2553 = vpop.f32.mrf.mxu0
      %v2554 = vadd.f32 %v2531, %v2553
      %2555 = vdwg.mxu0
      %2556 = vmatpush.msra.mxu0 %v2279
      %2557 = vmatpush.msra.mxu0 %v2278
      %2558 = vmatpush.msra.mxu0 %v2277
      %2559 = vmatpush.msra.mxu0 %v2276
      %2560 = vmatpush.msra.mxu0 %v2275
      %2561 = vmatpush.msra.mxu0 %v2274
      %2562 = vmatpush.msra.mxu0 %v2273
      %2563 = vmatpush.msra.mxu0 %v2272
      %2564 = vmatpush.msra.mxu0 %v2271
      %2565 = vmatpush.msra.mxu0 %v2270
      %2566 = vmatpush.msra.mxu0 %v2269
      %2567 = vmatpush.msra.mxu0 %v2268
      %2568 = vmatpush.msra.mxu0 %v2267
      %2569 = vmatpush.msra.mxu0 %v2266
      %2570 = vmatpush.msra.mxu0 %v2265
      %2571 = vmatpush.msra.mxu0 %v2264
      %2572 = vmatmul.f32.gmra.mxu0 %v1901
      %v2573 = vpop.f32.mrf.mxu0
      %v2574 = vadd.f32 %v2551, %v2573
      %2575 = vmatmul.f32.gmra.mxu0 %v1917
      %v2576 = vpop.f32.mrf.mxu0
      %v2577 = vadd.f32 %v2554, %v2576
      %2578 = vdwg.mxu0
      %2579 = vmatpush.msra.mxu0 %v2295
      %2580 = vmatpush.msra.mxu0 %v2294
      %2581 = vmatpush.msra.mxu0 %v2293
      %2582 = vmatpush.msra.mxu0 %v2292
      %2583 = vmatpush.msra.mxu0 %v2291
      %2584 = vmatpush.msra.mxu0 %v2290
      %2585 = vmatpush.msra.mxu0 %v2289
      %2586 = vmatpush.msra.mxu0 %v2288
      %2587 = vmatpush.msra.mxu0 %v2287
      %2588 = vmatpush.msra.mxu0 %v2286
      %2589 = vmatpush.msra.mxu0 %v2285
      %2590 = vmatpush.msra.mxu0 %v2284
      %2591 = vmatpush.msra.mxu0 %v2283
      %2592 = vmatpush.msra.mxu0 %v2282
      %2593 = vmatpush.msra.mxu0 %v2281
      %2594 = vmatpush.msra.mxu0 %v2280
      %2595 = vmatmul.f32.gmra.mxu0 %v1902
      %v2596 = vpop.f32.mrf.mxu0
      %v2597 = vadd.f32 %v2574, %v2596
      %2598 = vmatmul.f32.gmra.mxu0 %v1918
      %v2599 = vpop.f32.mrf.mxu0
      %v2600 = vadd.f32 %v2577, %v2599
      %2601 = vdwg.mxu0
      %2602 = vmatpush.msra.mxu0 %v2311
      %2603 = vmatpush.msra.mxu0 %v2310
      %2604 = vmatpush.msra.mxu0 %v2309
      %2605 = vmatpush.msra.mxu0 %v2308
      %2606 = vmatpush.msra.mxu0 %v2307
      %2607 = vmatpush.msra.mxu0 %v2306
      %2608 = vmatpush.msra.mxu0 %v2305
      %2609 = vmatpush.msra.mxu0 %v2304
      %2610 = vmatpush.msra.mxu0 %v2303
      %2611 = vmatpush.msra.mxu0 %v2302
      %2612 = vmatpush.msra.mxu0 %v2301
      %2613 = vmatpush.msra.mxu0 %v2300
      %2614 = vmatpush.msra.mxu0 %v2299
      %2615 = vmatpush.msra.mxu0 %v2298
      %2616 = vmatpush.msra.mxu0 %v2297
      %2617 = vmatpush.msra.mxu0 %v2296
      %2618 = vmatmul.f32.gmra.mxu0 %v1903
      %v2619 = vpop.f32.mrf.mxu0
      %v2620 = vadd.f32 %v2597, %v2619
      %2621 = vmatmul.f32.gmra.mxu0 %v1919
      %v2622 = vpop.f32.mrf.mxu0
      %v2623 = vadd.f32 %v2600, %v2622
      %2624 = vdwg.mxu0
      %2625 = vmatpush.msra.mxu0 %v2327
      %2626 = vmatpush.msra.mxu0 %v2326
      %2627 = vmatpush.msra.mxu0 %v2325
      %2628 = vmatpush.msra.mxu0 %v2324
      %2629 = vmatpush.msra.mxu0 %v2323
      %2630 = vmatpush.msra.mxu0 %v2322
      %2631 = vmatpush.msra.mxu0 %v2321
      %2632 = vmatpush.msra.mxu0 %v2320
      %2633 = vmatpush.msra.mxu0 %v2319
      %2634 = vmatpush.msra.mxu0 %v2318
      %2635 = vmatpush.msra.mxu0 %v2317
      %2636 = vmatpush.msra.mxu0 %v2316
      %2637 = vmatpush.msra.mxu0 %v2315
      %2638 = vmatpush.msra.mxu0 %v2314
      %2639 = vmatpush.msra.mxu0 %v2313
      %2640 = vmatpush.msra.mxu0 %v2312
      %2641 = vmatmul.f32.gmra.mxu0 %v1904
      %v2642 = vpop.f32.mrf.mxu0
      %v2643 = vadd.f32 %v2620, %v2642
      %2644 = vmatmul.f32.gmra.mxu0 %v1920
      %v2645 = vpop.f32.mrf.mxu0
      %v2646 = vadd.f32 %v2623, %v2645
      %2647 = vdwg.mxu0
      %2648 = vmatpush.msra.mxu0 %v2343
      %2649 = vmatpush.msra.mxu0 %v2342
      %2650 = vmatpush.msra.mxu0 %v2341
      %2651 = vmatpush.msra.mxu0 %v2340
      %2652 = vmatpush.msra.mxu0 %v2339
      %2653 = vmatpush.msra.mxu0 %v2338
      %2654 = vmatpush.msra.mxu0 %v2337
      %2655 = vmatpush.msra.mxu0 %v2336
      %2656 = vmatpush.msra.mxu0 %v2335
      %2657 = vmatpush.msra.mxu0 %v2334
      %2658 = vmatpush.msra.mxu0 %v2333
      %2659 = vmatpush.msra.mxu0 %v2332
      %2660 = vmatpush.msra.mxu0 %v2331
      %2661 = vmatpush.msra.mxu0 %v2330
      %2662 = vmatpush.msra.mxu0 %v2329
      %2663 = vmatpush.msra.mxu0 %v2328
      %2664 = vmatmul.f32.gmra.mxu0 %v1905
      %v2665 = vpop.f32.mrf.mxu0
      %v2666 = vadd.f32 %v2643, %v2665
      %2667 = vmatmul.f32.gmra.mxu0 %v1921
      %v2668 = vpop.f32.mrf.mxu0
      %v2669 = vadd.f32 %v2646, %v2668
      %2670 = vdwg.mxu0
      %2671 = vmatpush.msra.mxu0 %v2359
      %2672 = vmatpush.msra.mxu0 %v2358
      %2673 = vmatpush.msra.mxu0 %v2357
      %2674 = vmatpush.msra.mxu0 %v2356
      %2675 = vmatpush.msra.mxu0 %v2355
      %2676 = vmatpush.msra.mxu0 %v2354
      %2677 = vmatpush.msra.mxu0 %v2353
      %2678 = vmatpush.msra.mxu0 %v2352
      %2679 = vmatpush.msra.mxu0 %v2351
      %2680 = vmatpush.msra.mxu0 %v2350
      %2681 = vmatpush.msra.mxu0 %v2349
      %2682 = vmatpush.msra.mxu0 %v2348
      %2683 = vmatpush.msra.mxu0 %v2347
      %2684 = vmatpush.msra.mxu0 %v2346
      %2685 = vmatpush.msra.mxu0 %v2345
      %2686 = vmatpush.msra.mxu0 %v2344
      %2687 = vmatmul.f32.gmra.mxu0 %v1906
      %v2688 = vpop.f32.mrf.mxu0
      %v2689 = vadd.f32 %v2666, %v2688
      %2690 = vmatmul.f32.gmra.mxu0 %v1922
      %v2691 = vpop.f32.mrf.mxu0
      %v2692 = vadd.f32 %v2669, %v2691
      %2693 = vdwg.mxu0
      %2694 = vmatpush.msra.mxu0 %v2375
      %2695 = vmatpush.msra.mxu0 %v2374
      %2696 = vmatpush.msra.mxu0 %v2373
      %2697 = vmatpush.msra.mxu0 %v2372
      %2698 = vmatpush.msra.mxu0 %v2371
      %2699 = vmatpush.msra.mxu0 %v2370
      %2700 = vmatpush.msra.mxu0 %v2369
      %2701 = vmatpush.msra.mxu0 %v2368
      %2702 = vmatpush.msra.mxu0 %v2367
      %2703 = vmatpush.msra.mxu0 %v2366
      %2704 = vmatpush.msra.mxu0 %v2365
      %2705 = vmatpush.msra.mxu0 %v2364
      %2706 = vmatpush.msra.mxu0 %v2363
      %2707 = vmatpush.msra.mxu0 %v2362
      %2708 = vmatpush.msra.mxu0 %v2361
      %2709 = vmatpush.msra.mxu0 %v2360
      %2710 = vmatmul.f32.gmra.mxu0 %v1907
      %v2711 = vpop.f32.mrf.mxu0
      %v2712 = vadd.f32 %v2689, %v2711
      %2713 = vmatmul.f32.gmra.mxu0 %v1923
      %v2714 = vpop.f32.mrf.mxu0
      %v2715 = vadd.f32 %v2692, %v2714
      %2716 = vdwg.mxu0
      %2717 = vmatpush.msra.mxu0 %v2391
      %2718 = vmatpush.msra.mxu0 %v2390
      %2719 = vmatpush.msra.mxu0 %v2389
      %2720 = vmatpush.msra.mxu0 %v2388
      %2721 = vmatpush.msra.mxu0 %v2387
      %2722 = vmatpush.msra.mxu0 %v2386
      %2723 = vmatpush.msra.mxu0 %v2385
      %2724 = vmatpush.msra.mxu0 %v2384
      %2725 = vmatpush.msra.mxu0 %v2383
      %2726 = vmatpush.msra.mxu0 %v2382
      %2727 = vmatpush.msra.mxu0 %v2381
      %2728 = vmatpush.msra.mxu0 %v2380
      %2729 = vmatpush.msra.mxu0 %v2379
      %2730 = vmatpush.msra.mxu0 %v2378
      %2731 = vmatpush.msra.mxu0 %v2377
      %2732 = vmatpush.msra.mxu0 %v2376
      %2733 = vmatmul.f32.gmra.mxu0 %v1908
      %v2734 = vpop.f32.mrf.mxu0
      %v2735 = vadd.f32 %v2712, %v2734
      %2736 = vmatmul.f32.gmra.mxu0 %v1924
      %v2737 = vpop.f32.mrf.mxu0
      %v2738 = vadd.f32 %v2715, %v2737
      %2739 = vdwg.mxu0
      %2740 = vmatpush.msra.mxu0 %v2407
      %2741 = vmatpush.msra.mxu0 %v2406
      %2742 = vmatpush.msra.mxu0 %v2405
      %2743 = vmatpush.msra.mxu0 %v2404
      %2744 = vmatpush.msra.mxu0 %v2403
      %2745 = vmatpush.msra.mxu0 %v2402
      %2746 = vmatpush.msra.mxu0 %v2401
      %2747 = vmatpush.msra.mxu0 %v2400
      %2748 = vmatpush.msra.mxu0 %v2399
      %2749 = vmatpush.msra.mxu0 %v2398
      %2750 = vmatpush.msra.mxu0 %v2397
      %2751 = vmatpush.msra.mxu0 %v2396
      %2752 = vmatpush.msra.mxu0 %v2395
      %2753 = vmatpush.msra.mxu0 %v2394
      %2754 = vmatpush.msra.mxu0 %v2393
      %2755 = vmatpush.msra.mxu0 %v2392
      %2756 = vmatmul.f32.gmra.mxu0 %v1909
      %v2757 = vpop.f32.mrf.mxu0
      %v2758 = vadd.f32 %v2735, %v2757
      %2759 = vmatmul.f32.gmra.mxu0 %v1925
      %v2760 = vpop.f32.mrf.mxu0
      %v2761 = vadd.f32 %v2738, %v2760
      %2762 = vdwg.mxu0
      %2763 = vmatpush.msra.mxu0 %v2423
      %2764 = vmatpush.msra.mxu0 %v2422
      %2765 = vmatpush.msra.mxu0 %v2421
      %2766 = vmatpush.msra.mxu0 %v2420
      %2767 = vmatpush.msra.mxu0 %v2419
      %2768 = vmatpush.msra.mxu0 %v2418
      %2769 = vmatpush.msra.mxu0 %v2417
      %2770 = vmatpush.msra.mxu0 %v2416
      %2771 = vmatpush.msra.mxu0 %v2415
      %2772 = vmatpush.msra.mxu0 %v2414
      %2773 = vmatpush.msra.mxu0 %v2413
      %2774 = vmatpush.msra.mxu0 %v2412
      %2775 = vmatpush.msra.mxu0 %v2411
      %2776 = vmatpush.msra.mxu0 %v2410
      %2777 = vmatpush.msra.mxu0 %v2409
      %2778 = vmatpush.msra.mxu0 %v2408
      %2779 = vmatmul.f32.gmra.mxu0 %v1910
      %v2780 = vpop.f32.mrf.mxu0
      %v2781 = vadd.f32 %v2758, %v2780
      %2782 = vmatmul.f32.gmra.mxu0 %v1926
      %v2783 = vpop.f32.mrf.mxu0
      %v2784 = vadd.f32 %v2761, %v2783
      %2785 = vdwg.mxu0
      %2786 = vmatpush.msra.mxu0 %v2439
      %2787 = vmatpush.msra.mxu0 %v2438
      %2788 = vmatpush.msra.mxu0 %v2437
      %2789 = vmatpush.msra.mxu0 %v2436
      %2790 = vmatpush.msra.mxu0 %v2435
      %2791 = vmatpush.msra.mxu0 %v2434
      %2792 = vmatpush.msra.mxu0 %v2433
      %2793 = vmatpush.msra.mxu0 %v2432
      %2794 = vmatpush.msra.mxu0 %v2431
      %2795 = vmatpush.msra.mxu0 %v2430
      %2796 = vmatpush.msra.mxu0 %v2429
      %2797 = vmatpush.msra.mxu0 %v2428
      %2798 = vmatpush.msra.mxu0 %v2427
      %2799 = vmatpush.msra.mxu0 %v2426
      %2800 = vmatpush.msra.mxu0 %v2425
      %2801 = vmatpush.msra.mxu0 %v2424
      %2802 = vmatmul.f32.gmra.mxu0 %v1911
      %v2803 = vpop.f32.mrf.mxu0
      %v2804 = vadd.f32 %v2781, %v2803
      %2805 = vmatmul.f32.gmra.mxu0 %v1927
      %v2806 = vpop.f32.mrf.mxu0
      %v2807 = vadd.f32 %v2784, %v2806
      %2808 = vdwg.mxu0
      %v2809 = vadd.f32 %v1280, %v2804
      %v2810 = vadd.f32 %v1281, %v2807
      %v2811 = vsel %vm400, %v2809, 0.0
      %2812 = vadd.xlane.f32.xlu0 %v2811
      %v2813 = vpop.xlane.xlu0 %2812
      %v2814 = vsel %vm400, %v2810, 0.0
      %2815 = vadd.xlane.f32.xlu0 %v2814
      %v2816 = vpop.xlane.xlu0 %2815
      %v2817 = vmul.f32 %v2813, %v1237
      %v2818 = vmul.f32 %v2816, %v1237
      %v2819 = vsub.f32 %v2809, %v2817
      %v2820 = vsub.f32 %v2810, %v2818
      %v2821 = vmul.f32 %v2819, %v2819
      %v2822 = vmul.f32 %v2820, %v2820
      %v2823 = vsel %vm400, %v2821, 0.0
      %2824 = vadd.xlane.f32.xlu0 %v2823
      %v2825 = vpop.xlane.xlu0 %2824
      %v2826 = vsel %vm400, %v2822, 0.0
      %2827 = vadd.xlane.f32.xlu0 %v2826
      %v2828 = vpop.xlane.xlu0 %2827
      %v2829 = vmul.f32 %v2825, %v1237
      %v2830 = vmul.f32 %v2828, %v1237
      %v2831 = vadd.f32 %v2829, 1e-05
      %v2832 = vadd.f32 %v2830, 1e-05
      %v2833 = vrsqrt.pop %v2831
      %v2834 = vmul.f32 %v2833, %v2831
      %v2835 = vmul.f32 %v2834, %v2833
      %v2836 = vmul.f32 0.5, %v2835
      %v2837 = vsub.f32 1.5, %v2836
      %v2838 = vmul.f32 %v2833, %v2837
      %vm2839 = vweird.f32 %v2831
      %vm2840 = vweird.f32 %v2833
      %vm2841 = vmor %vm2839, %vm2840
      %v2842 = vsel %vm2841, %v2833, %v2838
      %v2843 = vrsqrt.pop %v2832
      %v2844 = vmul.f32 %v2843, %v2832
      %v2845 = vmul.f32 %v2844, %v2843
      %v2846 = vmul.f32 0.5, %v2845
      %v2847 = vsub.f32 1.5, %v2846
      %v2848 = vmul.f32 %v2843, %v2847
      %vm2849 = vweird.f32 %v2832
      %vm2850 = vweird.f32 %v2843
      %vm2851 = vmor %vm2849, %vm2850
      %v2852 = vsel %vm2851, %v2843, %v2848
      %v2853 = vmul.f32 %v2819, %v2842
      %v2854 = vmul.f32 %v2820, %v2852
      %v2855 = vperm.slane %v1219, 4
      %v2856 = vmul.f32 %v2853, %v2855
      %v2857 = vmul.f32 %v2854, %v2855
      %v2858 = vperm.slane %v1219, 5
      %v2859 = vadd.f32 %v2856, %v2858
      %v2860 = vadd.f32 %v2857, %v2858
      %2861 = vst.msk [vmem:[%s8] sm:$0xff] %vm400, %v2859
      %2862 = vst.msk [vmem:[%s8 + $0x8] sm:$0xff] %vm400, %v2860
      // Predicated region
      $region57: #{multihead_attention_forward.1} parent=51 // pred_check
        %p2863 = pneg %p220
      $region58: #{multihead_attention_forward.1} parent=51 // pred_check_branch
        %2865 = sbr.rel (%p2863) target = $region60
      $region59: #{multihead_attention_forward.1} parent=51 // pred_region
        _
      $region60: #{multihead_attention_forward.1} parent=51 // pred_fallthru
        _
      // Predicated region
      $region61: #{multihead_attention_forward.1} parent=51 // pred_check
        %p2866 = pneg %p220
      $region62: #{multihead_attention_forward.1} parent=51 // pred_check_branch
        %2868 = sbr.rel (%p2866) target = $region64
      $region63: #{multihead_attention_forward.1} parent=51 // pred_region
        _
      $region64: #{multihead_attention_forward.1} parent=51 // pred_fallthru
        _
    $region52: #{multihead_attention_forward.1} parent=5 // pred_fallthru
      _
    %p2869 = scmp.le.s32.totalorder 2, %s14
    // Predicated region
    $region65: #{multihead_attention_forward.1} parent=5 // pred_check
      %p2870 = pneg %p2869
    $region66: #{multihead_attention_forward.1} parent=5 // pred_check_branch
      %2872 = sbr.rel (%p2870) target = $region68
    $region67: #{multihead_attention_forward.1} parent=5 // pred_region
      %s2873 = ssub.s32 %s14, 2
    $region68: #{multihead_attention_forward.1} parent=5 // pred_fallthru
      _
  $region6: #{multihead_attention_forward.1} parent=0 // loop_footer
    %s18 = sadd.s32 1, %s14
  $region7: #{multihead_attention_forward.1} parent=0 // loop_footer_branch
    %13 = sbr.rel target = $region3
  $region8: #{multihead_attention_forward.1} parent=0 // loop_exit
    _

</llo_original>
